<compile_context>
chip_gen: v7x
topology: tpu7x:2x2x1
jax: 0.10.0
libtpu: 0.0.40
codegen_flags: <defaults>
</compile_context>

<pallas_src>
import functools

import numpy as np
import jax
import jax.numpy as jnp
from jax.experimental import pallas as pl
from jax.experimental.pallas import tpu as pltpu

C_IN = 24                     # conv feature channels
D = 5                         # spatial size (module hard-codes 25 = d*d repeats)
Q_DIM = 10                    # question dim -> 2*(C_IN+2) + Q_DIM == 62
OBJ_FEAT = C_IN + 2           # 26 (conv features + 2 coord tags)
FEAT = 2 * OBJ_FEAT + Q_DIM   # 62
HID = 256
N_OBJ = D * D                 # 25
N_PAIR = N_OBJ * N_OBJ        # 625
N_PAD = 640                   # pair dim padded to 5 * 128 for clean MXU tiling
N_PAD_ROWS = N_PAD - N_PAIR   # 15 identical padding rows per batch element
EXP_K = 64                    # packed layer-1 operand rows: [a_i | 0 | a_j | 0]
A_J_OFF = 32                  # sublane-aligned offset of the a_j block


@functools.lru_cache(maxsize=None)
def _pair_select_np():
    """(640, 64) 0/1 matrix: row r = pair (o1, o2) = (r // 25, r % 25) selects
    a_i[o2] (cols 0..24) and a_j[o1] (cols 32..56); rows >= 625 are all zero."""
    p = np.zeros((N_PAD, EXP_K), np.float32)
    r = np.arange(N_PAIR)
    p[r, r % N_OBJ] = 1.0
    p[r, A_J_OFF + r // N_OBJ] = 1.0
    return p


def rn_mlp_kernel(xf_ref, q_ref, w1ij_ref, w1q_ref, b_ref, w234_ref, psel_ref,
                  o_ref, ab_ref, slab_ref, *, b_tile):
    f32 = jnp.float32
    bf16 = jnp.bfloat16

    w1i = w1ij_ref[0]          # (26, 256) bf16 -> multiplies x_flat[o2] (x_i block)
    w1j = w1ij_ref[1]          # (26, 256) bf16 -> multiplies x_flat[o1] (x_j block)
    w1q = w1q_ref[...]         # (10, 256) bf16
    b1 = b_ref[0]              # (1, 256) f32
    b2 = b_ref[1]
    b3 = b_ref[2]
    b4 = b_ref[3]
    w2 = w234_ref[0]           # (256, 256) bf16
    w3 = w234_ref[1]
    w4 = w234_ref[2]
    psel = psel_ref[...]       # (640, 64) bf16, precomputed selection matrix

    # Unused rows (25..31, 57..63) of the packed operand must be zero (0 * NaN
    # garbage would poison the selection matmul).  32 KB zero-fill per step.
    ab_ref[...] = jnp.zeros_like(ab_ref)

    # Per element: split layer 1 (3 tiny matmuls) + one K=64 expansion matmul.
    for bt in range(b_tile):
        xf = xf_ref[bt]        # (25, 26) bf16
        qv = q_ref[bt]         # (1, 10)  bf16

        qb = jnp.dot(qv, w1q, preferred_element_type=f32) + b1     # (1, 256)
        a_i = jnp.dot(xf, w1i, preferred_element_type=f32) + qb    # (25, 256)
        a_j = jnp.dot(xf, w1j, preferred_element_type=f32)         # (25, 256)

        ab_ref[0:N_OBJ, :] = a_i.astype(bf16)
        ab_ref[A_J_OFF:A_J_OFF + N_OBJ, :] = a_j.astype(bf16)

        # h1[r] = a_i[o2(r)] + a_j[o1(r)]  (pad rows r >= 625 are exactly zero).
        h1 = jnp.dot(psel, ab_ref[...], preferred_element_type=f32)  # (640, 256)
        slab_ref[bt * N_PAD:(bt + 1) * N_PAD, :] = (
            jnp.maximum(h1, 0.0).astype(bf16))

    # Layers 2-4 batched over the whole slab: one matmul / bias / ReLU each.
    h = jnp.maximum(
        jnp.dot(slab_ref[...], w2, preferred_element_type=f32) + b2, 0.0)
    h = jnp.maximum(
        jnp.dot(h.astype(bf16), w3, preferred_element_type=f32) + b3, 0.0)
    h = jnp.maximum(
        jnp.dot(h.astype(bf16), w4, preferred_element_type=f32) + b4, 0.0)

    # Pair-sum per element.  All pad rows are bit-identical (they all start from
    # the exact zero row), so unmasked sum minus 15 x one pad row equals the sum
    # over the 625 real pairs — no 640x256 mask multiply.
    m = b_tile * N_PAD
    pad_row = h[m - 1:m, :]                                   # (1, 256)
    sums = jnp.sum(h.reshape(b_tile, N_PAD, HID), axis=1)     # (b_tile, 256)
    o_ref[0] = sums - float(N_PAD_ROWS) * pad_row             # dense (b_tile,256)


def build_x_flat(x):
    """(b, c, d, d) NCHW -> (b, d*d, c+2) with the PyTorch coord tags appended."""
    b, c, d, _ = x.shape
    coords = jnp.linspace(-d / 2.0, d / 2.0, d).astype(x.dtype)
    cx = jnp.broadcast_to(coords[None, :], (d, d))   # varies along columns
    cy = jnp.broadcast_to(coords[:, None], (d, d))   # varies along rows
    ct = jnp.broadcast_to(jnp.stack([cx, cy])[None], (b, 2, d, d))
    x_tagged = jnp.concatenate([x, ct], axis=1)                      # (b, c+2, d, d)
    return x_tagged.reshape(b, c + 2, d * d).transpose(0, 2, 1)      # (b, 25, c+2)


def _pick_b_tile(b, cap=8):
    """Largest divisor of b <= cap; prefer an even grid (v7x: 2 TCs balanced),
    then grid >= 2, then anything."""
    for pred in (lambda g: g % 2 == 0, lambda g: g >= 2, lambda g: True):
        cands = [t for t in range(1, min(b, cap) + 1)
                 if b % t == 0 and pred(b // t)]
        if cands:
            return max(cands)
    return 1


def rn_layer_forward(x, ques, params, b_tile=None):
    w1, b1, w2, b2, w3, b3, w4, b4 = params
    b = x.shape[0]
    if b_tile is None:
        b_tile = _pick_b_tile(b)
    assert b % b_tile == 0
    grid_b = b // b_tile

    # Tiny JAX-side plumbing (the (b, 625, 62) pair tensor never hits HBM).
    xf = build_x_flat(x).astype(jnp.bfloat16)                # (b, 25, 26)
    q3 = ques.reshape(b, 1, Q_DIM).astype(jnp.bfloat16)      # (b, 1, 10)
    w1_bf = w1.astype(jnp.bfloat16)
    w1ij = jnp.stack([w1_bf[:OBJ_FEAT], w1_bf[OBJ_FEAT:2 * OBJ_FEAT]])  # (2,26,256)
    w1q = w1_bf[2 * OBJ_FEAT:]                                          # (10, 256)
    biases = jnp.stack([b1, b2, b3, b4]).astype(jnp.float32)            # (4, 1, 256)
    w234 = jnp.stack([w2, w3, w4]).astype(jnp.bfloat16)                 # (3, 256, 256)
    psel = jnp.asarray(_pair_select_np(), dtype=jnp.bfloat16)           # (640, 64)

    kernel = functools.partial(rn_mlp_kernel, b_tile=b_tile)
    out = pl.pallas_call(
        kernel,
        out_shape=jax.ShapeDtypeStruct((grid_b, b_tile, HID), jnp.float32),
        grid_spec=pltpu.PrefetchScalarGridSpec(
            num_scalar_prefetch=0,
            grid=(grid_b,),
            in_specs=[
                pl.BlockSpec((b_tile, N_OBJ, OBJ_FEAT), lambda i: (i, 0, 0)),
                pl.BlockSpec((b_tile, 1, Q_DIM), lambda i: (i, 0, 0)),
                pl.BlockSpec((2, OBJ_FEAT, HID), lambda i: (0, 0, 0)),
                pl.BlockSpec((Q_DIM, HID), lambda i: (0, 0)),
                pl.BlockSpec((4, 1, HID), lambda i: (0, 0, 0)),
                pl.BlockSpec((3, HID, HID), lambda i: (0, 0, 0)),
                pl.BlockSpec((N_PAD, EXP_K), lambda i: (0, 0)),
            ],
            out_specs=pl.BlockSpec((1, b_tile, HID), lambda i: (i, 0, 0)),
            scratch_shapes=[
                pltpu.VMEM((EXP_K, HID), jnp.bfloat16),           # packed layer-1 operand
                pltpu.VMEM((b_tile * N_PAD, HID), jnp.bfloat16),  # h1 slab for layers 2-4
            ],
        ),
        compiler_params=pltpu.CompilerParams(
            dimension_semantics=("parallel",),
            vmem_limit_bytes=48 * 1024 * 1024),
    )(xf, q3, w1ij, w1q, biases, w234, psel)
    return out.reshape(b, HID)


def init_params(key):
    """Deterministic PyTorch-nn.Linear-style uniform init, stored as (in, out)."""
    dims = [(FEAT, HID), (HID, HID), (HID, HID), (HID, HID)]
    params = []
    for i, (fin, fout) in enumerate(dims):
        kw, kb = jax.random.split(jax.random.fold_in(key, i))
        bound = 1.0 / jnp.sqrt(float(fin))
        w = jax.random.uniform(kw, (fin, fout), jnp.float32, -bound, bound)
        bb = jax.random.uniform(kb, (1, fout), jnp.float32, -bound, bound)
        params += [w, bb]
    return tuple(params)


def build_x_full(x, ques):
    """Reference-only: the exact PyTorch pairwise tensor (b, 625, 62)."""
    b = x.shape[0]
    n = N_OBJ
    x_flat = build_x_flat(x)
    x_i = jnp.broadcast_to(x_flat[:, None, :, :], (b, n, n, OBJ_FEAT))
    x_j = jnp.broadcast_to(x_flat[:, :, None, :], (b, n, n, OBJ_FEAT))
    qrep = jnp.broadcast_to(ques[:, None, None, :], (b, n, n, Q_DIM))
    return jnp.concatenate([x_i, x_j, qrep], axis=3).reshape(b, n * n, FEAT)


def reference_forward(x, ques, params, matmul_dtype=jnp.float32):
    """Plain-JAX reference mirroring the PyTorch module."""
    w1, b1, w2, b2, w3, b3, w4, b4 = params
    b = x.shape[0]
    xg = build_x_full(x, ques).reshape(-1, FEAT)

    def layer(h, w, bias):
        acc = jnp.dot(h.astype(matmul_dtype), w.astype(matmul_dtype),
                      preferred_element_type=jnp.float32)
        return jnp.maximum(acc.astype(jnp.float32) + bias, 0.0)

    h = layer(xg, w1, b1)
    h = layer(h, w2, b2)
    h = layer(h, w3, b3)
    h = layer(h, w4, b4)
    return h.reshape(b, N_PAIR, HID).sum(axis=1)


if __name__ == "__main__":
    key = jax.random.PRNGKey(0)
    kx, kq, kp = jax.random.split(key, 3)

    batch = 2
    x = jax.random.normal(kx, (batch, C_IN, D, D), jnp.float32)   # NCHW, like PyTorch
    ques = jax.random.normal(kq, (batch, Q_DIM), jnp.float32)
    params = init_params(kp)

    out = jax.block_until_ready(rn_layer_forward(x, ques, params))
    assert out.shape == (batch, HID)

    # Check vs a reference that uses the same numerics strategy (bf16 matmul
    # operands, f32 accumulation / bias / ReLU / sum).
    ref_bf16 = reference_forward(x, ques, params, matmul_dtype=jnp.bfloat16)
    assert jnp.allclose(out, ref_bf16, rtol=3e-2, atol=1.0), \
        "mismatch vs bf16-matched reference"

    # Loose sanity check vs the exact f32 module semantics (bf16 quantization only).
    ref_f32 = reference_forward(x, ques, params, matmul_dtype=jnp.float32)
    rel = jnp.max(jnp.abs(out - ref_f32)) / (jnp.max(jnp.abs(ref_f32)) + 1e-6)
    assert float(rel) < 5e-2, "kernel deviates too much from f32 reference"

    print("KERNEL_OK")
</pallas_src>

<mosaic_0001>
module attributes {stable_mosaic.version = 11 : i64} {
  func.func @rn_mlp_kernel(%arg0: i32, %arg1: memref<1x25x26xbf16, #tpu.memory_space<vmem>>, %arg2: memref<1x1x10xbf16, #tpu.memory_space<vmem>>, %arg3: memref<2x26x256xbf16, #tpu.memory_space<vmem>>, %arg4: memref<10x256xbf16, #tpu.memory_space<vmem>>, %arg5: memref<4x1x256xf32, #tpu.memory_space<vmem>>, %arg6: memref<3x256x256xbf16, #tpu.memory_space<vmem>>, %arg7: memref<640x64xbf16, #tpu.memory_space<vmem>>, %arg8: memref<1x1x256xf32, #tpu.memory_space<vmem>>, %arg9: memref<64x256xbf16, #tpu.memory_space<vmem>>, %arg10: memref<640x256xbf16, #tpu.memory_space<vmem>>) attributes {dimension_semantics = [#tpu.dimension_semantics<parallel>], iteration_bounds = array<i64: 2>, scalar_prefetch = 0 : i64, scratch_operands = 2 : i64, tpu.core_type = #tpu.core_type<tc>, window_params = [{transform_indices = @transform_0, window_bounds = array<i64: 1, 25, 26>}, {transform_indices = @transform_1, window_bounds = array<i64: 1, 1, 10>}, {pipeline_mode = #tpu.pipeline_mode<synchronous>, transform_indices = @transform_2, window_bounds = array<i64: 2, 26, 256>}, {pipeline_mode = #tpu.pipeline_mode<synchronous>, transform_indices = @transform_3, window_bounds = array<i64: 10, 256>}, {pipeline_mode = #tpu.pipeline_mode<synchronous>, transform_indices = @transform_4, window_bounds = array<i64: 4, 1, 256>}, {pipeline_mode = #tpu.pipeline_mode<synchronous>, transform_indices = @transform_5, window_bounds = array<i64: 3, 256, 256>}, {pipeline_mode = #tpu.pipeline_mode<synchronous>, transform_indices = @transform_6, window_bounds = array<i64: 640, 64>}, {transform_indices = @transform_7, window_bounds = array<i64: 1, 1, 256>}]} {
    %c0 = arith.constant 0 : index
    %c0_0 = arith.constant 0 : index
    %c0_1 = arith.constant 0 : index
    %0 = vector.load %arg3[%c0, %c0_0, %c0_1] : memref<2x26x256xbf16, #tpu.memory_space<vmem>>, vector<1x26x256xbf16>
    %1 = vector.shape_cast %0 : vector<1x26x256xbf16> to vector<26x256xbf16>
    %c1 = arith.constant 1 : index
    %c0_2 = arith.constant 0 : index
    %c0_3 = arith.constant 0 : index
    %2 = vector.load %arg3[%c1, %c0_2, %c0_3] : memref<2x26x256xbf16, #tpu.memory_space<vmem>>, vector<1x26x256xbf16>
    %3 = vector.shape_cast %2 : vector<1x26x256xbf16> to vector<26x256xbf16>
    %c0_4 = arith.constant 0 : index
    %c0_5 = arith.constant 0 : index
    %4 = vector.load %arg4[%c0_4, %c0_5] : memref<10x256xbf16, #tpu.memory_space<vmem>>, vector<10x256xbf16>
    %c0_6 = arith.constant 0 : index
    %c0_7 = arith.constant 0 : index
    %c0_8 = arith.constant 0 : index
    %5 = vector.load %arg5[%c0_6, %c0_7, %c0_8] : memref<4x1x256xf32, #tpu.memory_space<vmem>>, vector<1x1x256xf32>
    %6 = vector.shape_cast %5 : vector<1x1x256xf32> to vector<1x256xf32>
    %c1_9 = arith.constant 1 : index
    %c0_10 = arith.constant 0 : index
    %c0_11 = arith.constant 0 : index
    %7 = vector.load %arg5[%c1_9, %c0_10, %c0_11] : memref<4x1x256xf32, #tpu.memory_space<vmem>>, vector<1x1x256xf32>
    %8 = vector.shape_cast %7 : vector<1x1x256xf32> to vector<1x256xf32>
    %c2 = arith.constant 2 : index
    %c0_12 = arith.constant 0 : index
    %c0_13 = arith.constant 0 : index
    %9 = vector.load %arg5[%c2, %c0_12, %c0_13] : memref<4x1x256xf32, #tpu.memory_space<vmem>>, vector<1x1x256xf32>
    %10 = vector.shape_cast %9 : vector<1x1x256xf32> to vector<1x256xf32>
    %c3 = arith.constant 3 : index
    %c0_14 = arith.constant 0 : index
    %c0_15 = arith.constant 0 : index
    %11 = vector.load %arg5[%c3, %c0_14, %c0_15] : memref<4x1x256xf32, #tpu.memory_space<vmem>>, vector<1x1x256xf32>
    %12 = vector.shape_cast %11 : vector<1x1x256xf32> to vector<1x256xf32>
    %c0_16 = arith.constant 0 : index
    %c0_17 = arith.constant 0 : index
    %c0_18 = arith.constant 0 : index
    %13 = vector.load %arg6[%c0_16, %c0_17, %c0_18] : memref<3x256x256xbf16, #tpu.memory_space<vmem>>, vector<1x256x256xbf16>
    %14 = vector.shape_cast %13 : vector<1x256x256xbf16> to vector<256x256xbf16>
    %c1_19 = arith.constant 1 : index
    %c0_20 = arith.constant 0 : index
    %c0_21 = arith.constant 0 : index
    %15 = vector.load %arg6[%c1_19, %c0_20, %c0_21] : memref<3x256x256xbf16, #tpu.memory_space<vmem>>, vector<1x256x256xbf16>
    %16 = vector.shape_cast %15 : vector<1x256x256xbf16> to vector<256x256xbf16>
    %c2_22 = arith.constant 2 : index
    %c0_23 = arith.constant 0 : index
    %c0_24 = arith.constant 0 : index
    %17 = vector.load %arg6[%c2_22, %c0_23, %c0_24] : memref<3x256x256xbf16, #tpu.memory_space<vmem>>, vector<1x256x256xbf16>
    %18 = vector.shape_cast %17 : vector<1x256x256xbf16> to vector<256x256xbf16>
    %c0_25 = arith.constant 0 : index
    %c0_26 = arith.constant 0 : index
    %19 = vector.load %arg7[%c0_25, %c0_26] : memref<640x64xbf16, #tpu.memory_space<vmem>>, vector<640x64xbf16>
    %cst = arith.constant 0.000000e+00 : bf16
    %20 = vector.broadcast %cst : bf16 to vector<64x256xbf16>
    %c0_27 = arith.constant 0 : index
    %c0_28 = arith.constant 0 : index
    %21 = vector.load %arg9[%c0_27, %c0_28] : memref<64x256xbf16, #tpu.memory_space<vmem>>, vector<64x256xbf16>
    tpu.vector_store %arg9[%c0_27, %c0_28], %20 {strides = array<i32>} : memref<64x256xbf16, #tpu.memory_space<vmem>>, vector<64x256xbf16>,
    %c0_29 = arith.constant 0 : index
    %c0_30 = arith.constant 0 : index
    %c0_31 = arith.constant 0 : index
    %22 = vector.load %arg1[%c0_29, %c0_30, %c0_31] : memref<1x25x26xbf16, #tpu.memory_space<vmem>>, vector<1x25x26xbf16>
    %23 = vector.shape_cast %22 : vector<1x25x26xbf16> to vector<25x26xbf16>
    %c0_32 = arith.constant 0 : index
    %c0_33 = arith.constant 0 : index
    %c0_34 = arith.constant 0 : index
    %24 = vector.load %arg2[%c0_32, %c0_33, %c0_34] : memref<1x1x10xbf16, #tpu.memory_space<vmem>>, vector<1x1x10xbf16>
    %25 = vector.shape_cast %24 : vector<1x1x10xbf16> to vector<1x10xbf16>
    %cst_35 = arith.constant dense<0.000000e+00> : vector<1x256xf32>
    %26 = tpu.matmul %25, %4, %cst_35 {dimension_numbers = #tpu.dot_dimension_numbers<[1], [0], [0], [1], [0, 0, 1, 1], [], []>} : vector<1x10xbf16>, vector<10x256xbf16>, vector<1x256xf32> -> vector<1x256xf32>
    %27 = arith.addf %26, %6 : vector<1x256xf32>
    %cst_36 = arith.constant dense<0.000000e+00> : vector<25x256xf32>
    %28 = tpu.matmul %23, %1, %cst_36 {dimension_numbers = #tpu.dot_dimension_numbers<[1], [0], [0], [1], [0, 0, 1, 1], [], []>} : vector<25x26xbf16>, vector<26x256xbf16>, vector<25x256xf32> -> vector<25x256xf32>
    %29 = vector.broadcast %27 : vector<1x256xf32> to vector<25x256xf32>
    %30 = arith.addf %28, %29 : vector<25x256xf32>
    %cst_37 = arith.constant dense<0.000000e+00> : vector<25x256xf32>
    %31 = tpu.matmul %23, %3, %cst_37 {dimension_numbers = #tpu.dot_dimension_numbers<[1], [0], [0], [1], [0, 0, 1, 1], [], []>} : vector<25x26xbf16>, vector<26x256xbf16>, vector<25x256xf32> -> vector<25x256xf32>
    %32 = arith.truncf %30 : vector<25x256xf32> to vector<25x256xbf16>
    %c0_38 = arith.constant 0 : index
    %c0_39 = arith.constant 0 : index
    %33 = vector.load %arg9[%c0_38, %c0_39] : memref<64x256xbf16, #tpu.memory_space<vmem>>, vector<25x256xbf16>
    tpu.vector_store %arg9[%c0_38, %c0_39], %32 {strides = array<i32>} : memref<64x256xbf16, #tpu.memory_space<vmem>>, vector<25x256xbf16>,
    %34 = arith.truncf %31 : vector<25x256xf32> to vector<25x256xbf16>
    %c32 = arith.constant 32 : index
    %c0_40 = arith.constant 0 : index
    %35 = vector.load %arg9[%c32, %c0_40] : memref<64x256xbf16, #tpu.memory_space<vmem>>, vector<25x256xbf16>
    tpu.vector_store %arg9[%c32, %c0_40], %34 {strides = array<i32>} : memref<64x256xbf16, #tpu.memory_space<vmem>>, vector<25x256xbf16>,
    %c0_41 = arith.constant 0 : index
    %c0_42 = arith.constant 0 : index
    %36 = vector.load %arg9[%c0_41, %c0_42] : memref<64x256xbf16, #tpu.memory_space<vmem>>, vector<64x256xbf16>
    %cst_43 = arith.constant dense<0.000000e+00> : vector<640x256xf32>
    %37 = tpu.matmul %19, %36, %cst_43 {dimension_numbers = #tpu.dot_dimension_numbers<[1], [0], [0], [1], [0, 0, 1, 1], [], []>} : vector<640x64xbf16>, vector<64x256xbf16>, vector<640x256xf32> -> vector<640x256xf32>
    %cst_44 = arith.constant 0.000000e+00 : f32
    %38 = vector.broadcast %cst_44 : f32 to vector<640x256xf32>
    %39 = arith.maximumf %37, %38 : vector<640x256xf32>
    %40 = arith.truncf %39 : vector<640x256xf32> to vector<640x256xbf16>
    %c0_45 = arith.constant 0 : index
    %c0_46 = arith.constant 0 : index
    %41 = vector.load %arg10[%c0_45, %c0_46] : memref<640x256xbf16, #tpu.memory_space<vmem>>, vector<640x256xbf16>
    tpu.vector_store %arg10[%c0_45, %c0_46], %40 {strides = array<i32>} : memref<640x256xbf16, #tpu.memory_space<vmem>>, vector<640x256xbf16>,
    %c0_47 = arith.constant 0 : index
    %c0_48 = arith.constant 0 : index
    %42 = vector.load %arg10[%c0_47, %c0_48] : memref<640x256xbf16, #tpu.memory_space<vmem>>, vector<640x256xbf16>
    %cst_49 = arith.constant dense<0.000000e+00> : vector<640x256xf32>
    %43 = tpu.matmul %42, %14, %cst_49 {dimension_numbers = #tpu.dot_dimension_numbers<[1], [0], [0], [1], [0, 0, 1, 1], [], []>} : vector<640x256xbf16>, vector<256x256xbf16>, vector<640x256xf32> -> vector<640x256xf32>
    %44 = vector.broadcast %8 : vector<1x256xf32> to vector<640x256xf32>
    %45 = arith.addf %43, %44 : vector<640x256xf32>
    %cst_50 = arith.constant 0.000000e+00 : f32
    %46 = vector.broadcast %cst_50 : f32 to vector<640x256xf32>
    %47 = arith.maximumf %45, %46 : vector<640x256xf32>
    %48 = arith.truncf %47 : vector<640x256xf32> to vector<640x256xbf16>
    %cst_51 = arith.constant dense<0.000000e+00> : vector<640x256xf32>
    %49 = tpu.matmul %48, %16, %cst_51 {dimension_numbers = #tpu.dot_dimension_numbers<[1], [0], [0], [1], [0, 0, 1, 1], [], []>} : vector<640x256xbf16>, vector<256x256xbf16>, vector<640x256xf32> -> vector<640x256xf32>
    %50 = vector.broadcast %10 : vector<1x256xf32> to vector<640x256xf32>
    %51 = arith.addf %49, %50 : vector<640x256xf32>
    %cst_52 = arith.constant 0.000000e+00 : f32
    %52 = vector.broadcast %cst_52 : f32 to vector<640x256xf32>
    %53 = arith.maximumf %51, %52 : vector<640x256xf32>
    %54 = arith.truncf %53 : vector<640x256xf32> to vector<640x256xbf16>
    %cst_53 = arith.constant dense<0.000000e+00> : vector<640x256xf32>
    %55 = tpu.matmul %54, %18, %cst_53 {dimension_numbers = #tpu.dot_dimension_numbers<[1], [0], [0], [1], [0, 0, 1, 1], [], []>} : vector<640x256xbf16>, vector<256x256xbf16>, vector<640x256xf32> -> vector<640x256xf32>
    %56 = vector.broadcast %12 : vector<1x256xf32> to vector<640x256xf32>
    %57 = arith.addf %55, %56 : vector<640x256xf32>
    %cst_54 = arith.constant 0.000000e+00 : f32
    %58 = vector.broadcast %cst_54 : f32 to vector<640x256xf32>
    %59 = arith.maximumf %57, %58 : vector<640x256xf32>
    %60 = vector.extract_strided_slice %59 {offsets = [639, 0], sizes = [1, 256], strides = [1, 1]} : vector<640x256xf32> to vector<1x256xf32>
    %61 = vector.shape_cast %59 : vector<640x256xf32> to vector<1x640x256xf32>
    %cst_55 = arith.constant dense<0.000000e+00> : vector<1x256xf32>
    %62 = vector.multi_reduction <add>, %61, %cst_55 [1] : vector<1x640x256xf32> to vector<1x256xf32>
    %cst_56 = arith.constant 1.500000e+01 : f32
    %63 = vector.broadcast %cst_56 : f32 to vector<1x256xf32>
    %64 = arith.mulf %63, %60 : vector<1x256xf32>
    %65 = arith.subf %62, %64 : vector<1x256xf32>
    %c0_57 = arith.constant 0 : index
    %c0_58 = arith.constant 0 : index
    %c0_59 = arith.constant 0 : index
    %66 = vector.load %arg8[%c0_57, %c0_58, %c0_59] : memref<1x1x256xf32, #tpu.memory_space<vmem>>, vector<1x1x256xf32>
    %67 = vector.shape_cast %66 : vector<1x1x256xf32> to vector<1x256xf32>
    %68 = vector.shape_cast %65 : vector<1x256xf32> to vector<1x1x256xf32>
    tpu.vector_store %arg8[%c0_57, %c0_58, %c0_59], %68 {strides = array<i32>} : memref<1x1x256xf32, #tpu.memory_space<vmem>>, vector<1x1x256xf32>,
    return
  }
  func.func @transform_0(%arg0: i32) -> (i32, i32, i32) {
    %c0_i32 = arith.constant 0 : i32
    %c0_i32_0 = arith.constant 0 : i32
    %c0_i32_1 = arith.constant 0 : i32
    return %arg0, %c0_i32, %c0_i32_0 : i32, i32, i32
  }
  func.func @transform_1(%arg0: i32) -> (i32, i32, i32) {
    %c0_i32 = arith.constant 0 : i32
    %c0_i32_0 = arith.constant 0 : i32
    %c0_i32_1 = arith.constant 0 : i32
    return %arg0, %c0_i32, %c0_i32_0 : i32, i32, i32
  }
  func.func @transform_2(%arg0: i32) -> (i32, i32, i32) {
    %c0_i32 = arith.constant 0 : i32
    %c0_i32_0 = arith.constant 0 : i32
    %c0_i32_1 = arith.constant 0 : i32
    %c0_i32_2 = arith.constant 0 : i32
    return %c0_i32, %c0_i32_0, %c0_i32_1 : i32, i32, i32
  }
  func.func @transform_3(%arg0: i32) -> (i32, i32) {
    %c0_i32 = arith.constant 0 : i32
    %c0_i32_0 = arith.constant 0 : i32
    %c0_i32_1 = arith.constant 0 : i32
    return %c0_i32, %c0_i32_0 : i32, i32
  }
  func.func @transform_4(%arg0: i32) -> (i32, i32, i32) {
    %c0_i32 = arith.constant 0 : i32
    %c0_i32_0 = arith.constant 0 : i32
    %c0_i32_1 = arith.constant 0 : i32
    %c0_i32_2 = arith.constant 0 : i32
    return %c0_i32, %c0_i32_0, %c0_i32_1 : i32, i32, i32
  }
  func.func @transform_5(%arg0: i32) -> (i32, i32, i32) {
    %c0_i32 = arith.constant 0 : i32
    %c0_i32_0 = arith.constant 0 : i32
    %c0_i32_1 = arith.constant 0 : i32
    %c0_i32_2 = arith.constant 0 : i32
    return %c0_i32, %c0_i32_0, %c0_i32_1 : i32, i32, i32
  }
  func.func @transform_6(%arg0: i32) -> (i32, i32) {
    %c0_i32 = arith.constant 0 : i32
    %c0_i32_0 = arith.constant 0 : i32
    %c0_i32_1 = arith.constant 0 : i32
    return %c0_i32, %c0_i32_0 : i32, i32
  }
  func.func @transform_7(%arg0: i32) -> (i32, i32, i32) {
    %c0_i32 = arith.constant 0 : i32
    %c0_i32_0 = arith.constant 0 : i32
    %c0_i32_1 = arith.constant 0 : i32
    return %arg0, %c0_i32, %c0_i32_0 : i32, i32, i32
  }
}

</mosaic_0001>

<llo_original>
// kernel: tpu_custom_call.1
$region0: #{tpu_custom_call.1}
  #allocation0 [shape = 'u32[]', space=smem, size = 0x4, offset = 0x4, fixed_abs, tag = 'smem constant byte address 0x4 - core index']
  #allocation1 [shape = 'u32[144,128]{1,0:T(1,128)}', space=vmem, size = 0x12000, scoped, tag = 'internal scratch']
  #allocation2 [shape = 'bf16[64,256]{1,0:T(16,128)(2,1)}', space=vmem, size = 0x8000, scoped, tag = 'scratch operand']
  #allocation3 [shape = 'bf16[640,256]{1,0:T(16,128)(2,1)}', space=vmem, size = 0x50000, scoped, tag = 'scratch operand']
  %s0 = inlined_call_operand.vmem [shape: bf16[2,25,26], index: 0, kind: input, shape index: {}]
  %s1 = inlined_call_operand.vmem [shape: bf16[2,1,10], index: 1, kind: input, shape index: {}]
  %s2 = inlined_call_operand.vmem [shape: bf16[2,26,256], index: 2, kind: input, shape index: {}]
  %s3 = inlined_call_operand.vmem [shape: bf16[10,256], index: 3, kind: input, shape index: {}]
  %s4 = inlined_call_operand.vmem [shape: f32[4,1,256], index: 4, kind: input, shape index: {}]
  %s5 = inlined_call_operand.hbm [shape: bf16[3,256,256], index: 5, kind: input, shape index: {}]
  %s6 = inlined_call_operand.vmem [shape: bf16[640,64], index: 6, kind: input, shape index: {}]
  %s7 = inlined_call_operand.hbm [shape: f32[2,1,256], index: 7, kind: output, shape index: {}]
  %s8 = sld [smem:[#allocation0]]
  $region65: #{tpu_custom_call.1} parent=0
    _
  %s10 = ssub.s32 1, %s8
  %s11 = scalar_select 0, %s10, %s8
  $region1: #{tpu_custom_call.1} parent=0
    #allocation4 [shape = 'u8[393216]{0}', space=vmem, size = 0x60000, scoped, tag = 'input window, operand 5, single buffered']
    #allocation5 [shape = 's32[2]{0}', space=sflag, size = 0x8, scoped, tag = 'scoped memory for tpu_custom_call.1']
    #allocation6 [shape = 's32[2]{0}', space=sflag, size = 0x8, scoped, tag = 'scoped memory for tpu_custom_call.1']
    #allocation7 [shape = 'u8[2048]{0}', space=vmem, size = 0x800, scoped, tag = 'output window, operand 0']
    %12 = vsyncpa [#allocation5], 0
    %13 = vsyncpa [#allocation6], 0
    %s14 = scalar_lea.sflag [#allocation6], 1
    %15 = vsyncpa %s14, 0
    loop: start=0, step=1, limit=4
    $region2: #{tpu_custom_call.1} parent=1 // loop_pre_header
      _
    $region3: #{tpu_custom_call.1} parent=1 // loop_header
      %s17 = sphi 0, %s21
      %p18 = scmp.ge.s32.totalorder %s17, 4
      %s27 = sphi 0, %s29
      %s30 = sphi 0, %s27
      %s31 = sphi 0, %s30
      %s47 = sphi 0, %s31
      %s53 = sphi 0, %s55
      %s56 = sphi 0, %s53
      %s57 = sphi 0, %s56
      %s73 = sphi 0, %s57
      %s77 = sphi 0, %s77
      %s79 = sphi 0, %s77
      %s80 = sphi 0, %s79
      %s94 = sphi 0, %s80
      %s98 = sphi 0, %s98
      %s100 = sphi 0, %s98
      %s101 = sphi 0, %s100
      %s115 = sphi 0, %s101
      %s119 = sphi 0, %s119
      %s121 = sphi 0, %s119
      %s122 = sphi 0, %s121
      %s136 = sphi 0, %s122
      %s140 = sphi 0, %s140
      %s142 = sphi 0, %s140
      %s143 = sphi 0, %s142
      %s157 = sphi 0, %s143
      %s161 = sphi 0, %s161
      %s163 = sphi 0, %s161
      %s164 = sphi 0, %s163
      %s178 = sphi 0, %s164
      %s184 = sphi 0, %s186
      %s187 = sphi 0, %s184
      %s188 = sphi 0, %s187
      %s204 = sphi 0, %s188
    $region4: #{tpu_custom_call.1} parent=1 // loop_header_branch
      %20 = sbr.rel (%p18) target = $region8
    $region5: #{tpu_custom_call.1} parent=1 // loop_body
      %s22 = ssub.s32 %s17, 1
      %s23 = ssub.s32 %s17, 2
      %s24 = sadd.s32 %s17, 1
      %s25 = ssub.s32 %s17, %s24
      %p26 = scmp.eq.s32.totalorder %s25, 0
      %s28 = sadd.s32 %s27, 1
      %s29 = scalar_select %p26, %s27, %s28
      %p32 = pneg %p26
      %p33 = scmp.eq.s32.totalorder %s17, 1
      %p34 = por %p32, %p33
      %p35 = scmp.ne.s32.totalorder %s27, %s30
      %p36 = scmp.eq.s32.totalorder %s17, 0
      %p37 = por %p35, %p36
      %p38 = scmp.ne.s32.totalorder %s27, %s30
      %p39 = scmp.eq.s32.totalorder %s22, 1
      %p40 = por %p38, %p39
      %p41 = scmp.ne.s32.totalorder %s30, %s31
      %p42 = scmp.eq.s32.totalorder %s22, 0
      %p43 = por %p41, %p42
      %p44 = scmp.ne.s32.totalorder %s30, %s31
      %p45 = scmp.eq.s32.totalorder %s23, 1
      %p46 = por %p44, %p45
      %p48 = scmp.ne.s32.totalorder %s31, %s47
      %p49 = scmp.eq.s32.totalorder %s23, 0
      %p50 = por %p48, %p49
      %s51 = ssub.s32 %s17, %s24
      %p52 = scmp.eq.s32.totalorder %s51, 0
      %s54 = sadd.s32 %s53, 1
      %s55 = scalar_select %p52, %s53, %s54
      %p58 = pneg %p52
      %p59 = scmp.eq.s32.totalorder %s17, 1
      %p60 = por %p58, %p59
      %p61 = scmp.ne.s32.totalorder %s53, %s56
      %p62 = scmp.eq.s32.totalorder %s17, 0
      %p63 = por %p61, %p62
      %p64 = scmp.ne.s32.totalorder %s53, %s56
      %p65 = scmp.eq.s32.totalorder %s22, 1
      %p66 = por %p64, %p65
      %p67 = scmp.ne.s32.totalorder %s56, %s57
      %p68 = scmp.eq.s32.totalorder %s22, 0
      %p69 = por %p67, %p68
      %p70 = scmp.ne.s32.totalorder %s56, %s57
      %p71 = scmp.eq.s32.totalorder %s23, 1
      %p72 = por %p70, %p71
      %p74 = scmp.ne.s32.totalorder %s57, %s73
      %p75 = scmp.eq.s32.totalorder %s23, 0
      %p76 = por %p74, %p75
      %s78 = sadd.s32 %s77, 1
      %p81 = scmp.eq.s32.totalorder %s17, 1
      %p82 = scmp.ne.s32.totalorder %s77, %s79
      %p83 = scmp.eq.s32.totalorder %s17, 0
      %p84 = por %p82, %p83
      %p85 = scmp.ne.s32.totalorder %s77, %s79
      %p86 = scmp.eq.s32.totalorder %s22, 1
      %p87 = por %p85, %p86
      %p88 = scmp.ne.s32.totalorder %s79, %s80
      %p89 = scmp.eq.s32.totalorder %s22, 0
      %p90 = por %p88, %p89
      %p91 = scmp.ne.s32.totalorder %s79, %s80
      %p92 = scmp.eq.s32.totalorder %s23, 1
      %p93 = por %p91, %p92
      %p95 = scmp.ne.s32.totalorder %s80, %s94
      %p96 = scmp.eq.s32.totalorder %s23, 0
      %p97 = por %p95, %p96
      %s99 = sadd.s32 %s98, 1
      %p102 = scmp.eq.s32.totalorder %s17, 1
      %p103 = scmp.ne.s32.totalorder %s98, %s100
      %p104 = scmp.eq.s32.totalorder %s17, 0
      %p105 = por %p103, %p104
      %p106 = scmp.ne.s32.totalorder %s98, %s100
      %p107 = scmp.eq.s32.totalorder %s22, 1
      %p108 = por %p106, %p107
      %p109 = scmp.ne.s32.totalorder %s100, %s101
      %p110 = scmp.eq.s32.totalorder %s22, 0
      %p111 = por %p109, %p110
      %p112 = scmp.ne.s32.totalorder %s100, %s101
      %p113 = scmp.eq.s32.totalorder %s23, 1
      %p114 = por %p112, %p113
      %p116 = scmp.ne.s32.totalorder %s101, %s115
      %p117 = scmp.eq.s32.totalorder %s23, 0
      %p118 = por %p116, %p117
      %s120 = sadd.s32 %s119, 1
      %p123 = scmp.eq.s32.totalorder %s17, 1
      %p124 = scmp.ne.s32.totalorder %s119, %s121
      %p125 = scmp.eq.s32.totalorder %s17, 0
      %p126 = por %p124, %p125
      %p127 = scmp.ne.s32.totalorder %s119, %s121
      %p128 = scmp.eq.s32.totalorder %s22, 1
      %p129 = por %p127, %p128
      %p130 = scmp.ne.s32.totalorder %s121, %s122
      %p131 = scmp.eq.s32.totalorder %s22, 0
      %p132 = por %p130, %p131
      %p133 = scmp.ne.s32.totalorder %s121, %s122
      %p134 = scmp.eq.s32.totalorder %s23, 1
      %p135 = por %p133, %p134
      %p137 = scmp.ne.s32.totalorder %s122, %s136
      %p138 = scmp.eq.s32.totalorder %s23, 0
      %p139 = por %p137, %p138
      %s141 = sadd.s32 %s140, 1
      %p144 = scmp.eq.s32.totalorder %s17, 1
      %p145 = scmp.ne.s32.totalorder %s140, %s142
      %p146 = scmp.eq.s32.totalorder %s17, 0
      %p147 = por %p145, %p146
      %p148 = scmp.ne.s32.totalorder %s140, %s142
      %p149 = scmp.eq.s32.totalorder %s22, 1
      %p150 = por %p148, %p149
      %p151 = scmp.ne.s32.totalorder %s142, %s143
      %p152 = scmp.eq.s32.totalorder %s22, 0
      %p153 = por %p151, %p152
      %p154 = scmp.ne.s32.totalorder %s142, %s143
      %p155 = scmp.eq.s32.totalorder %s23, 1
      %p156 = por %p154, %p155
      %p158 = scmp.ne.s32.totalorder %s143, %s157
      %p159 = scmp.eq.s32.totalorder %s23, 0
      %p160 = por %p158, %p159
      %s162 = sadd.s32 %s161, 1
      %p165 = scmp.eq.s32.totalorder %s17, 1
      %p166 = scmp.ne.s32.totalorder %s161, %s163
      %p167 = scmp.eq.s32.totalorder %s17, 0
      %p168 = por %p166, %p167
      %p169 = scmp.ne.s32.totalorder %s161, %s163
      %p170 = scmp.eq.s32.totalorder %s22, 1
      %p171 = por %p169, %p170
      %p172 = scmp.ne.s32.totalorder %s163, %s164
      %p173 = scmp.eq.s32.totalorder %s22, 0
      %p174 = por %p172, %p173
      %p175 = scmp.ne.s32.totalorder %s163, %s164
      %p176 = scmp.eq.s32.totalorder %s23, 1
      %p177 = por %p175, %p176
      %p179 = scmp.ne.s32.totalorder %s164, %s178
      %p180 = scmp.eq.s32.totalorder %s23, 0
      %p181 = por %p179, %p180
      %s182 = ssub.s32 %s17, %s24
      %p183 = scmp.eq.s32.totalorder %s182, 0
      %s185 = sadd.s32 %s184, 1
      %s186 = scalar_select %p183, %s184, %s185
      %p189 = pneg %p183
      %p190 = scmp.eq.s32.totalorder %s17, 1
      %p191 = por %p189, %p190
      %p192 = scmp.ne.s32.totalorder %s184, %s187
      %p193 = scmp.eq.s32.totalorder %s17, 0
      %p194 = por %p192, %p193
      %p195 = scmp.ne.s32.totalorder %s184, %s187
      %p196 = scmp.eq.s32.totalorder %s22, 1
      %p197 = por %p195, %p196
      %p198 = scmp.ne.s32.totalorder %s187, %s188
      %p199 = scmp.eq.s32.totalorder %s22, 0
      %p200 = por %p198, %p199
      %p201 = scmp.ne.s32.totalorder %s187, %s188
      %p202 = scmp.eq.s32.totalorder %s23, 1
      %p203 = por %p201, %p202
      %p205 = scmp.ne.s32.totalorder %s188, %s204
      %p206 = scmp.eq.s32.totalorder %s23, 0
      %p207 = por %p205, %p206
      %p208 = scmp.le.s32.totalorder 1, %s17
      %p209 = scmp.lt.s32.totalorder %s17, 3
      %p210 = pnand %p208, %p209
      %p211 = pneg %p210
      // Predicated region
      $region9: #{tpu_custom_call.1} parent=5 // pred_check
        _
      $region10: #{tpu_custom_call.1} parent=5 // pred_check_branch
        %213 = sbr.rel (%p210) target = $region12
      $region11: #{tpu_custom_call.1} parent=5 // pred_region
        %s214 = ssub.s32 %s17, 1
        // Predicated region
        $region13: #{tpu_custom_call.1} parent=11 // pred_check
          %p215 = pneg %p90
        $region14: #{tpu_custom_call.1} parent=11 // pred_check_branch
          %217 = sbr.rel (%p215) target = $region16
        $region15: #{tpu_custom_call.1} parent=11 // pred_region
          _
        $region16: #{tpu_custom_call.1} parent=11 // pred_fallthru
          _
        // Predicated region
        $region17: #{tpu_custom_call.1} parent=11 // pred_check
          %p218 = pneg %p111
        $region18: #{tpu_custom_call.1} parent=11 // pred_check_branch
          %220 = sbr.rel (%p218) target = $region20
        $region19: #{tpu_custom_call.1} parent=11 // pred_region
          _
        $region20: #{tpu_custom_call.1} parent=11 // pred_fallthru
          _
        // Predicated region
        $region21: #{tpu_custom_call.1} parent=11 // pred_check
          %p221 = pneg %p132
        $region22: #{tpu_custom_call.1} parent=11 // pred_check_branch
          %223 = sbr.rel (%p221) target = $region24
        $region23: #{tpu_custom_call.1} parent=11 // pred_region
          _
        $region24: #{tpu_custom_call.1} parent=11 // pred_fallthru
          _
        // Predicated region
        $region25: #{tpu_custom_call.1} parent=11 // pred_check
          %p224 = pneg %p153
        $region26: #{tpu_custom_call.1} parent=11 // pred_check_branch
          %226 = sbr.rel (%p224) target = $region28
        $region27: #{tpu_custom_call.1} parent=11 // pred_region
          %s228 = ssub.s32 12288, 12288
          %229 = vsyncadd [#allocation5], %s228
          %s230 = sshll.u32 [#allocation4], 4
          %s231 = int_to_ptr.vmem [resolvable:$true] %s230
          %236 = dma.hbm_to_vmem [thread:$0]  %s5, 12288, %s231, [#allocation5], 128, 128, 8
        $region28: #{tpu_custom_call.1} parent=11 // pred_fallthru
          _
        // Predicated region
        $region29: #{tpu_custom_call.1} parent=11 // pred_check
          %p237 = pneg %p174
        $region30: #{tpu_custom_call.1} parent=11 // pred_check_branch
          %239 = sbr.rel (%p237) target = $region32
        $region31: #{tpu_custom_call.1} parent=11 // pred_region
          _
        $region32: #{tpu_custom_call.1} parent=11 // pred_fallthru
          _
      $region12: #{tpu_custom_call.1} parent=5 // pred_fallthru
        _
      %p240 = scmp.lt.s32.totalorder %s17, 2
      // Predicated region
      $region33: #{tpu_custom_call.1} parent=5 // pred_check
        %p241 = pneg %p240
      $region34: #{tpu_custom_call.1} parent=5 // pred_check_branch
        %243 = sbr.rel (%p241) target = $region36
      $region35: #{tpu_custom_call.1} parent=5 // pred_region
        // Predicated region
        $region37: #{tpu_custom_call.1} parent=35 // pred_check
          %p244 = pneg %p37
        $region38: #{tpu_custom_call.1} parent=35 // pred_check_branch
          %246 = sbr.rel (%p244) target = $region40
        $region39: #{tpu_custom_call.1} parent=35 // pred_region
          %p247 = scmp.lt.s32.totalorder %s17, 1
          %s248 = scalar_select %p247, %s17, 1
          %s249 = smul.addr %s248, 4
          %s250 = smul.addr %s249, 4
          %s251 = scalar_lea.vmem %s0, %s250
        $region40: #{tpu_custom_call.1} parent=35 // pred_fallthru
          _
        // Predicated region
        $region41: #{tpu_custom_call.1} parent=35 // pred_check
          %p252 = pneg %p63
        $region42: #{tpu_custom_call.1} parent=35 // pred_check_branch
          %254 = sbr.rel (%p252) target = $region44
        $region43: #{tpu_custom_call.1} parent=35 // pred_region
          %p255 = scmp.lt.s32.totalorder %s17, 1
          %s256 = scalar_select %p255, %s17, 1
          %s257 = scalar_lea.vmem %s1, %s256
        $region44: #{tpu_custom_call.1} parent=35 // pred_fallthru
          _
      $region36: #{tpu_custom_call.1} parent=5 // pred_fallthru
        _
      %p258 = scmp.le.s32.totalorder 1, %s17
      %p259 = scmp.lt.s32.totalorder %s17, 3
      %p260 = pnand %p258, %p259
      %p261 = pneg %p260
      // Predicated region
      $region45: #{tpu_custom_call.1} parent=5 // pred_check
        _
      $region46: #{tpu_custom_call.1} parent=5 // pred_check_branch
        %263 = sbr.rel (%p260) target = $region48
      $region47: #{tpu_custom_call.1} parent=5 // pred_region
        %s264 = ssub.s32 %s17, 1
        // Predicated region
        $region49: #{tpu_custom_call.1} parent=47 // pred_check
          %p265 = pneg %p153
        $region50: #{tpu_custom_call.1} parent=47 // pred_check_branch
          %267 = sbr.rel (%p265) target = $region52
        $region51: #{tpu_custom_call.1} parent=47 // pred_region
          %268 = dma.done [#allocation5], 12288
        $region52: #{tpu_custom_call.1} parent=47 // pred_fallthru
          _
        %p269 = scmp.lt.s32.totalorder %s22, 1
        %s270 = scalar_select %p269, %s22, 1
        %s271 = smul.addr %s270, 4
        %s272 = smul.addr %s271, 4
        %s273 = scalar_lea.vmem %s0, %s272
        %p274 = pneg %p43
        %p275 = pneg %p40
        %p276 = scmp.lt.s32.totalorder %s22, 1
        %s277 = scalar_select %p276, %s22, 1
        %s278 = scalar_lea.vmem %s1, %s277
        %p279 = pneg %p69
        %p280 = pneg %p66
        %p281 = pneg %p90
        %p282 = pneg %p87
        %p283 = pneg %p111
        %p284 = pneg %p108
        %p285 = pneg %p132
        %p286 = pneg %p129
        %p287 = pneg %p153
        %p288 = pneg %p150
        %p289 = pneg %p174
        %p290 = pneg %p171
        %p291 = pneg %p200
        %p292 = pneg %p197
        %s293 = sand.u32 %s187, 1
        %s294 = scalar_lea.sflag [#allocation6], %s293
        %s295 = sand.u32 %s187, 1
        %s296 = smul.addr %s295, 2
        %s297 = scalar_lea.vmem [#allocation7], %s296
        %p298 = scmp.lt.s32.totalorder %s22, 1
        %s299 = scalar_select %p298, %s22, 1
        %s300 = smul.addr %s299, 4
        %s301 = smul.addr %s300, 4
        %s302 = scalar_lea.vmem %s0, %s301
        %p303 = scmp.lt.s32.totalorder %s22, 1
        %s304 = scalar_select %p303, %s22, 1
        %s305 = scalar_lea.vmem %s1, %s304
        %v307 = vld [vmem:[%s2] sm:$0xff]
        %v308 = vld [vmem:[%s2 + $0x8] sm:$0xff]
        %v309 = vld [vmem:[%s2 + $0x10] sm:$0xff]
        %v310 = vld [vmem:[%s2 + $0x18] sm:$0x11]
        %s311 = scalar_lea.vmem %s2, 32
        %v312 = vld [vmem:[%s311] sm:$0xff]
        %v313 = vld [vmem:[%s311 + $0x8] sm:$0xff]
        %v314 = vld [vmem:[%s311 + $0x10] sm:$0xff]
        %v315 = vld [vmem:[%s311 + $0x18] sm:$0x11]
        %v316 = vld [vmem:[%s3] sm:$0xff]
        %v317 = vld [vmem:[%s3 + $0x8] sm:$0x11]
        %v318 = vld [vmem:[%s4] sm:$0x3]
        %s319 = scalar_lea.vmem %s4, 2
        %v320 = vld [vmem:[%s319] sm:$0x3]
        %s321 = scalar_lea.vmem %s4, 4
        %v322 = vld [vmem:[%s321] sm:$0x3]
        %s323 = scalar_lea.vmem %s4, 6
        %v324 = vld [vmem:[%s323] sm:$0x3]
        %v325 = vld [vmem:[#allocation4] sm:$0xff]
        %v326 = vld [vmem:[#allocation4 + $0x8] sm:$0xff]
        %v327 = vld [vmem:[#allocation4 + $0x10] sm:$0xff]
        %v328 = vld [vmem:[#allocation4 + $0x18] sm:$0xff]
        %v329 = vld [vmem:[#allocation4 + $0x20] sm:$0xff]
        %v330 = vld [vmem:[#allocation4 + $0x28] sm:$0xff]
        %v331 = vld [vmem:[#allocation4 + $0x30] sm:$0xff]
        %v332 = vld [vmem:[#allocation4 + $0x38] sm:$0xff]
        %v333 = vld [vmem:[#allocation4 + $0x40] sm:$0xff]
        %v334 = vld [vmem:[#allocation4 + $0x48] sm:$0xff]
        %v335 = vld [vmem:[#allocation4 + $0x50] sm:$0xff]
        %v336 = vld [vmem:[#allocation4 + $0x58] sm:$0xff]
        %v337 = vld [vmem:[#allocation4 + $0x60] sm:$0xff]
        %v338 = vld [vmem:[#allocation4 + $0x68] sm:$0xff]
        %v339 = vld [vmem:[#allocation4 + $0x70] sm:$0xff]
        %v340 = vld [vmem:[#allocation4 + $0x78] sm:$0xff]
        %v341 = vld [vmem:[#allocation4 + $0x80] sm:$0xff]
        %v342 = vld [vmem:[#allocation4 + $0x88] sm:$0xff]
        %v343 = vld [vmem:[#allocation4 + $0x90] sm:$0xff]
        %v344 = vld [vmem:[#allocation4 + $0x98] sm:$0xff]
        %v345 = vld [vmem:[#allocation4 + $0xa0] sm:$0xff]
        %v346 = vld [vmem:[#allocation4 + $0xa8] sm:$0xff]
        %v347 = vld [vmem:[#allocation4 + $0xb0] sm:$0xff]
        %v348 = vld [vmem:[#allocation4 + $0xb8] sm:$0xff]
        %v349 = vld [vmem:[#allocation4 + $0xc0] sm:$0xff]
        %v350 = vld [vmem:[#allocation4 + $0xc8] sm:$0xff]
        %v351 = vld [vmem:[#allocation4 + $0xd0] sm:$0xff]
        %v352 = vld [vmem:[#allocation4 + $0xd8] sm:$0xff]
        %v353 = vld [vmem:[#allocation4 + $0xe0] sm:$0xff]
        %v354 = vld [vmem:[#allocation4 + $0xe8] sm:$0xff]
        %v355 = vld [vmem:[#allocation4 + $0xf0] sm:$0xff]
        %v356 = vld [vmem:[#allocation4 + $0xf8] sm:$0xff]
        %s357 = scalar_lea.vmem [#allocation4], 256
        %v358 = vld [vmem:[%s357] sm:$0xff]
        %v359 = vld [vmem:[%s357 + $0x8] sm:$0xff]
        %v360 = vld [vmem:[%s357 + $0x10] sm:$0xff]
        %v361 = vld [vmem:[%s357 + $0x18] sm:$0xff]
        %v362 = vld [vmem:[%s357 + $0x20] sm:$0xff]
        %v363 = vld [vmem:[%s357 + $0x28] sm:$0xff]
        %v364 = vld [vmem:[%s357 + $0x30] sm:$0xff]
        %v365 = vld [vmem:[%s357 + $0x38] sm:$0xff]
        %v366 = vld [vmem:[%s357 + $0x40] sm:$0xff]
        %v367 = vld [vmem:[%s357 + $0x48] sm:$0xff]
        %v368 = vld [vmem:[%s357 + $0x50] sm:$0xff]
        %v369 = vld [vmem:[%s357 + $0x58] sm:$0xff]
        %v370 = vld [vmem:[%s357 + $0x60] sm:$0xff]
        %v371 = vld [vmem:[%s357 + $0x68] sm:$0xff]
        %v372 = vld [vmem:[%s357 + $0x70] sm:$0xff]
        %v373 = vld [vmem:[%s357 + $0x78] sm:$0xff]
        %v374 = vld [vmem:[%s357 + $0x80] sm:$0xff]
        %v375 = vld [vmem:[%s357 + $0x88] sm:$0xff]
        %v376 = vld [vmem:[%s357 + $0x90] sm:$0xff]
        %v377 = vld [vmem:[%s357 + $0x98] sm:$0xff]
        %v378 = vld [vmem:[%s357 + $0xa0] sm:$0xff]
        %v379 = vld [vmem:[%s357 + $0xa8] sm:$0xff]
        %v380 = vld [vmem:[%s357 + $0xb0] sm:$0xff]
        %v381 = vld [vmem:[%s357 + $0xb8] sm:$0xff]
        %v382 = vld [vmem:[%s357 + $0xc0] sm:$0xff]
        %v383 = vld [vmem:[%s357 + $0xc8] sm:$0xff]
        %v384 = vld [vmem:[%s357 + $0xd0] sm:$0xff]
        %v385 = vld [vmem:[%s357 + $0xd8] sm:$0xff]
        %v386 = vld [vmem:[%s357 + $0xe0] sm:$0xff]
        %v387 = vld [vmem:[%s357 + $0xe8] sm:$0xff]
        %v388 = vld [vmem:[%s357 + $0xf0] sm:$0xff]
        %v389 = vld [vmem:[%s357 + $0xf8] sm:$0xff]
        %s390 = scalar_lea.vmem [#allocation4], 512
        %v391 = vld [vmem:[%s390] sm:$0xff]
        %v392 = vld [vmem:[%s390 + $0x8] sm:$0xff]
        %v393 = vld [vmem:[%s390 + $0x10] sm:$0xff]
        %v394 = vld [vmem:[%s390 + $0x18] sm:$0xff]
        %v395 = vld [vmem:[%s390 + $0x20] sm:$0xff]
        %v396 = vld [vmem:[%s390 + $0x28] sm:$0xff]
        %v397 = vld [vmem:[%s390 + $0x30] sm:$0xff]
        %v398 = vld [vmem:[%s390 + $0x38] sm:$0xff]
        %v399 = vld [vmem:[%s390 + $0x40] sm:$0xff]
        %v400 = vld [vmem:[%s390 + $0x48] sm:$0xff]
        %v401 = vld [vmem:[%s390 + $0x50] sm:$0xff]
        %v402 = vld [vmem:[%s390 + $0x58] sm:$0xff]
        %v403 = vld [vmem:[%s390 + $0x60] sm:$0xff]
        %v404 = vld [vmem:[%s390 + $0x68] sm:$0xff]
        %v405 = vld [vmem:[%s390 + $0x70] sm:$0xff]
        %v406 = vld [vmem:[%s390 + $0x78] sm:$0xff]
        %v407 = vld [vmem:[%s390 + $0x80] sm:$0xff]
        %v408 = vld [vmem:[%s390 + $0x88] sm:$0xff]
        %v409 = vld [vmem:[%s390 + $0x90] sm:$0xff]
        %v410 = vld [vmem:[%s390 + $0x98] sm:$0xff]
        %v411 = vld [vmem:[%s390 + $0xa0] sm:$0xff]
        %v412 = vld [vmem:[%s390 + $0xa8] sm:$0xff]
        %v413 = vld [vmem:[%s390 + $0xb0] sm:$0xff]
        %v414 = vld [vmem:[%s390 + $0xb8] sm:$0xff]
        %v415 = vld [vmem:[%s390 + $0xc0] sm:$0xff]
        %v416 = vld [vmem:[%s390 + $0xc8] sm:$0xff]
        %v417 = vld [vmem:[%s390 + $0xd0] sm:$0xff]
        %v418 = vld [vmem:[%s390 + $0xd8] sm:$0xff]
        %v419 = vld [vmem:[%s390 + $0xe0] sm:$0xff]
        %v420 = vld [vmem:[%s390 + $0xe8] sm:$0xff]
        %v421 = vld [vmem:[%s390 + $0xf0] sm:$0xff]
        %v422 = vld [vmem:[%s390 + $0xf8] sm:$0xff]
        %v423 = vld [vmem:[%s6] sm:$0xf]
        %v424 = vld [vmem:[%s6 + $0x4] sm:$0xf]
        %v425 = vld [vmem:[%s6 + $0x8] sm:$0xf]
        %v426 = vld [vmem:[%s6 + $0xc] sm:$0xf]
        %v427 = vld [vmem:[%s6 + $0x10] sm:$0xf]
        %v428 = vld [vmem:[%s6 + $0x14] sm:$0xf]
        %v429 = vld [vmem:[%s6 + $0x18] sm:$0xf]
        %v430 = vld [vmem:[%s6 + $0x1c] sm:$0xf]
        %v431 = vld [vmem:[%s6 + $0x20] sm:$0xf]
        %v432 = vld [vmem:[%s6 + $0x24] sm:$0xf]
        %v433 = vld [vmem:[%s6 + $0x28] sm:$0xf]
        %v434 = vld [vmem:[%s6 + $0x2c] sm:$0xf]
        %v435 = vld [vmem:[%s6 + $0x30] sm:$0xf]
        %v436 = vld [vmem:[%s6 + $0x34] sm:$0xf]
        %v437 = vld [vmem:[%s6 + $0x38] sm:$0xf]
        %v438 = vld [vmem:[%s6 + $0x3c] sm:$0xf]
        %v439 = vld [vmem:[%s6 + $0x40] sm:$0xf]
        %v440 = vld [vmem:[%s6 + $0x44] sm:$0xf]
        %v441 = vld [vmem:[%s6 + $0x48] sm:$0xf]
        %v442 = vld [vmem:[%s6 + $0x4c] sm:$0xf]
        %v443 = vld [vmem:[%s6 + $0x50] sm:$0xf]
        %v444 = vld [vmem:[%s6 + $0x54] sm:$0xf]
        %v445 = vld [vmem:[%s6 + $0x58] sm:$0xf]
        %v446 = vld [vmem:[%s6 + $0x5c] sm:$0xf]
        %v447 = vld [vmem:[%s6 + $0x60] sm:$0xf]
        %v448 = vld [vmem:[%s6 + $0x64] sm:$0xf]
        %v449 = vld [vmem:[%s6 + $0x68] sm:$0xf]
        %v450 = vld [vmem:[%s6 + $0x6c] sm:$0xf]
        %v451 = vld [vmem:[%s6 + $0x70] sm:$0xf]
        %v452 = vld [vmem:[%s6 + $0x74] sm:$0xf]
        %v453 = vld [vmem:[%s6 + $0x78] sm:$0xf]
        %v454 = vld [vmem:[%s6 + $0x7c] sm:$0xf]
        %v455 = vld [vmem:[%s6 + $0x80] sm:$0xf]
        %v456 = vld [vmem:[%s6 + $0x84] sm:$0xf]
        %v457 = vld [vmem:[%s6 + $0x88] sm:$0xf]
        %v458 = vld [vmem:[%s6 + $0x8c] sm:$0xf]
        %v459 = vld [vmem:[%s6 + $0x90] sm:$0xf]
        %v460 = vld [vmem:[%s6 + $0x94] sm:$0xf]
        %v461 = vld [vmem:[%s6 + $0x98] sm:$0xf]
        %v462 = vld [vmem:[%s6 + $0x9c] sm:$0xf]
        %v463 = vld [vmem:[%s6 + $0xa0] sm:$0xf]
        %v464 = vld [vmem:[%s6 + $0xa4] sm:$0xf]
        %v465 = vld [vmem:[%s6 + $0xa8] sm:$0xf]
        %v466 = vld [vmem:[%s6 + $0xac] sm:$0xf]
        %v467 = vld [vmem:[%s6 + $0xb0] sm:$0xf]
        %v468 = vld [vmem:[%s6 + $0xb4] sm:$0xf]
        %v469 = vld [vmem:[%s6 + $0xb8] sm:$0xf]
        %v470 = vld [vmem:[%s6 + $0xbc] sm:$0xf]
        %v471 = vld [vmem:[%s6 + $0xc0] sm:$0xf]
        %v472 = vld [vmem:[%s6 + $0xc4] sm:$0xf]
        %v473 = vld [vmem:[%s6 + $0xc8] sm:$0xf]
        %v474 = vld [vmem:[%s6 + $0xcc] sm:$0xf]
        %v475 = vld [vmem:[%s6 + $0xd0] sm:$0xf]
        %v476 = vld [vmem:[%s6 + $0xd4] sm:$0xf]
        %v477 = vld [vmem:[%s6 + $0xd8] sm:$0xf]
        %v478 = vld [vmem:[%s6 + $0xdc] sm:$0xf]
        %v479 = vld [vmem:[%s6 + $0xe0] sm:$0xf]
        %v480 = vld [vmem:[%s6 + $0xe4] sm:$0xf]
        %v481 = vld [vmem:[%s6 + $0xe8] sm:$0xf]
        %v482 = vld [vmem:[%s6 + $0xec] sm:$0xf]
        %v483 = vld [vmem:[%s6 + $0xf0] sm:$0xf]
        %v484 = vld [vmem:[%s6 + $0xf4] sm:$0xf]
        %v485 = vld [vmem:[%s6 + $0xf8] sm:$0xf]
        %v486 = vld [vmem:[%s6 + $0xfc] sm:$0xf]
        %v487 = vld [vmem:[%s6 + $0x100] sm:$0xf]
        %v488 = vld [vmem:[%s6 + $0x104] sm:$0xf]
        %v489 = vld [vmem:[%s6 + $0x108] sm:$0xf]
        %v490 = vld [vmem:[%s6 + $0x10c] sm:$0xf]
        %v491 = vld [vmem:[%s6 + $0x110] sm:$0xf]
        %v492 = vld [vmem:[%s6 + $0x114] sm:$0xf]
        %v493 = vld [vmem:[%s6 + $0x118] sm:$0xf]
        %v494 = vld [vmem:[%s6 + $0x11c] sm:$0xf]
        %v495 = vld [vmem:[%s6 + $0x120] sm:$0xf]
        %v496 = vld [vmem:[%s6 + $0x124] sm:$0xf]
        %v497 = vld [vmem:[%s6 + $0x128] sm:$0xf]
        %v498 = vld [vmem:[%s6 + $0x12c] sm:$0xf]
        %v499 = vld [vmem:[%s6 + $0x130] sm:$0xf]
        %v500 = vld [vmem:[%s6 + $0x134] sm:$0xf]
        %v501 = vld [vmem:[%s6 + $0x138] sm:$0xf]
        %v502 = vld [vmem:[%s6 + $0x13c] sm:$0xf]
        %503 = vst [vmem:[#allocation2] sm:$0xff] 0
        %504 = vst [vmem:[#allocation2 + $0x8] sm:$0xff] 0
        %505 = vst [vmem:[#allocation2 + $0x10] sm:$0xff] 0
        %506 = vst [vmem:[#allocation2 + $0x18] sm:$0xff] 0
        %507 = vst [vmem:[#allocation2 + $0x20] sm:$0xff] 0
        %508 = vst [vmem:[#allocation2 + $0x28] sm:$0xff] 0
        %509 = vst [vmem:[#allocation2 + $0x30] sm:$0xff] 0
        %510 = vst [vmem:[#allocation2 + $0x38] sm:$0xff] 0
        %v511 = vld [vmem:[%s302] sm:$0xf]
        %v512 = vld [vmem:[%s302 + $0x4] sm:$0xf]
        %v513 = vld [vmem:[%s302 + $0x8] sm:$0xf]
        %v514 = vld [vmem:[%s302 + $0xc] sm:$0x1]
        %v515 = vld [vmem:[%s305] sm:$0x1]
        %v518 = vunpack.c.l.b16 %v316
        %v519 = vunpack.c.h.b16 %v316
        %v520 = vunpack.c.l.b16 %v317
        %v521 = vunpack.c.h.b16 %v317
        %v522 = vpack.c.b16 %v520, %v518
        %v523 = vpack.c.b16 %v521, %v519
        %v525 = vlaneseq
        %v526 = vshrl.u32 %v525, 7
        %v527 = vsub.s32 0, %v526
        %v528 = vrot.slane %v318, %v527
        %v529 = vlaneseq
        %v530 = vshrl.u32 %v529, 7
        %v531 = vsub.s32 1, %v530
        %v532 = vrot.slane %v318, %v531
        %vm535 = vcmask 80896
        %v537 = vsel %vm535, %v515, 0
        %vm539 = vcmask 1044480
        %v541 = vsel %vm539, %v522, 0
        %v544 = vsel %vm539, %v523, 0
        %546 = vmatprep.subr.bf16.mxu0 %v544
        %547 = vmatpush1.bf16.msra.mxu0 %v541
        %548 = vmatprep.subr.bf16.mxu0 0
        %549 = vmatpush1.bf16.msra.mxu0 0
        %550 = vmatprep.subr.bf16.mxu0 0
        %551 = vmatpush1.bf16.msra.mxu0 0
        %552 = vmatprep.subr.bf16.mxu0 0
        %553 = vmatpush1.bf16.msra.mxu0 0
        %554 = vmatprep.subr.bf16.mxu0 0
        %555 = vmatpush1.bf16.msra.mxu0 0
        %556 = vmatprep.subr.bf16.mxu0 0
        %557 = vmatpush1.bf16.msra.mxu0 0
        %558 = vmatprep.subr.bf16.mxu0 0
        %559 = vmatpush1.bf16.msra.mxu0 0
        %560 = vmatprep.subr.bf16.mxu0 0
        %561 = vmatpush1.bf16.msra.mxu0 0
        %562 = vmatprep.subr.bf16.mxu0 0
        %563 = vmatpush1.bf16.msra.mxu0 0
        %564 = vmatprep.subr.bf16.mxu0 0
        %565 = vmatpush1.bf16.msra.mxu0 0
        %566 = vmatprep.subr.bf16.mxu0 0
        %567 = vmatpush1.bf16.msra.mxu0 0
        %568 = vmatprep.subr.bf16.mxu0 0
        %569 = vmatpush1.bf16.msra.mxu0 0
        %570 = vmatprep.subr.bf16.mxu0 0
        %571 = vmatpush1.bf16.msra.mxu0 0
        %572 = vmatprep.subr.bf16.mxu0 0
        %573 = vmatpush1.bf16.msra.mxu0 0
        %574 = vmatprep.subr.bf16.mxu0 0
        %575 = vmatpush1.bf16.msra.mxu0 0
        %576 = vmatprep.subr.bf16.mxu0 0
        %577 = vmatpush1.bf16.msra.mxu0 0
        %578 = vmatprep.mubr.bf16.mxu0 0
        %579 = vmatmul.mubr.bf16.gmra.mrb[0].mxu0 %v537
        %v580 = vpop.f32.mrb[0].mxu0
        %v581 = vadd.f32 %v528, %v580
        %v582 = vpop.f32.mrb[0].mxu0
        %v583 = vadd.f32 %v532, %v582
        %v584 = vpop.f32.mrb[0].mxu0
        %v585 = vpop.f32.mrb[0].mxu0
        %586 = vdwg.mxu0
        %v587 = vlaneseq
        %v588 = vshrl.u32 %v587, 7
        %v589 = vsub.s32 0, %v588
        %v590 = vrot.slane %v581, %v589
        %v591 = vlaneseq
        %v592 = vshrl.u32 %v591, 7
        %v593 = vsub.s32 0, %v592
        %v594 = vrot.slane %v583, %v593
        %v599 = vunpack.c.l.b16 %v511
        %v600 = vunpack.c.l.b16 %v512
        %v601 = vunpack.c.l.b16 %v513
        %v602 = vunpack.c.l.b16 %v514
        %v603 = vpack.c.b16 %v600, %v599
        %v604 = vpack.c.b16 %v602, %v601
        %v609 = vunpack.c.l.b16 %v307
        %v610 = vunpack.c.h.b16 %v307
        %v611 = vunpack.c.l.b16 %v308
        %v612 = vunpack.c.h.b16 %v308
        %v613 = vunpack.c.l.b16 %v309
        %v614 = vunpack.c.h.b16 %v309
        %v615 = vunpack.c.l.b16 %v310
        %v616 = vunpack.c.h.b16 %v310
        %v617 = vpack.c.b16 %v611, %v609
        %v618 = vpack.c.b16 %v612, %v610
        %v619 = vpack.c.b16 %v615, %v613
        %v620 = vpack.c.b16 %v616, %v614
        %vm623 = vcmask 211968
        %v625 = vsel %vm623, %v603, 0
        %v628 = vsel %vm623, %v604, 0
        %v631 = vsel %vm539, %v619, 0
        %v634 = vsel %vm539, %v620, 0
        %636 = vmatprep.subr.bf16.mxu0 %v618
        %637 = vmatpush1.bf16.msra.mxu0 %v617
        %638 = vmatprep.subr.bf16.mxu0 %v634
        %639 = vmatpush1.bf16.msra.mxu0 %v631
        %640 = vmatprep.subr.bf16.mxu0 0
        %641 = vmatpush1.bf16.msra.mxu0 0
        %642 = vmatprep.subr.bf16.mxu0 0
        %643 = vmatpush1.bf16.msra.mxu0 0
        %644 = vmatprep.subr.bf16.mxu0 0
        %645 = vmatpush1.bf16.msra.mxu0 0
        %646 = vmatprep.subr.bf16.mxu0 0
        %647 = vmatpush1.bf16.msra.mxu0 0
        %648 = vmatprep.subr.bf16.mxu0 0
        %649 = vmatpush1.bf16.msra.mxu0 0
        %650 = vmatprep.subr.bf16.mxu0 0
        %651 = vmatpush1.bf16.msra.mxu0 0
        %652 = vmatprep.subr.bf16.mxu0 0
        %653 = vmatpush1.bf16.msra.mxu0 0
        %654 = vmatprep.subr.bf16.mxu0 0
        %655 = vmatpush1.bf16.msra.mxu0 0
        %656 = vmatprep.subr.bf16.mxu0 0
        %657 = vmatpush1.bf16.msra.mxu0 0
        %658 = vmatprep.subr.bf16.mxu0 0
        %659 = vmatpush1.bf16.msra.mxu0 0
        %660 = vmatprep.subr.bf16.mxu0 0
        %661 = vmatpush1.bf16.msra.mxu0 0
        %662 = vmatprep.subr.bf16.mxu0 0
        %663 = vmatpush1.bf16.msra.mxu0 0
        %664 = vmatprep.subr.bf16.mxu0 0
        %665 = vmatpush1.bf16.msra.mxu0 0
        %666 = vmatprep.subr.bf16.mxu0 0
        %667 = vmatpush1.bf16.msra.mxu0 0
        %668 = vmatprep.mubr.bf16.mxu0 0
        %669 = vmatmul.mubr.bf16.gmra.mrb[0].mxu0 %v625
        %v670 = vpop.f32.mrb[0].mxu0
        %v671 = vadd.f32 %v590, %v670
        %v672 = vpop.f32.mrb[0].mxu0
        %v673 = vadd.f32 %v594, %v672
        %v674 = vpop.f32.mrb[0].mxu0
        %v675 = vadd.f32 %v590, %v674
        %v676 = vpop.f32.mrb[0].mxu0
        %v677 = vadd.f32 %v594, %v676
        %678 = vmatprep.mubr.bf16.mxu0 0
        %679 = vmatmul.mubr.bf16.gmra.mrb[0].mxu0 %v628
        %v680 = vpop.f32.mrb[0].mxu0
        %v681 = vadd.f32 %v590, %v680
        %v682 = vpop.f32.mrb[0].mxu0
        %v683 = vadd.f32 %v594, %v682
        %v684 = vpop.f32.mrb[0].mxu0
        %v685 = vadd.f32 %v590, %v684
        %v686 = vpop.f32.mrb[0].mxu0
        %v687 = vadd.f32 %v594, %v686
        %688 = vdwg.mxu0
        %v693 = vunpack.c.l.b16 %v312
        %v694 = vunpack.c.h.b16 %v312
        %v695 = vunpack.c.l.b16 %v313
        %v696 = vunpack.c.h.b16 %v313
        %v697 = vunpack.c.l.b16 %v314
        %v698 = vunpack.c.h.b16 %v314
        %v699 = vunpack.c.l.b16 %v315
        %v700 = vunpack.c.h.b16 %v315
        %v701 = vpack.c.b16 %v695, %v693
        %v702 = vpack.c.b16 %v696, %v694
        %v703 = vpack.c.b16 %v699, %v697
        %v704 = vpack.c.b16 %v700, %v698
        %v708 = vsel %vm539, %v703, 0
        %v711 = vsel %vm539, %v704, 0
        %713 = vmatprep.subr.bf16.mxu0 %v702
        %714 = vmatpush1.bf16.msra.mxu0 %v701
        %715 = vmatprep.subr.bf16.mxu0 %v711
        %716 = vmatpush1.bf16.msra.mxu0 %v708
        %717 = vmatprep.subr.bf16.mxu0 0
        %718 = vmatpush1.bf16.msra.mxu0 0
        %719 = vmatprep.subr.bf16.mxu0 0
        %720 = vmatpush1.bf16.msra.mxu0 0
        %721 = vmatprep.subr.bf16.mxu0 0
        %722 = vmatpush1.bf16.msra.mxu0 0
        %723 = vmatprep.subr.bf16.mxu0 0
        %724 = vmatpush1.bf16.msra.mxu0 0
        %725 = vmatprep.subr.bf16.mxu0 0
        %726 = vmatpush1.bf16.msra.mxu0 0
        %727 = vmatprep.subr.bf16.mxu0 0
        %728 = vmatpush1.bf16.msra.mxu0 0
        %729 = vmatprep.subr.bf16.mxu0 0
        %730 = vmatpush1.bf16.msra.mxu0 0
        %731 = vmatprep.subr.bf16.mxu0 0
        %732 = vmatpush1.bf16.msra.mxu0 0
        %733 = vmatprep.subr.bf16.mxu0 0
        %734 = vmatpush1.bf16.msra.mxu0 0
        %735 = vmatprep.subr.bf16.mxu0 0
        %736 = vmatpush1.bf16.msra.mxu0 0
        %737 = vmatprep.subr.bf16.mxu0 0
        %738 = vmatpush1.bf16.msra.mxu0 0
        %739 = vmatprep.subr.bf16.mxu0 0
        %740 = vmatpush1.bf16.msra.mxu0 0
        %741 = vmatprep.subr.bf16.mxu0 0
        %742 = vmatpush1.bf16.msra.mxu0 0
        %743 = vmatprep.subr.bf16.mxu0 0
        %744 = vmatpush1.bf16.msra.mxu0 0
        %745 = vmatprep.mubr.bf16.mxu0 0
        %746 = vmatmul.mubr.bf16.gmra.mrb[0].mxu0 %v625
        %v747 = vpop.f32.mrb[0].mxu0
        %v748 = vadd.f32 0.0, %v747
        %v749 = vpop.f32.mrb[0].mxu0
        %v750 = vadd.f32 0.0, %v749
        %v751 = vpop.f32.mrb[0].mxu0
        %v752 = vadd.f32 0.0, %v751
        %v753 = vpop.f32.mrb[0].mxu0
        %v754 = vadd.f32 0.0, %v753
        %755 = vmatprep.mubr.bf16.mxu0 0
        %756 = vmatmul.mubr.bf16.gmra.mrb[0].mxu0 %v628
        %v757 = vpop.f32.mrb[0].mxu0
        %v758 = vadd.f32 0.0, %v757
        %v759 = vpop.f32.mrb[0].mxu0
        %v760 = vadd.f32 0.0, %v759
        %v761 = vpop.f32.mrb[0].mxu0
        %v762 = vadd.f32 0.0, %v761
        %v763 = vpop.f32.mrb[0].mxu0
        %v764 = vadd.f32 0.0, %v763
        %765 = vdwg.mxu0
        %v766 = vpack.c.bf16 %v675, %v671
        %v767 = vpack.c.bf16 %v677, %v673
        %v768 = vpack.c.bf16 %v685, %v681
        %v769 = vpack.c.bf16 %v687, %v683
        %770 = vst [vmem:[#allocation2] sm:$0xff] %v766
        %771 = vst [vmem:[#allocation2 + $0x8] sm:$0xff] %v767
        %vm772 = vcmask 1044480
        %vm773 = vsmask.f32 4352
        %vm774 = vmand %vm772, %vm773
        %v775 = vld [vmem:[#allocation2 + $0x10] sm:$0x1f]
        %v776 = vsel %vm774, %v768, %v775
        %777 = vst [vmem:[#allocation2 + $0x10] sm:$0x1f] %v776
        %v778 = vld [vmem:[#allocation2 + $0x18] sm:$0x1f]
        %v779 = vsel %vm774, %v769, %v778
        %780 = vst [vmem:[#allocation2 + $0x18] sm:$0x1f] %v779
        %v781 = vpack.c.bf16 %v752, %v748
        %v782 = vpack.c.bf16 %v754, %v750
        %v783 = vpack.c.bf16 %v762, %v758
        %v784 = vpack.c.bf16 %v764, %v760
        %785 = vst [vmem:[#allocation2 + $0x20] sm:$0xff] %v781
        %786 = vst [vmem:[#allocation2 + $0x28] sm:$0xff] %v782
        %v787 = vld [vmem:[#allocation2 + $0x30] sm:$0x1f]
        %v788 = vsel %vm774, %v783, %v787
        %789 = vst [vmem:[#allocation2 + $0x30] sm:$0x1f] %v788
        %v790 = vld [vmem:[#allocation2 + $0x38] sm:$0x1f]
        %v791 = vsel %vm774, %v784, %v790
        %792 = vst [vmem:[#allocation2 + $0x38] sm:$0x1f] %v791
        %v793 = vld [vmem:[#allocation2] sm:$0xff]
        %v794 = vld [vmem:[#allocation2 + $0x8] sm:$0xff]
        %v795 = vld [vmem:[#allocation2 + $0x10] sm:$0xff]
        %v796 = vld [vmem:[#allocation2 + $0x18] sm:$0xff]
        %v797 = vld [vmem:[#allocation2 + $0x20] sm:$0xff]
        %v798 = vld [vmem:[#allocation2 + $0x28] sm:$0xff]
        %v799 = vld [vmem:[#allocation2 + $0x30] sm:$0xff]
        %v800 = vld [vmem:[#allocation2 + $0x38] sm:$0xff]
        %v881 = vunpack.c.l.b16 %v423
        %v882 = vunpack.c.l.b16 %v424
        %v883 = vunpack.c.l.b16 %v425
        %v884 = vunpack.c.l.b16 %v426
        %v885 = vunpack.c.l.b16 %v427
        %v886 = vunpack.c.l.b16 %v428
        %v887 = vunpack.c.l.b16 %v429
        %v888 = vunpack.c.l.b16 %v430
        %v889 = vunpack.c.l.b16 %v431
        %v890 = vunpack.c.l.b16 %v432
        %v891 = vunpack.c.l.b16 %v433
        %v892 = vunpack.c.l.b16 %v434
        %v893 = vunpack.c.l.b16 %v435
        %v894 = vunpack.c.l.b16 %v436
        %v895 = vunpack.c.l.b16 %v437
        %v896 = vunpack.c.l.b16 %v438
        %v897 = vunpack.c.l.b16 %v439
        %v898 = vunpack.c.l.b16 %v440
        %v899 = vunpack.c.l.b16 %v441
        %v900 = vunpack.c.l.b16 %v442
        %v901 = vunpack.c.l.b16 %v443
        %v902 = vunpack.c.l.b16 %v444
        %v903 = vunpack.c.l.b16 %v445
        %v904 = vunpack.c.l.b16 %v446
        %v905 = vunpack.c.l.b16 %v447
        %v906 = vunpack.c.l.b16 %v448
        %v907 = vunpack.c.l.b16 %v449
        %v908 = vunpack.c.l.b16 %v450
        %v909 = vunpack.c.l.b16 %v451
        %v910 = vunpack.c.l.b16 %v452
        %v911 = vunpack.c.l.b16 %v453
        %v912 = vunpack.c.l.b16 %v454
        %v913 = vunpack.c.l.b16 %v455
        %v914 = vunpack.c.l.b16 %v456
        %v915 = vunpack.c.l.b16 %v457
        %v916 = vunpack.c.l.b16 %v458
        %v917 = vunpack.c.l.b16 %v459
        %v918 = vunpack.c.l.b16 %v460
        %v919 = vunpack.c.l.b16 %v461
        %v920 = vunpack.c.l.b16 %v462
        %v921 = vunpack.c.l.b16 %v463
        %v922 = vunpack.c.l.b16 %v464
        %v923 = vunpack.c.l.b16 %v465
        %v924 = vunpack.c.l.b16 %v466
        %v925 = vunpack.c.l.b16 %v467
        %v926 = vunpack.c.l.b16 %v468
        %v927 = vunpack.c.l.b16 %v469
        %v928 = vunpack.c.l.b16 %v470
        %v929 = vunpack.c.l.b16 %v471
        %v930 = vunpack.c.l.b16 %v472
        %v931 = vunpack.c.l.b16 %v473
        %v932 = vunpack.c.l.b16 %v474
        %v933 = vunpack.c.l.b16 %v475
        %v934 = vunpack.c.l.b16 %v476
        %v935 = vunpack.c.l.b16 %v477
        %v936 = vunpack.c.l.b16 %v478
        %v937 = vunpack.c.l.b16 %v479
        %v938 = vunpack.c.l.b16 %v480
        %v939 = vunpack.c.l.b16 %v481
        %v940 = vunpack.c.l.b16 %v482
        %v941 = vunpack.c.l.b16 %v483
        %v942 = vunpack.c.l.b16 %v484
        %v943 = vunpack.c.l.b16 %v485
        %v944 = vunpack.c.l.b16 %v486
        %v945 = vunpack.c.l.b16 %v487
        %v946 = vunpack.c.l.b16 %v488
        %v947 = vunpack.c.l.b16 %v489
        %v948 = vunpack.c.l.b16 %v490
        %v949 = vunpack.c.l.b16 %v491
        %v950 = vunpack.c.l.b16 %v492
        %v951 = vunpack.c.l.b16 %v493
        %v952 = vunpack.c.l.b16 %v494
        %v953 = vunpack.c.l.b16 %v495
        %v954 = vunpack.c.l.b16 %v496
        %v955 = vunpack.c.l.b16 %v497
        %v956 = vunpack.c.l.b16 %v498
        %v957 = vunpack.c.l.b16 %v499
        %v958 = vunpack.c.l.b16 %v500
        %v959 = vunpack.c.l.b16 %v501
        %v960 = vunpack.c.l.b16 %v502
        %v961 = vpack.c.b16 %v882, %v881
        %v962 = vpack.c.b16 %v884, %v883
        %v963 = vpack.c.b16 %v886, %v885
        %v964 = vpack.c.b16 %v888, %v887
        %v965 = vpack.c.b16 %v890, %v889
        %v966 = vpack.c.b16 %v892, %v891
        %v967 = vpack.c.b16 %v894, %v893
        %v968 = vpack.c.b16 %v896, %v895
        %v969 = vpack.c.b16 %v898, %v897
        %v970 = vpack.c.b16 %v900, %v899
        %v971 = vpack.c.b16 %v902, %v901
        %v972 = vpack.c.b16 %v904, %v903
        %v973 = vpack.c.b16 %v906, %v905
        %v974 = vpack.c.b16 %v908, %v907
        %v975 = vpack.c.b16 %v910, %v909
        %v976 = vpack.c.b16 %v912, %v911
        %v977 = vpack.c.b16 %v914, %v913
        %v978 = vpack.c.b16 %v916, %v915
        %v979 = vpack.c.b16 %v918, %v917
        %v980 = vpack.c.b16 %v920, %v919
        %v981 = vpack.c.b16 %v922, %v921
        %v982 = vpack.c.b16 %v924, %v923
        %v983 = vpack.c.b16 %v926, %v925
        %v984 = vpack.c.b16 %v928, %v927
        %v985 = vpack.c.b16 %v930, %v929
        %v986 = vpack.c.b16 %v932, %v931
        %v987 = vpack.c.b16 %v934, %v933
        %v988 = vpack.c.b16 %v936, %v935
        %v989 = vpack.c.b16 %v938, %v937
        %v990 = vpack.c.b16 %v940, %v939
        %v991 = vpack.c.b16 %v942, %v941
        %v992 = vpack.c.b16 %v944, %v943
        %v993 = vpack.c.b16 %v946, %v945
        %v994 = vpack.c.b16 %v948, %v947
        %v995 = vpack.c.b16 %v950, %v949
        %v996 = vpack.c.b16 %v952, %v951
        %v997 = vpack.c.b16 %v954, %v953
        %v998 = vpack.c.b16 %v956, %v955
        %v999 = vpack.c.b16 %v958, %v957
        %v1000 = vpack.c.b16 %v960, %v959
        %vm1001 = vcmask 523264
        %v1003 = vsel %vm1001, %v961, 0
        %v1006 = vsel %vm1001, %v962, 0
        %v1009 = vsel %vm1001, %v963, 0
        %v1012 = vsel %vm1001, %v964, 0
        %v1015 = vsel %vm1001, %v965, 0
        %v1018 = vsel %vm1001, %v966, 0
        %v1021 = vsel %vm1001, %v967, 0
        %v1024 = vsel %vm1001, %v968, 0
        %v1027 = vsel %vm1001, %v969, 0
        %v1030 = vsel %vm1001, %v970, 0
        %v1033 = vsel %vm1001, %v971, 0
        %v1036 = vsel %vm1001, %v972, 0
        %v1039 = vsel %vm1001, %v973, 0
        %v1042 = vsel %vm1001, %v974, 0
        %v1045 = vsel %vm1001, %v975, 0
        %v1048 = vsel %vm1001, %v976, 0
        %v1051 = vsel %vm1001, %v977, 0
        %v1054 = vsel %vm1001, %v978, 0
        %v1057 = vsel %vm1001, %v979, 0
        %v1060 = vsel %vm1001, %v980, 0
        %v1063 = vsel %vm1001, %v981, 0
        %v1066 = vsel %vm1001, %v982, 0
        %v1069 = vsel %vm1001, %v983, 0
        %v1072 = vsel %vm1001, %v984, 0
        %v1075 = vsel %vm1001, %v985, 0
        %v1078 = vsel %vm1001, %v986, 0
        %v1081 = vsel %vm1001, %v987, 0
        %v1084 = vsel %vm1001, %v988, 0
        %v1087 = vsel %vm1001, %v989, 0
        %v1090 = vsel %vm1001, %v990, 0
        %v1093 = vsel %vm1001, %v991, 0
        %v1096 = vsel %vm1001, %v992, 0
        %v1099 = vsel %vm1001, %v993, 0
        %v1102 = vsel %vm1001, %v994, 0
        %v1105 = vsel %vm1001, %v995, 0
        %v1108 = vsel %vm1001, %v996, 0
        %v1111 = vsel %vm1001, %v997, 0
        %v1114 = vsel %vm1001, %v998, 0
        %v1117 = vsel %vm1001, %v999, 0
        %v1120 = vsel %vm1001, %v1000, 0
        %1122 = vmatprep.subr.bf16.mxu0 %v794
        %1123 = vmatpush1.bf16.msra.mxu0 %v793
        %1124 = vmatprep.subr.bf16.mxu0 %v796
        %1125 = vmatpush1.bf16.msra.mxu0 %v795
        %1126 = vmatprep.subr.bf16.mxu0 %v798
        %1127 = vmatpush1.bf16.msra.mxu0 %v797
        %1128 = vmatprep.subr.bf16.mxu0 %v800
        %1129 = vmatpush1.bf16.msra.mxu0 %v799
        %1130 = vmatprep.subr.bf16.mxu0 0
        %1131 = vmatpush1.bf16.msra.mxu0 0
        %1132 = vmatprep.subr.bf16.mxu0 0
        %1133 = vmatpush1.bf16.msra.mxu0 0
        %1134 = vmatprep.subr.bf16.mxu0 0
        %1135 = vmatpush1.bf16.msra.mxu0 0
        %1136 = vmatprep.subr.bf16.mxu0 0
        %1137 = vmatpush1.bf16.msra.mxu0 0
        %1138 = vmatprep.subr.bf16.mxu0 0
        %1139 = vmatpush1.bf16.msra.mxu0 0
        %1140 = vmatprep.subr.bf16.mxu0 0
        %1141 = vmatpush1.bf16.msra.mxu0 0
        %1142 = vmatprep.subr.bf16.mxu0 0
        %1143 = vmatpush1.bf16.msra.mxu0 0
        %1144 = vmatprep.subr.bf16.mxu0 0
        %1145 = vmatpush1.bf16.msra.mxu0 0
        %1146 = vmatprep.subr.bf16.mxu0 0
        %1147 = vmatpush1.bf16.msra.mxu0 0
        %1148 = vmatprep.subr.bf16.mxu0 0
        %1149 = vmatpush1.bf16.msra.mxu0 0
        %1150 = vmatprep.subr.bf16.mxu0 0
        %1151 = vmatpush1.bf16.msra.mxu0 0
        %1152 = vmatprep.subr.bf16.mxu0 0
        %1153 = vmatpush1.bf16.msra.mxu0 0
        %1154 = vmatprep.mubr.bf16.mxu0 0
        %1155 = vmatmul.mubr.bf16.gmra.mrb[0].mxu0 %v1003
        %v1156 = vpop.f32.mrb[0].mxu0
        %v1157 = vadd.f32 0.0, %v1156
        %v1158 = vpop.f32.mrb[0].mxu0
        %v1159 = vadd.f32 0.0, %v1158
        %v1160 = vpop.f32.mrb[0].mxu0
        %v1161 = vadd.f32 0.0, %v1160
        %v1162 = vpop.f32.mrb[0].mxu0
        %v1163 = vadd.f32 0.0, %v1162
        %1164 = vmatprep.mubr.bf16.mxu0 0
        %1165 = vmatmul.mubr.bf16.gmra.mrb[0].mxu0 %v1006
        %v1166 = vpop.f32.mrb[0].mxu0
        %v1167 = vadd.f32 0.0, %v1166
        %v1168 = vpop.f32.mrb[0].mxu0
        %v1169 = vadd.f32 0.0, %v1168
        %v1170 = vpop.f32.mrb[0].mxu0
        %v1171 = vadd.f32 0.0, %v1170
        %v1172 = vpop.f32.mrb[0].mxu0
        %v1173 = vadd.f32 0.0, %v1172
        %1174 = vmatprep.mubr.bf16.mxu0 0
        %1175 = vmatmul.mubr.bf16.gmra.mrb[0].mxu0 %v1009
        %v1176 = vpop.f32.mrb[0].mxu0
        %v1177 = vadd.f32 0.0, %v1176
        %v1178 = vpop.f32.mrb[0].mxu0
        %v1179 = vadd.f32 0.0, %v1178
        %v1180 = vpop.f32.mrb[0].mxu0
        %v1181 = vadd.f32 0.0, %v1180
        %v1182 = vpop.f32.mrb[0].mxu0
        %v1183 = vadd.f32 0.0, %v1182
        %1184 = vmatprep.mubr.bf16.mxu0 0
        %1185 = vmatmul.mubr.bf16.gmra.mrb[0].mxu0 %v1012
        %v1186 = vpop.f32.mrb[0].mxu0
        %v1187 = vadd.f32 0.0, %v1186
        %v1188 = vpop.f32.mrb[0].mxu0
        %v1189 = vadd.f32 0.0, %v1188
        %v1190 = vpop.f32.mrb[0].mxu0
        %v1191 = vadd.f32 0.0, %v1190
        %v1192 = vpop.f32.mrb[0].mxu0
        %v1193 = vadd.f32 0.0, %v1192
        %1194 = vmatprep.mubr.bf16.mxu0 0
        %1195 = vmatmul.mubr.bf16.gmra.mrb[0].mxu0 %v1015
        %v1196 = vpop.f32.mrb[0].mxu0
        %v1197 = vadd.f32 0.0, %v1196
        %v1198 = vpop.f32.mrb[0].mxu0
        %v1199 = vadd.f32 0.0, %v1198
        %v1200 = vpop.f32.mrb[0].mxu0
        %v1201 = vadd.f32 0.0, %v1200
        %v1202 = vpop.f32.mrb[0].mxu0
        %v1203 = vadd.f32 0.0, %v1202
        %1204 = vmatprep.mubr.bf16.mxu0 0
        %1205 = vmatmul.mubr.bf16.gmra.mrb[0].mxu0 %v1018
        %v1206 = vpop.f32.mrb[0].mxu0
        %v1207 = vadd.f32 0.0, %v1206
        %v1208 = vpop.f32.mrb[0].mxu0
        %v1209 = vadd.f32 0.0, %v1208
        %v1210 = vpop.f32.mrb[0].mxu0
        %v1211 = vadd.f32 0.0, %v1210
        %v1212 = vpop.f32.mrb[0].mxu0
        %v1213 = vadd.f32 0.0, %v1212
        %1214 = vmatprep.mubr.bf16.mxu0 0
        %1215 = vmatmul.mubr.bf16.gmra.mrb[0].mxu0 %v1021
        %v1216 = vpop.f32.mrb[0].mxu0
        %v1217 = vadd.f32 0.0, %v1216
        %v1218 = vpop.f32.mrb[0].mxu0
        %v1219 = vadd.f32 0.0, %v1218
        %v1220 = vpop.f32.mrb[0].mxu0
        %v1221 = vadd.f32 0.0, %v1220
        %v1222 = vpop.f32.mrb[0].mxu0
        %v1223 = vadd.f32 0.0, %v1222
        %1224 = vmatprep.mubr.bf16.mxu0 0
        %1225 = vmatmul.mubr.bf16.gmra.mrb[0].mxu0 %v1024
        %v1226 = vpop.f32.mrb[0].mxu0
        %v1227 = vadd.f32 0.0, %v1226
        %v1228 = vpop.f32.mrb[0].mxu0
        %v1229 = vadd.f32 0.0, %v1228
        %v1230 = vpop.f32.mrb[0].mxu0
        %v1231 = vadd.f32 0.0, %v1230
        %v1232 = vpop.f32.mrb[0].mxu0
        %v1233 = vadd.f32 0.0, %v1232
        %1234 = vmatprep.mubr.bf16.mxu0 0
        %1235 = vmatmul.mubr.bf16.gmra.mrb[0].mxu0 %v1027
        %v1236 = vpop.f32.mrb[0].mxu0
        %v1237 = vadd.f32 0.0, %v1236
        %v1238 = vpop.f32.mrb[0].mxu0
        %v1239 = vadd.f32 0.0, %v1238
        %v1240 = vpop.f32.mrb[0].mxu0
        %v1241 = vadd.f32 0.0, %v1240
        %v1242 = vpop.f32.mrb[0].mxu0
        %v1243 = vadd.f32 0.0, %v1242
        %1244 = vmatprep.mubr.bf16.mxu0 0
        %1245 = vmatmul.mubr.bf16.gmra.mrb[0].mxu0 %v1030
        %v1246 = vpop.f32.mrb[0].mxu0
        %v1247 = vadd.f32 0.0, %v1246
        %v1248 = vpop.f32.mrb[0].mxu0
        %v1249 = vadd.f32 0.0, %v1248
        %v1250 = vpop.f32.mrb[0].mxu0
        %v1251 = vadd.f32 0.0, %v1250
        %v1252 = vpop.f32.mrb[0].mxu0
        %v1253 = vadd.f32 0.0, %v1252
        %1254 = vmatprep.mubr.bf16.mxu0 0
        %1255 = vmatmul.mubr.bf16.gmra.mrb[0].mxu0 %v1033
        %v1256 = vpop.f32.mrb[0].mxu0
        %v1257 = vadd.f32 0.0, %v1256
        %v1258 = vpop.f32.mrb[0].mxu0
        %v1259 = vadd.f32 0.0, %v1258
        %v1260 = vpop.f32.mrb[0].mxu0
        %v1261 = vadd.f32 0.0, %v1260
        %v1262 = vpop.f32.mrb[0].mxu0
        %v1263 = vadd.f32 0.0, %v1262
        %1264 = vmatprep.mubr.bf16.mxu0 0
        %1265 = vmatmul.mubr.bf16.gmra.mrb[0].mxu0 %v1036
        %v1266 = vpop.f32.mrb[0].mxu0
        %v1267 = vadd.f32 0.0, %v1266
        %v1268 = vpop.f32.mrb[0].mxu0
        %v1269 = vadd.f32 0.0, %v1268
        %v1270 = vpop.f32.mrb[0].mxu0
        %v1271 = vadd.f32 0.0, %v1270
        %v1272 = vpop.f32.mrb[0].mxu0
        %v1273 = vadd.f32 0.0, %v1272
        %1274 = vmatprep.mubr.bf16.mxu0 0
        %1275 = vmatmul.mubr.bf16.gmra.mrb[0].mxu0 %v1039
        %v1276 = vpop.f32.mrb[0].mxu0
        %v1277 = vadd.f32 0.0, %v1276
        %v1278 = vpop.f32.mrb[0].mxu0
        %v1279 = vadd.f32 0.0, %v1278
        %v1280 = vpop.f32.mrb[0].mxu0
        %v1281 = vadd.f32 0.0, %v1280
        %v1282 = vpop.f32.mrb[0].mxu0
        %v1283 = vadd.f32 0.0, %v1282
        %1284 = vmatprep.mubr.bf16.mxu0 0
        %1285 = vmatmul.mubr.bf16.gmra.mrb[0].mxu0 %v1042
        %v1286 = vpop.f32.mrb[0].mxu0
        %v1287 = vadd.f32 0.0, %v1286
        %v1288 = vpop.f32.mrb[0].mxu0
        %v1289 = vadd.f32 0.0, %v1288
        %v1290 = vpop.f32.mrb[0].mxu0
        %v1291 = vadd.f32 0.0, %v1290
        %v1292 = vpop.f32.mrb[0].mxu0
        %v1293 = vadd.f32 0.0, %v1292
        %1294 = vmatprep.mubr.bf16.mxu0 0
        %1295 = vmatmul.mubr.bf16.gmra.mrb[0].mxu0 %v1045
        %v1296 = vpop.f32.mrb[0].mxu0
        %v1297 = vadd.f32 0.0, %v1296
        %v1298 = vpop.f32.mrb[0].mxu0
        %v1299 = vadd.f32 0.0, %v1298
        %v1300 = vpop.f32.mrb[0].mxu0
        %v1301 = vadd.f32 0.0, %v1300
        %v1302 = vpop.f32.mrb[0].mxu0
        %v1303 = vadd.f32 0.0, %v1302
        %1304 = vmatprep.mubr.bf16.mxu0 0
        %1305 = vmatmul.mubr.bf16.gmra.mrb[0].mxu0 %v1048
        %v1306 = vpop.f32.mrb[0].mxu0
        %v1307 = vadd.f32 0.0, %v1306
        %v1308 = vpop.f32.mrb[0].mxu0
        %v1309 = vadd.f32 0.0, %v1308
        %v1310 = vpop.f32.mrb[0].mxu0
        %v1311 = vadd.f32 0.0, %v1310
        %v1312 = vpop.f32.mrb[0].mxu0
        %v1313 = vadd.f32 0.0, %v1312
        %1314 = vmatprep.mubr.bf16.mxu0 0
        %1315 = vmatmul.mubr.bf16.gmra.mrb[0].mxu0 %v1051
        %v1316 = vpop.f32.mrb[0].mxu0
        %v1317 = vadd.f32 0.0, %v1316
        %v1318 = vpop.f32.mrb[0].mxu0
        %v1319 = vadd.f32 0.0, %v1318
        %v1320 = vpop.f32.mrb[0].mxu0
        %v1321 = vadd.f32 0.0, %v1320
        %v1322 = vpop.f32.mrb[0].mxu0
        %v1323 = vadd.f32 0.0, %v1322
        %1324 = vmatprep.mubr.bf16.mxu0 0
        %1325 = vmatmul.mubr.bf16.gmra.mrb[0].mxu0 %v1054
        %v1326 = vpop.f32.mrb[0].mxu0
        %v1327 = vadd.f32 0.0, %v1326
        %v1328 = vpop.f32.mrb[0].mxu0
        %v1329 = vadd.f32 0.0, %v1328
        %v1330 = vpop.f32.mrb[0].mxu0
        %v1331 = vadd.f32 0.0, %v1330
        %v1332 = vpop.f32.mrb[0].mxu0
        %v1333 = vadd.f32 0.0, %v1332
        %1334 = vmatprep.mubr.bf16.mxu0 0
        %1335 = vmatmul.mubr.bf16.gmra.mrb[0].mxu0 %v1057
        %v1336 = vpop.f32.mrb[0].mxu0
        %v1337 = vadd.f32 0.0, %v1336
        %v1338 = vpop.f32.mrb[0].mxu0
        %v1339 = vadd.f32 0.0, %v1338
        %v1340 = vpop.f32.mrb[0].mxu0
        %v1341 = vadd.f32 0.0, %v1340
        %v1342 = vpop.f32.mrb[0].mxu0
        %v1343 = vadd.f32 0.0, %v1342
        %1344 = vmatprep.mubr.bf16.mxu0 0
        %1345 = vmatmul.mubr.bf16.gmra.mrb[0].mxu0 %v1060
        %v1346 = vpop.f32.mrb[0].mxu0
        %v1347 = vadd.f32 0.0, %v1346
        %v1348 = vpop.f32.mrb[0].mxu0
        %v1349 = vadd.f32 0.0, %v1348
        %v1350 = vpop.f32.mrb[0].mxu0
        %v1351 = vadd.f32 0.0, %v1350
        %v1352 = vpop.f32.mrb[0].mxu0
        %v1353 = vadd.f32 0.0, %v1352
        %1354 = vmatprep.mubr.bf16.mxu0 0
        %1355 = vmatmul.mubr.bf16.gmra.mrb[0].mxu0 %v1063
        %v1356 = vpop.f32.mrb[0].mxu0
        %v1357 = vadd.f32 0.0, %v1356
        %v1358 = vpop.f32.mrb[0].mxu0
        %v1359 = vadd.f32 0.0, %v1358
        %v1360 = vpop.f32.mrb[0].mxu0
        %v1361 = vadd.f32 0.0, %v1360
        %v1362 = vpop.f32.mrb[0].mxu0
        %v1363 = vadd.f32 0.0, %v1362
        %1364 = vmatprep.mubr.bf16.mxu0 0
        %1365 = vmatmul.mubr.bf16.gmra.mrb[0].mxu0 %v1066
        %v1366 = vpop.f32.mrb[0].mxu0
        %v1367 = vadd.f32 0.0, %v1366
        %v1368 = vpop.f32.mrb[0].mxu0
        %v1369 = vadd.f32 0.0, %v1368
        %v1370 = vpop.f32.mrb[0].mxu0
        %v1371 = vadd.f32 0.0, %v1370
        %v1372 = vpop.f32.mrb[0].mxu0
        %v1373 = vadd.f32 0.0, %v1372
        %1374 = vmatprep.mubr.bf16.mxu0 0
        %1375 = vmatmul.mubr.bf16.gmra.mrb[0].mxu0 %v1069
        %v1376 = vpop.f32.mrb[0].mxu0
        %v1377 = vadd.f32 0.0, %v1376
        %v1378 = vpop.f32.mrb[0].mxu0
        %v1379 = vadd.f32 0.0, %v1378
        %v1380 = vpop.f32.mrb[0].mxu0
        %v1381 = vadd.f32 0.0, %v1380
        %v1382 = vpop.f32.mrb[0].mxu0
        %v1383 = vadd.f32 0.0, %v1382
        %1384 = vmatprep.mubr.bf16.mxu0 0
        %1385 = vmatmul.mubr.bf16.gmra.mrb[0].mxu0 %v1072
        %v1386 = vpop.f32.mrb[0].mxu0
        %v1387 = vadd.f32 0.0, %v1386
        %v1388 = vpop.f32.mrb[0].mxu0
        %v1389 = vadd.f32 0.0, %v1388
        %v1390 = vpop.f32.mrb[0].mxu0
        %v1391 = vadd.f32 0.0, %v1390
        %v1392 = vpop.f32.mrb[0].mxu0
        %v1393 = vadd.f32 0.0, %v1392
        %1394 = vmatprep.mubr.bf16.mxu0 0
        %1395 = vmatmul.mubr.bf16.gmra.mrb[0].mxu0 %v1075
        %v1396 = vpop.f32.mrb[0].mxu0
        %v1397 = vadd.f32 0.0, %v1396
        %v1398 = vpop.f32.mrb[0].mxu0
        %v1399 = vadd.f32 0.0, %v1398
        %v1400 = vpop.f32.mrb[0].mxu0
        %v1401 = vadd.f32 0.0, %v1400
        %v1402 = vpop.f32.mrb[0].mxu0
        %v1403 = vadd.f32 0.0, %v1402
        %1404 = vmatprep.mubr.bf16.mxu0 0
        %1405 = vmatmul.mubr.bf16.gmra.mrb[0].mxu0 %v1078
        %v1406 = vpop.f32.mrb[0].mxu0
        %v1407 = vadd.f32 0.0, %v1406
        %v1408 = vpop.f32.mrb[0].mxu0
        %v1409 = vadd.f32 0.0, %v1408
        %v1410 = vpop.f32.mrb[0].mxu0
        %v1411 = vadd.f32 0.0, %v1410
        %v1412 = vpop.f32.mrb[0].mxu0
        %v1413 = vadd.f32 0.0, %v1412
        %1414 = vmatprep.mubr.bf16.mxu0 0
        %1415 = vmatmul.mubr.bf16.gmra.mrb[0].mxu0 %v1081
        %v1416 = vpop.f32.mrb[0].mxu0
        %v1417 = vadd.f32 0.0, %v1416
        %v1418 = vpop.f32.mrb[0].mxu0
        %v1419 = vadd.f32 0.0, %v1418
        %v1420 = vpop.f32.mrb[0].mxu0
        %v1421 = vadd.f32 0.0, %v1420
        %v1422 = vpop.f32.mrb[0].mxu0
        %v1423 = vadd.f32 0.0, %v1422
        %1424 = vmatprep.mubr.bf16.mxu0 0
        %1425 = vmatmul.mubr.bf16.gmra.mrb[0].mxu0 %v1084
        %v1426 = vpop.f32.mrb[0].mxu0
        %v1427 = vadd.f32 0.0, %v1426
        %v1428 = vpop.f32.mrb[0].mxu0
        %v1429 = vadd.f32 0.0, %v1428
        %v1430 = vpop.f32.mrb[0].mxu0
        %v1431 = vadd.f32 0.0, %v1430
        %v1432 = vpop.f32.mrb[0].mxu0
        %v1433 = vadd.f32 0.0, %v1432
        %1434 = vmatprep.mubr.bf16.mxu0 0
        %1435 = vmatmul.mubr.bf16.gmra.mrb[0].mxu0 %v1087
        %v1436 = vpop.f32.mrb[0].mxu0
        %v1437 = vadd.f32 0.0, %v1436
        %v1438 = vpop.f32.mrb[0].mxu0
        %v1439 = vadd.f32 0.0, %v1438
        %v1440 = vpop.f32.mrb[0].mxu0
        %v1441 = vadd.f32 0.0, %v1440
        %v1442 = vpop.f32.mrb[0].mxu0
        %v1443 = vadd.f32 0.0, %v1442
        %1444 = vmatprep.mubr.bf16.mxu0 0
        %1445 = vmatmul.mubr.bf16.gmra.mrb[0].mxu0 %v1090
        %v1446 = vpop.f32.mrb[0].mxu0
        %v1447 = vadd.f32 0.0, %v1446
        %v1448 = vpop.f32.mrb[0].mxu0
        %v1449 = vadd.f32 0.0, %v1448
        %v1450 = vpop.f32.mrb[0].mxu0
        %v1451 = vadd.f32 0.0, %v1450
        %v1452 = vpop.f32.mrb[0].mxu0
        %v1453 = vadd.f32 0.0, %v1452
        %1454 = vmatprep.mubr.bf16.mxu0 0
        %1455 = vmatmul.mubr.bf16.gmra.mrb[0].mxu0 %v1093
        %v1456 = vpop.f32.mrb[0].mxu0
        %v1457 = vadd.f32 0.0, %v1456
        %v1458 = vpop.f32.mrb[0].mxu0
        %v1459 = vadd.f32 0.0, %v1458
        %v1460 = vpop.f32.mrb[0].mxu0
        %v1461 = vadd.f32 0.0, %v1460
        %v1462 = vpop.f32.mrb[0].mxu0
        %v1463 = vadd.f32 0.0, %v1462
        %1464 = vmatprep.mubr.bf16.mxu0 0
        %1465 = vmatmul.mubr.bf16.gmra.mrb[0].mxu0 %v1096
        %v1466 = vpop.f32.mrb[0].mxu0
        %v1467 = vadd.f32 0.0, %v1466
        %v1468 = vpop.f32.mrb[0].mxu0
        %v1469 = vadd.f32 0.0, %v1468
        %v1470 = vpop.f32.mrb[0].mxu0
        %v1471 = vadd.f32 0.0, %v1470
        %v1472 = vpop.f32.mrb[0].mxu0
        %v1473 = vadd.f32 0.0, %v1472
        %1474 = vmatprep.mubr.bf16.mxu0 0
        %1475 = vmatmul.mubr.bf16.gmra.mrb[0].mxu0 %v1099
        %v1476 = vpop.f32.mrb[0].mxu0
        %v1477 = vadd.f32 0.0, %v1476
        %v1478 = vpop.f32.mrb[0].mxu0
        %v1479 = vadd.f32 0.0, %v1478
        %v1480 = vpop.f32.mrb[0].mxu0
        %v1481 = vadd.f32 0.0, %v1480
        %v1482 = vpop.f32.mrb[0].mxu0
        %v1483 = vadd.f32 0.0, %v1482
        %1484 = vmatprep.mubr.bf16.mxu0 0
        %1485 = vmatmul.mubr.bf16.gmra.mrb[0].mxu0 %v1102
        %v1486 = vpop.f32.mrb[0].mxu0
        %v1487 = vadd.f32 0.0, %v1486
        %v1488 = vpop.f32.mrb[0].mxu0
        %v1489 = vadd.f32 0.0, %v1488
        %v1490 = vpop.f32.mrb[0].mxu0
        %v1491 = vadd.f32 0.0, %v1490
        %v1492 = vpop.f32.mrb[0].mxu0
        %v1493 = vadd.f32 0.0, %v1492
        %1494 = vmatprep.mubr.bf16.mxu0 0
        %1495 = vmatmul.mubr.bf16.gmra.mrb[0].mxu0 %v1105
        %v1496 = vpop.f32.mrb[0].mxu0
        %v1497 = vadd.f32 0.0, %v1496
        %v1498 = vpop.f32.mrb[0].mxu0
        %v1499 = vadd.f32 0.0, %v1498
        %v1500 = vpop.f32.mrb[0].mxu0
        %v1501 = vadd.f32 0.0, %v1500
        %v1502 = vpop.f32.mrb[0].mxu0
        %v1503 = vadd.f32 0.0, %v1502
        %1504 = vmatprep.mubr.bf16.mxu0 0
        %1505 = vmatmul.mubr.bf16.gmra.mrb[0].mxu0 %v1108
        %v1506 = vpop.f32.mrb[0].mxu0
        %v1507 = vadd.f32 0.0, %v1506
        %v1508 = vpop.f32.mrb[0].mxu0
        %v1509 = vadd.f32 0.0, %v1508
        %v1510 = vpop.f32.mrb[0].mxu0
        %v1511 = vadd.f32 0.0, %v1510
        %v1512 = vpop.f32.mrb[0].mxu0
        %v1513 = vadd.f32 0.0, %v1512
        %1514 = vmatprep.mubr.bf16.mxu0 0
        %1515 = vmatmul.mubr.bf16.gmra.mrb[0].mxu0 %v1111
        %v1516 = vpop.f32.mrb[0].mxu0
        %v1517 = vadd.f32 0.0, %v1516
        %v1518 = vpop.f32.mrb[0].mxu0
        %v1519 = vadd.f32 0.0, %v1518
        %v1520 = vpop.f32.mrb[0].mxu0
        %v1521 = vadd.f32 0.0, %v1520
        %v1522 = vpop.f32.mrb[0].mxu0
        %v1523 = vadd.f32 0.0, %v1522
        %1524 = vmatprep.mubr.bf16.mxu0 0
        %1525 = vmatmul.mubr.bf16.gmra.mrb[0].mxu0 %v1114
        %v1526 = vpop.f32.mrb[0].mxu0
        %v1527 = vadd.f32 0.0, %v1526
        %v1528 = vpop.f32.mrb[0].mxu0
        %v1529 = vadd.f32 0.0, %v1528
        %v1530 = vpop.f32.mrb[0].mxu0
        %v1531 = vadd.f32 0.0, %v1530
        %v1532 = vpop.f32.mrb[0].mxu0
        %v1533 = vadd.f32 0.0, %v1532
        %1534 = vmatprep.mubr.bf16.mxu0 0
        %1535 = vmatmul.mubr.bf16.gmra.mrb[0].mxu0 %v1117
        %v1536 = vpop.f32.mrb[0].mxu0
        %v1537 = vadd.f32 0.0, %v1536
        %v1538 = vpop.f32.mrb[0].mxu0
        %v1539 = vadd.f32 0.0, %v1538
        %v1540 = vpop.f32.mrb[0].mxu0
        %v1541 = vadd.f32 0.0, %v1540
        %v1542 = vpop.f32.mrb[0].mxu0
        %v1543 = vadd.f32 0.0, %v1542
        %1544 = vmatprep.mubr.bf16.mxu0 0
        %1545 = vmatmul.mubr.bf16.gmra.mrb[0].mxu0 %v1120
        %v1546 = vpop.f32.mrb[0].mxu0
        %v1547 = vadd.f32 0.0, %v1546
        %v1548 = vpop.f32.mrb[0].mxu0
        %v1549 = vadd.f32 0.0, %v1548
        %v1550 = vpop.f32.mrb[0].mxu0
        %v1551 = vadd.f32 0.0, %v1550
        %v1552 = vpop.f32.mrb[0].mxu0
        %v1553 = vadd.f32 0.0, %v1552
        %1554 = vdwg.mxu0
        %v1555 = vmax.f32 %v1157, 0.0
        %v1556 = vmax.f32 %v1159, 0.0
        %v1557 = vmax.f32 %v1161, 0.0
        %v1558 = vmax.f32 %v1163, 0.0
        %v1559 = vmax.f32 %v1167, 0.0
        %v1560 = vmax.f32 %v1169, 0.0
        %v1561 = vmax.f32 %v1171, 0.0
        %v1562 = vmax.f32 %v1173, 0.0
        %v1563 = vmax.f32 %v1177, 0.0
        %v1564 = vmax.f32 %v1179, 0.0
        %v1565 = vmax.f32 %v1181, 0.0
        %v1566 = vmax.f32 %v1183, 0.0
        %v1567 = vmax.f32 %v1187, 0.0
        %v1568 = vmax.f32 %v1189, 0.0
        %v1569 = vmax.f32 %v1191, 0.0
        %v1570 = vmax.f32 %v1193, 0.0
        %v1571 = vmax.f32 %v1197, 0.0
        %v1572 = vmax.f32 %v1199, 0.0
        %v1573 = vmax.f32 %v1201, 0.0
        %v1574 = vmax.f32 %v1203, 0.0
        %v1575 = vmax.f32 %v1207, 0.0
        %v1576 = vmax.f32 %v1209, 0.0
        %v1577 = vmax.f32 %v1211, 0.0
        %v1578 = vmax.f32 %v1213, 0.0
        %v1579 = vmax.f32 %v1217, 0.0
        %v1580 = vmax.f32 %v1219, 0.0
        %v1581 = vmax.f32 %v1221, 0.0
        %v1582 = vmax.f32 %v1223, 0.0
        %v1583 = vmax.f32 %v1227, 0.0
        %v1584 = vmax.f32 %v1229, 0.0
        %v1585 = vmax.f32 %v1231, 0.0
        %v1586 = vmax.f32 %v1233, 0.0
        %v1587 = vmax.f32 %v1237, 0.0
        %v1588 = vmax.f32 %v1239, 0.0
        %v1589 = vmax.f32 %v1241, 0.0
        %v1590 = vmax.f32 %v1243, 0.0
        %v1591 = vmax.f32 %v1247, 0.0
        %v1592 = vmax.f32 %v1249, 0.0
        %v1593 = vmax.f32 %v1251, 0.0
        %v1594 = vmax.f32 %v1253, 0.0
        %v1595 = vmax.f32 %v1257, 0.0
        %v1596 = vmax.f32 %v1259, 0.0
        %v1597 = vmax.f32 %v1261, 0.0
        %v1598 = vmax.f32 %v1263, 0.0
        %v1599 = vmax.f32 %v1267, 0.0
        %v1600 = vmax.f32 %v1269, 0.0
        %v1601 = vmax.f32 %v1271, 0.0
        %v1602 = vmax.f32 %v1273, 0.0
        %v1603 = vmax.f32 %v1277, 0.0
        %v1604 = vmax.f32 %v1279, 0.0
        %v1605 = vmax.f32 %v1281, 0.0
        %v1606 = vmax.f32 %v1283, 0.0
        %v1607 = vmax.f32 %v1287, 0.0
        %v1608 = vmax.f32 %v1289, 0.0
        %v1609 = vmax.f32 %v1291, 0.0
        %v1610 = vmax.f32 %v1293, 0.0
        %v1611 = vmax.f32 %v1297, 0.0
        %v1612 = vmax.f32 %v1299, 0.0
        %v1613 = vmax.f32 %v1301, 0.0
        %v1614 = vmax.f32 %v1303, 0.0
        %v1615 = vmax.f32 %v1307, 0.0
        %v1616 = vmax.f32 %v1309, 0.0
        %v1617 = vmax.f32 %v1311, 0.0
        %v1618 = vmax.f32 %v1313, 0.0
        %v1619 = vmax.f32 %v1317, 0.0
        %v1620 = vmax.f32 %v1319, 0.0
        %v1621 = vmax.f32 %v1321, 0.0
        %v1622 = vmax.f32 %v1323, 0.0
        %v1623 = vmax.f32 %v1327, 0.0
        %v1624 = vmax.f32 %v1329, 0.0
        %v1625 = vmax.f32 %v1331, 0.0
        %v1626 = vmax.f32 %v1333, 0.0
        %v1627 = vmax.f32 %v1337, 0.0
        %v1628 = vmax.f32 %v1339, 0.0
        %v1629 = vmax.f32 %v1341, 0.0
        %v1630 = vmax.f32 %v1343, 0.0
        %v1631 = vmax.f32 %v1347, 0.0
        %v1632 = vmax.f32 %v1349, 0.0
        %v1633 = vmax.f32 %v1351, 0.0
        %v1634 = vmax.f32 %v1353, 0.0
        %v1635 = vmax.f32 %v1357, 0.0
        %v1636 = vmax.f32 %v1359, 0.0
        %v1637 = vmax.f32 %v1361, 0.0
        %v1638 = vmax.f32 %v1363, 0.0
        %v1639 = vmax.f32 %v1367, 0.0
        %v1640 = vmax.f32 %v1369, 0.0
        %v1641 = vmax.f32 %v1371, 0.0
        %v1642 = vmax.f32 %v1373, 0.0
        %v1643 = vmax.f32 %v1377, 0.0
        %v1644 = vmax.f32 %v1379, 0.0
        %v1645 = vmax.f32 %v1381, 0.0
        %v1646 = vmax.f32 %v1383, 0.0
        %v1647 = vmax.f32 %v1387, 0.0
        %v1648 = vmax.f32 %v1389, 0.0
        %v1649 = vmax.f32 %v1391, 0.0
        %v1650 = vmax.f32 %v1393, 0.0
        %v1651 = vmax.f32 %v1397, 0.0
        %v1652 = vmax.f32 %v1399, 0.0
        %v1653 = vmax.f32 %v1401, 0.0
        %v1654 = vmax.f32 %v1403, 0.0
        %v1655 = vmax.f32 %v1407, 0.0
        %v1656 = vmax.f32 %v1409, 0.0
        %v1657 = vmax.f32 %v1411, 0.0
        %v1658 = vmax.f32 %v1413, 0.0
        %v1659 = vmax.f32 %v1417, 0.0
        %v1660 = vmax.f32 %v1419, 0.0
        %v1661 = vmax.f32 %v1421, 0.0
        %v1662 = vmax.f32 %v1423, 0.0
        %v1663 = vmax.f32 %v1427, 0.0
        %v1664 = vmax.f32 %v1429, 0.0
        %v1665 = vmax.f32 %v1431, 0.0
        %v1666 = vmax.f32 %v1433, 0.0
        %v1667 = vmax.f32 %v1437, 0.0
        %v1668 = vmax.f32 %v1439, 0.0
        %v1669 = vmax.f32 %v1441, 0.0
        %v1670 = vmax.f32 %v1443, 0.0
        %v1671 = vmax.f32 %v1447, 0.0
        %v1672 = vmax.f32 %v1449, 0.0
        %v1673 = vmax.f32 %v1451, 0.0
        %v1674 = vmax.f32 %v1453, 0.0
        %v1675 = vmax.f32 %v1457, 0.0
        %v1676 = vmax.f32 %v1459, 0.0
        %v1677 = vmax.f32 %v1461, 0.0
        %v1678 = vmax.f32 %v1463, 0.0
        %v1679 = vmax.f32 %v1467, 0.0
        %v1680 = vmax.f32 %v1469, 0.0
        %v1681 = vmax.f32 %v1471, 0.0
        %v1682 = vmax.f32 %v1473, 0.0
        %v1683 = vmax.f32 %v1477, 0.0
        %v1684 = vmax.f32 %v1479, 0.0
        %v1685 = vmax.f32 %v1481, 0.0
        %v1686 = vmax.f32 %v1483, 0.0
        %v1687 = vmax.f32 %v1487, 0.0
        %v1688 = vmax.f32 %v1489, 0.0
        %v1689 = vmax.f32 %v1491, 0.0
        %v1690 = vmax.f32 %v1493, 0.0
        %v1691 = vmax.f32 %v1497, 0.0
        %v1692 = vmax.f32 %v1499, 0.0
        %v1693 = vmax.f32 %v1501, 0.0
        %v1694 = vmax.f32 %v1503, 0.0
        %v1695 = vmax.f32 %v1507, 0.0
        %v1696 = vmax.f32 %v1509, 0.0
        %v1697 = vmax.f32 %v1511, 0.0
        %v1698 = vmax.f32 %v1513, 0.0
        %v1699 = vmax.f32 %v1517, 0.0
        %v1700 = vmax.f32 %v1519, 0.0
        %v1701 = vmax.f32 %v1521, 0.0
        %v1702 = vmax.f32 %v1523, 0.0
        %v1703 = vmax.f32 %v1527, 0.0
        %v1704 = vmax.f32 %v1529, 0.0
        %v1705 = vmax.f32 %v1531, 0.0
        %v1706 = vmax.f32 %v1533, 0.0
        %v1707 = vmax.f32 %v1537, 0.0
        %v1708 = vmax.f32 %v1539, 0.0
        %v1709 = vmax.f32 %v1541, 0.0
        %v1710 = vmax.f32 %v1543, 0.0
        %v1711 = vmax.f32 %v1547, 0.0
        %v1712 = vmax.f32 %v1549, 0.0
        %v1713 = vmax.f32 %v1551, 0.0
        %v1714 = vmax.f32 %v1553, 0.0
        %v1715 = vpack.c.bf16 %v1557, %v1555
        %v1716 = vpack.c.bf16 %v1558, %v1556
        %v1717 = vpack.c.bf16 %v1561, %v1559
        %v1718 = vpack.c.bf16 %v1562, %v1560
        %v1719 = vpack.c.bf16 %v1565, %v1563
        %v1720 = vpack.c.bf16 %v1566, %v1564
        %v1721 = vpack.c.bf16 %v1569, %v1567
        %v1722 = vpack.c.bf16 %v1570, %v1568
        %v1723 = vpack.c.bf16 %v1573, %v1571
        %v1724 = vpack.c.bf16 %v1574, %v1572
        %v1725 = vpack.c.bf16 %v1577, %v1575
        %v1726 = vpack.c.bf16 %v1578, %v1576
        %v1727 = vpack.c.bf16 %v1581, %v1579
        %v1728 = vpack.c.bf16 %v1582, %v1580
        %v1729 = vpack.c.bf16 %v1585, %v1583
        %v1730 = vpack.c.bf16 %v1586, %v1584
        %v1731 = vpack.c.bf16 %v1589, %v1587
        %v1732 = vpack.c.bf16 %v1590, %v1588
        %v1733 = vpack.c.bf16 %v1593, %v1591
        %v1734 = vpack.c.bf16 %v1594, %v1592
        %v1735 = vpack.c.bf16 %v1597, %v1595
        %v1736 = vpack.c.bf16 %v1598, %v1596
        %v1737 = vpack.c.bf16 %v1601, %v1599
        %v1738 = vpack.c.bf16 %v1602, %v1600
        %v1739 = vpack.c.bf16 %v1605, %v1603
        %v1740 = vpack.c.bf16 %v1606, %v1604
        %v1741 = vpack.c.bf16 %v1609, %v1607
        %v1742 = vpack.c.bf16 %v1610, %v1608
        %v1743 = vpack.c.bf16 %v1613, %v1611
        %v1744 = vpack.c.bf16 %v1614, %v1612
        %v1745 = vpack.c.bf16 %v1617, %v1615
        %v1746 = vpack.c.bf16 %v1618, %v1616
        %v1747 = vpack.c.bf16 %v1621, %v1619
        %v1748 = vpack.c.bf16 %v1622, %v1620
        %v1749 = vpack.c.bf16 %v1625, %v1623
        %v1750 = vpack.c.bf16 %v1626, %v1624
        %v1751 = vpack.c.bf16 %v1629, %v1627
        %v1752 = vpack.c.bf16 %v1630, %v1628
        %v1753 = vpack.c.bf16 %v1633, %v1631
        %v1754 = vpack.c.bf16 %v1634, %v1632
        %v1755 = vpack.c.bf16 %v1637, %v1635
        %v1756 = vpack.c.bf16 %v1638, %v1636
        %v1757 = vpack.c.bf16 %v1641, %v1639
        %v1758 = vpack.c.bf16 %v1642, %v1640
        %v1759 = vpack.c.bf16 %v1645, %v1643
        %v1760 = vpack.c.bf16 %v1646, %v1644
        %v1761 = vpack.c.bf16 %v1649, %v1647
        %v1762 = vpack.c.bf16 %v1650, %v1648
        %v1763 = vpack.c.bf16 %v1653, %v1651
        %v1764 = vpack.c.bf16 %v1654, %v1652
        %v1765 = vpack.c.bf16 %v1657, %v1655
        %v1766 = vpack.c.bf16 %v1658, %v1656
        %v1767 = vpack.c.bf16 %v1661, %v1659
        %v1768 = vpack.c.bf16 %v1662, %v1660
        %v1769 = vpack.c.bf16 %v1665, %v1663
        %v1770 = vpack.c.bf16 %v1666, %v1664
        %v1771 = vpack.c.bf16 %v1669, %v1667
        %v1772 = vpack.c.bf16 %v1670, %v1668
        %v1773 = vpack.c.bf16 %v1673, %v1671
        %v1774 = vpack.c.bf16 %v1674, %v1672
        %v1775 = vpack.c.bf16 %v1677, %v1675
        %v1776 = vpack.c.bf16 %v1678, %v1676
        %v1777 = vpack.c.bf16 %v1681, %v1679
        %v1778 = vpack.c.bf16 %v1682, %v1680
        %v1779 = vpack.c.bf16 %v1685, %v1683
        %v1780 = vpack.c.bf16 %v1686, %v1684
        %v1781 = vpack.c.bf16 %v1689, %v1687
        %v1782 = vpack.c.bf16 %v1690, %v1688
        %v1783 = vpack.c.bf16 %v1693, %v1691
        %v1784 = vpack.c.bf16 %v1694, %v1692
        %v1785 = vpack.c.bf16 %v1697, %v1695
        %v1786 = vpack.c.bf16 %v1698, %v1696
        %v1787 = vpack.c.bf16 %v1701, %v1699
        %v1788 = vpack.c.bf16 %v1702, %v1700
        %v1789 = vpack.c.bf16 %v1705, %v1703
        %v1790 = vpack.c.bf16 %v1706, %v1704
        %v1791 = vpack.c.bf16 %v1709, %v1707
        %v1792 = vpack.c.bf16 %v1710, %v1708
        %v1793 = vpack.c.bf16 %v1713, %v1711
        %v1794 = vpack.c.bf16 %v1714, %v1712
        %1795 = vst [vmem:[#allocation3] sm:$0xff] %v1715
        %1796 = vst [vmem:[#allocation3 + $0x8] sm:$0xff] %v1716
        %1797 = vst [vmem:[#allocation3 + $0x10] sm:$0xff] %v1717
        %1798 = vst [vmem:[#allocation3 + $0x18] sm:$0xff] %v1718
        %1799 = vst [vmem:[#allocation3 + $0x20] sm:$0xff] %v1719
        %1800 = vst [vmem:[#allocation3 + $0x28] sm:$0xff] %v1720
        %1801 = vst [vmem:[#allocation3 + $0x30] sm:$0xff] %v1721
        %1802 = vst [vmem:[#allocation3 + $0x38] sm:$0xff] %v1722
        %1803 = vst [vmem:[#allocation3 + $0x40] sm:$0xff] %v1723
        %1804 = vst [vmem:[#allocation3 + $0x48] sm:$0xff] %v1724
        %1805 = vst [vmem:[#allocation3 + $0x50] sm:$0xff] %v1725
        %1806 = vst [vmem:[#allocation3 + $0x58] sm:$0xff] %v1726
        %1807 = vst [vmem:[#allocation3 + $0x60] sm:$0xff] %v1727
        %1808 = vst [vmem:[#allocation3 + $0x68] sm:$0xff] %v1728
        %1809 = vst [vmem:[#allocation3 + $0x70] sm:$0xff] %v1729
        %1810 = vst [vmem:[#allocation3 + $0x78] sm:$0xff] %v1730
        %1811 = vst [vmem:[#allocation3 + $0x80] sm:$0xff] %v1731
        %1812 = vst [vmem:[#allocation3 + $0x88] sm:$0xff] %v1732
        %1813 = vst [vmem:[#allocation3 + $0x90] sm:$0xff] %v1733
        %1814 = vst [vmem:[#allocation3 + $0x98] sm:$0xff] %v1734
        %1815 = vst [vmem:[#allocation3 + $0xa0] sm:$0xff] %v1735
        %1816 = vst [vmem:[#allocation3 + $0xa8] sm:$0xff] %v1736
        %1817 = vst [vmem:[#allocation3 + $0xb0] sm:$0xff] %v1737
        %1818 = vst [vmem:[#allocation3 + $0xb8] sm:$0xff] %v1738
        %1819 = vst [vmem:[#allocation3 + $0xc0] sm:$0xff] %v1739
        %1820 = vst [vmem:[#allocation3 + $0xc8] sm:$0xff] %v1740
        %1821 = vst [vmem:[#allocation3 + $0xd0] sm:$0xff] %v1741
        %1822 = vst [vmem:[#allocation3 + $0xd8] sm:$0xff] %v1742
        %1823 = vst [vmem:[#allocation3 + $0xe0] sm:$0xff] %v1743
        %1824 = vst [vmem:[#allocation3 + $0xe8] sm:$0xff] %v1744
        %1825 = vst [vmem:[#allocation3 + $0xf0] sm:$0xff] %v1745
        %1826 = vst [vmem:[#allocation3 + $0xf8] sm:$0xff] %v1746
        %1827 = vst [vmem:[#allocation3 + $0x100] sm:$0xff] %v1747
        %1828 = vst [vmem:[#allocation3 + $0x108] sm:$0xff] %v1748
        %1829 = vst [vmem:[#allocation3 + $0x110] sm:$0xff] %v1749
        %1830 = vst [vmem:[#allocation3 + $0x118] sm:$0xff] %v1750
        %1831 = vst [vmem:[#allocation3 + $0x120] sm:$0xff] %v1751
        %1832 = vst [vmem:[#allocation3 + $0x128] sm:$0xff] %v1752
        %1833 = vst [vmem:[#allocation3 + $0x130] sm:$0xff] %v1753
        %1834 = vst [vmem:[#allocation3 + $0x138] sm:$0xff] %v1754
        %1835 = vst [vmem:[#allocation3 + $0x140] sm:$0xff] %v1755
        %1836 = vst [vmem:[#allocation3 + $0x148] sm:$0xff] %v1756
        %1837 = vst [vmem:[#allocation3 + $0x150] sm:$0xff] %v1757
        %1838 = vst [vmem:[#allocation3 + $0x158] sm:$0xff] %v1758
        %1839 = vst [vmem:[#allocation3 + $0x160] sm:$0xff] %v1759
        %1840 = vst [vmem:[#allocation3 + $0x168] sm:$0xff] %v1760
        %1841 = vst [vmem:[#allocation3 + $0x170] sm:$0xff] %v1761
        %1842 = vst [vmem:[#allocation3 + $0x178] sm:$0xff] %v1762
        %1843 = vst [vmem:[#allocation3 + $0x180] sm:$0xff] %v1763
        %1844 = vst [vmem:[#allocation3 + $0x188] sm:$0xff] %v1764
        %1845 = vst [vmem:[#allocation3 + $0x190] sm:$0xff] %v1765
        %1846 = vst [vmem:[#allocation3 + $0x198] sm:$0xff] %v1766
        %1847 = vst [vmem:[#allocation3 + $0x1a0] sm:$0xff] %v1767
        %1848 = vst [vmem:[#allocation3 + $0x1a8] sm:$0xff] %v1768
        %1849 = vst [vmem:[#allocation3 + $0x1b0] sm:$0xff] %v1769
        %1850 = vst [vmem:[#allocation3 + $0x1b8] sm:$0xff] %v1770
        %1851 = vst [vmem:[#allocation3 + $0x1c0] sm:$0xff] %v1771
        %1852 = vst [vmem:[#allocation3 + $0x1c8] sm:$0xff] %v1772
        %1853 = vst [vmem:[#allocation3 + $0x1d0] sm:$0xff] %v1773
        %1854 = vst [vmem:[#allocation3 + $0x1d8] sm:$0xff] %v1774
        %1855 = vst [vmem:[#allocation3 + $0x1e0] sm:$0xff] %v1775
        %1856 = vst [vmem:[#allocation3 + $0x1e8] sm:$0xff] %v1776
        %1857 = vst [vmem:[#allocation3 + $0x1f0] sm:$0xff] %v1777
        %1858 = vst [vmem:[#allocation3 + $0x1f8] sm:$0xff] %v1778
        %1859 = vst [vmem:[#allocation3 + $0x200] sm:$0xff] %v1779
        %1860 = vst [vmem:[#allocation3 + $0x208] sm:$0xff] %v1780
        %1861 = vst [vmem:[#allocation3 + $0x210] sm:$0xff] %v1781
        %1862 = vst [vmem:[#allocation3 + $0x218] sm:$0xff] %v1782
        %1863 = vst [vmem:[#allocation3 + $0x220] sm:$0xff] %v1783
        %1864 = vst [vmem:[#allocation3 + $0x228] sm:$0xff] %v1784
        %1865 = vst [vmem:[#allocation3 + $0x230] sm:$0xff] %v1785
        %1866 = vst [vmem:[#allocation3 + $0x238] sm:$0xff] %v1786
        %1867 = vst [vmem:[#allocation3 + $0x240] sm:$0xff] %v1787
        %1868 = vst [vmem:[#allocation3 + $0x248] sm:$0xff] %v1788
        %1869 = vst [vmem:[#allocation3 + $0x250] sm:$0xff] %v1789
        %1870 = vst [vmem:[#allocation3 + $0x258] sm:$0xff] %v1790
        %1871 = vst [vmem:[#allocation3 + $0x260] sm:$0xff] %v1791
        %1872 = vst [vmem:[#allocation3 + $0x268] sm:$0xff] %v1792
        %1873 = vst [vmem:[#allocation3 + $0x270] sm:$0xff] %v1793
        %1874 = vst [vmem:[#allocation3 + $0x278] sm:$0xff] %v1794
        %v1875 = vld [vmem:[#allocation3] sm:$0xff]
        %v1876 = vld [vmem:[#allocation3 + $0x8] sm:$0xff]
        %v1877 = vld [vmem:[#allocation3 + $0x10] sm:$0xff]
        %v1878 = vld [vmem:[#allocation3 + $0x18] sm:$0xff]
        %v1879 = vld [vmem:[#allocation3 + $0x20] sm:$0xff]
        %v1880 = vld [vmem:[#allocation3 + $0x28] sm:$0xff]
        %v1881 = vld [vmem:[#allocation3 + $0x30] sm:$0xff]
        %v1882 = vld [vmem:[#allocation3 + $0x38] sm:$0xff]
        %v1883 = vld [vmem:[#allocation3 + $0x40] sm:$0xff]
        %v1884 = vld [vmem:[#allocation3 + $0x48] sm:$0xff]
        %v1885 = vld [vmem:[#allocation3 + $0x50] sm:$0xff]
        %v1886 = vld [vmem:[#allocation3 + $0x58] sm:$0xff]
        %v1887 = vld [vmem:[#allocation3 + $0x60] sm:$0xff]
        %v1888 = vld [vmem:[#allocation3 + $0x68] sm:$0xff]
        %v1889 = vld [vmem:[#allocation3 + $0x70] sm:$0xff]
        %v1890 = vld [vmem:[#allocation3 + $0x78] sm:$0xff]
        %v1891 = vld [vmem:[#allocation3 + $0x80] sm:$0xff]
        %v1892 = vld [vmem:[#allocation3 + $0x88] sm:$0xff]
        %v1893 = vld [vmem:[#allocation3 + $0x90] sm:$0xff]
        %v1894 = vld [vmem:[#allocation3 + $0x98] sm:$0xff]
        %v1895 = vld [vmem:[#allocation3 + $0xa0] sm:$0xff]
        %v1896 = vld [vmem:[#allocation3 + $0xa8] sm:$0xff]
        %v1897 = vld [vmem:[#allocation3 + $0xb0] sm:$0xff]
        %v1898 = vld [vmem:[#allocation3 + $0xb8] sm:$0xff]
        %v1899 = vld [vmem:[#allocation3 + $0xc0] sm:$0xff]
        %v1900 = vld [vmem:[#allocation3 + $0xc8] sm:$0xff]
        %v1901 = vld [vmem:[#allocation3 + $0xd0] sm:$0xff]
        %v1902 = vld [vmem:[#allocation3 + $0xd8] sm:$0xff]
        %v1903 = vld [vmem:[#allocation3 + $0xe0] sm:$0xff]
        %v1904 = vld [vmem:[#allocation3 + $0xe8] sm:$0xff]
        %v1905 = vld [vmem:[#allocation3 + $0xf0] sm:$0xff]
        %v1906 = vld [vmem:[#allocation3 + $0xf8] sm:$0xff]
        %v1907 = vld [vmem:[#allocation3 + $0x100] sm:$0xff]
        %v1908 = vld [vmem:[#allocation3 + $0x108] sm:$0xff]
        %v1909 = vld [vmem:[#allocation3 + $0x110] sm:$0xff]
        %v1910 = vld [vmem:[#allocation3 + $0x118] sm:$0xff]
        %v1911 = vld [vmem:[#allocation3 + $0x120] sm:$0xff]
        %v1912 = vld [vmem:[#allocation3 + $0x128] sm:$0xff]
        %v1913 = vld [vmem:[#allocation3 + $0x130] sm:$0xff]
        %v1914 = vld [vmem:[#allocation3 + $0x138] sm:$0xff]
        %v1915 = vld [vmem:[#allocation3 + $0x140] sm:$0xff]
        %v1916 = vld [vmem:[#allocation3 + $0x148] sm:$0xff]
        %v1917 = vld [vmem:[#allocation3 + $0x150] sm:$0xff]
        %v1918 = vld [vmem:[#allocation3 + $0x158] sm:$0xff]
        %v1919 = vld [vmem:[#allocation3 + $0x160] sm:$0xff]
        %v1920 = vld [vmem:[#allocation3 + $0x168] sm:$0xff]
        %v1921 = vld [vmem:[#allocation3 + $0x170] sm:$0xff]
        %v1922 = vld [vmem:[#allocation3 + $0x178] sm:$0xff]
        %v1923 = vld [vmem:[#allocation3 + $0x180] sm:$0xff]
        %v1924 = vld [vmem:[#allocation3 + $0x188] sm:$0xff]
        %v1925 = vld [vmem:[#allocation3 + $0x190] sm:$0xff]
        %v1926 = vld [vmem:[#allocation3 + $0x198] sm:$0xff]
        %v1927 = vld [vmem:[#allocation3 + $0x1a0] sm:$0xff]
        %v1928 = vld [vmem:[#allocation3 + $0x1a8] sm:$0xff]
        %v1929 = vld [vmem:[#allocation3 + $0x1b0] sm:$0xff]
        %v1930 = vld [vmem:[#allocation3 + $0x1b8] sm:$0xff]
        %v1931 = vld [vmem:[#allocation3 + $0x1c0] sm:$0xff]
        %v1932 = vld [vmem:[#allocation3 + $0x1c8] sm:$0xff]
        %v1933 = vld [vmem:[#allocation3 + $0x1d0] sm:$0xff]
        %v1934 = vld [vmem:[#allocation3 + $0x1d8] sm:$0xff]
        %v1935 = vld [vmem:[#allocation3 + $0x1e0] sm:$0xff]
        %v1936 = vld [vmem:[#allocation3 + $0x1e8] sm:$0xff]
        %v1937 = vld [vmem:[#allocation3 + $0x1f0] sm:$0xff]
        %v1938 = vld [vmem:[#allocation3 + $0x1f8] sm:$0xff]
        %v1939 = vld [vmem:[#allocation3 + $0x200] sm:$0xff]
        %v1940 = vld [vmem:[#allocation3 + $0x208] sm:$0xff]
        %v1941 = vld [vmem:[#allocation3 + $0x210] sm:$0xff]
        %v1942 = vld [vmem:[#allocation3 + $0x218] sm:$0xff]
        %v1943 = vld [vmem:[#allocation3 + $0x220] sm:$0xff]
        %v1944 = vld [vmem:[#allocation3 + $0x228] sm:$0xff]
        %v1945 = vld [vmem:[#allocation3 + $0x230] sm:$0xff]
        %v1946 = vld [vmem:[#allocation3 + $0x238] sm:$0xff]
        %v1947 = vld [vmem:[#allocation3 + $0x240] sm:$0xff]
        %v1948 = vld [vmem:[#allocation3 + $0x248] sm:$0xff]
        %v1949 = vld [vmem:[#allocation3 + $0x250] sm:$0xff]
        %v1950 = vld [vmem:[#allocation3 + $0x258] sm:$0xff]
        %v1951 = vld [vmem:[#allocation3 + $0x260] sm:$0xff]
        %v1952 = vld [vmem:[#allocation3 + $0x268] sm:$0xff]
        %v1953 = vld [vmem:[#allocation3 + $0x270] sm:$0xff]
        %v1954 = vld [vmem:[#allocation3 + $0x278] sm:$0xff]
        %v1956 = vlaneseq
        %v1957 = vshrl.u32 %v1956, 7
        %v1958 = vsub.s32 0, %v1957
        %v1959 = vrot.slane %v320, %v1958
        %v1960 = vlaneseq
        %v1961 = vshrl.u32 %v1960, 7
        %v1962 = vsub.s32 1, %v1961
        %v1963 = vrot.slane %v320, %v1962
        %v1998 = vunpack.c.l.b16 %v325
        %v1999 = vunpack.c.h.b16 %v325
        %v2000 = vunpack.c.l.b16 %v326
        %v2001 = vunpack.c.h.b16 %v326
        %v2002 = vunpack.c.l.b16 %v327
        %v2003 = vunpack.c.h.b16 %v327
        %v2004 = vunpack.c.l.b16 %v328
        %v2005 = vunpack.c.h.b16 %v328
        %v2006 = vunpack.c.l.b16 %v329
        %v2007 = vunpack.c.h.b16 %v329
        %v2008 = vunpack.c.l.b16 %v330
        %v2009 = vunpack.c.h.b16 %v330
        %v2010 = vunpack.c.l.b16 %v331
        %v2011 = vunpack.c.h.b16 %v331
        %v2012 = vunpack.c.l.b16 %v332
        %v2013 = vunpack.c.h.b16 %v332
        %v2014 = vunpack.c.l.b16 %v333
        %v2015 = vunpack.c.h.b16 %v333
        %v2016 = vunpack.c.l.b16 %v334
        %v2017 = vunpack.c.h.b16 %v334
        %v2018 = vunpack.c.l.b16 %v335
        %v2019 = vunpack.c.h.b16 %v335
        %v2020 = vunpack.c.l.b16 %v336
        %v2021 = vunpack.c.h.b16 %v336
        %v2022 = vunpack.c.l.b16 %v337
        %v2023 = vunpack.c.h.b16 %v337
        %v2024 = vunpack.c.l.b16 %v338
        %v2025 = vunpack.c.h.b16 %v338
        %v2026 = vunpack.c.l.b16 %v339
        %v2027 = vunpack.c.h.b16 %v339
        %v2028 = vunpack.c.l.b16 %v340
        %v2029 = vunpack.c.h.b16 %v340
        %v2030 = vunpack.c.l.b16 %v341
        %v2031 = vunpack.c.h.b16 %v341
        %v2032 = vunpack.c.l.b16 %v342
        %v2033 = vunpack.c.h.b16 %v342
        %v2034 = vunpack.c.l.b16 %v343
        %v2035 = vunpack.c.h.b16 %v343
        %v2036 = vunpack.c.l.b16 %v344
        %v2037 = vunpack.c.h.b16 %v344
        %v2038 = vunpack.c.l.b16 %v345
        %v2039 = vunpack.c.h.b16 %v345
        %v2040 = vunpack.c.l.b16 %v346
        %v2041 = vunpack.c.h.b16 %v346
        %v2042 = vunpack.c.l.b16 %v347
        %v2043 = vunpack.c.h.b16 %v347
        %v2044 = vunpack.c.l.b16 %v348
        %v2045 = vunpack.c.h.b16 %v348
        %v2046 = vunpack.c.l.b16 %v349
        %v2047 = vunpack.c.h.b16 %v349
        %v2048 = vunpack.c.l.b16 %v350
        %v2049 = vunpack.c.h.b16 %v350
        %v2050 = vunpack.c.l.b16 %v351
        %v2051 = vunpack.c.h.b16 %v351
        %v2052 = vunpack.c.l.b16 %v352
        %v2053 = vunpack.c.h.b16 %v352
        %v2054 = vunpack.c.l.b16 %v353
        %v2055 = vunpack.c.h.b16 %v353
        %v2056 = vunpack.c.l.b16 %v354
        %v2057 = vunpack.c.h.b16 %v354
        %v2058 = vunpack.c.l.b16 %v355
        %v2059 = vunpack.c.h.b16 %v355
        %v2060 = vunpack.c.l.b16 %v356
        %v2061 = vunpack.c.h.b16 %v356
        %v2062 = vpack.c.b16 %v2000, %v1998
        %v2063 = vpack.c.b16 %v2001, %v1999
        %v2064 = vpack.c.b16 %v2004, %v2002
        %v2065 = vpack.c.b16 %v2005, %v2003
        %v2066 = vpack.c.b16 %v2008, %v2006
        %v2067 = vpack.c.b16 %v2009, %v2007
        %v2068 = vpack.c.b16 %v2012, %v2010
        %v2069 = vpack.c.b16 %v2013, %v2011
        %v2070 = vpack.c.b16 %v2016, %v2014
        %v2071 = vpack.c.b16 %v2017, %v2015
        %v2072 = vpack.c.b16 %v2020, %v2018
        %v2073 = vpack.c.b16 %v2021, %v2019
        %v2074 = vpack.c.b16 %v2024, %v2022
        %v2075 = vpack.c.b16 %v2025, %v2023
        %v2076 = vpack.c.b16 %v2028, %v2026
        %v2077 = vpack.c.b16 %v2029, %v2027
        %v2078 = vpack.c.b16 %v2032, %v2030
        %v2079 = vpack.c.b16 %v2033, %v2031
        %v2080 = vpack.c.b16 %v2036, %v2034
        %v2081 = vpack.c.b16 %v2037, %v2035
        %v2082 = vpack.c.b16 %v2040, %v2038
        %v2083 = vpack.c.b16 %v2041, %v2039
        %v2084 = vpack.c.b16 %v2044, %v2042
        %v2085 = vpack.c.b16 %v2045, %v2043
        %v2086 = vpack.c.b16 %v2048, %v2046
        %v2087 = vpack.c.b16 %v2049, %v2047
        %v2088 = vpack.c.b16 %v2052, %v2050
        %v2089 = vpack.c.b16 %v2053, %v2051
        %v2090 = vpack.c.b16 %v2056, %v2054
        %v2091 = vpack.c.b16 %v2057, %v2055
        %v2092 = vpack.c.b16 %v2060, %v2058
        %v2093 = vpack.c.b16 %v2061, %v2059
        %2126 = vmatprep.subr.bf16.mxu0 %v2063
        %2127 = vmatpush1.bf16.msra.mxu0 %v2062
        %2128 = vmatprep.subr.bf16.mxu0 %v2065
        %2129 = vmatpush1.bf16.msra.mxu0 %v2064
        %2130 = vmatprep.subr.bf16.mxu0 %v2067
        %2131 = vmatpush1.bf16.msra.mxu0 %v2066
        %2132 = vmatprep.subr.bf16.mxu0 %v2069
        %2133 = vmatpush1.bf16.msra.mxu0 %v2068
        %2134 = vmatprep.subr.bf16.mxu0 %v2071
        %2135 = vmatpush1.bf16.msra.mxu0 %v2070
        %2136 = vmatprep.subr.bf16.mxu0 %v2073
        %2137 = vmatpush1.bf16.msra.mxu0 %v2072
        %2138 = vmatprep.subr.bf16.mxu0 %v2075
        %2139 = vmatpush1.bf16.msra.mxu0 %v2074
        %2140 = vmatprep.subr.bf16.mxu0 %v2077
        %2141 = vmatpush1.bf16.msra.mxu0 %v2076
        %2142 = vmatprep.subr.bf16.mxu0 %v2079
        %2143 = vmatpush1.bf16.msra.mxu0 %v2078
        %2144 = vmatprep.subr.bf16.mxu0 %v2081
        %2145 = vmatpush1.bf16.msra.mxu0 %v2080
        %2146 = vmatprep.subr.bf16.mxu0 %v2083
        %2147 = vmatpush1.bf16.msra.mxu0 %v2082
        %2148 = vmatprep.subr.bf16.mxu0 %v2085
        %2149 = vmatpush1.bf16.msra.mxu0 %v2084
        %2150 = vmatprep.subr.bf16.mxu0 %v2087
        %2151 = vmatpush1.bf16.msra.mxu0 %v2086
        %2152 = vmatprep.subr.bf16.mxu0 %v2089
        %2153 = vmatpush1.bf16.msra.mxu0 %v2088
        %2154 = vmatprep.subr.bf16.mxu0 %v2091
        %2155 = vmatpush1.bf16.msra.mxu0 %v2090
        %2156 = vmatprep.subr.bf16.mxu0 %v2093
        %2157 = vmatpush1.bf16.msra.mxu0 %v2092
        %2158 = vmatprep.mubr.bf16.mxu0 %v1876
        %2159 = vmatmul.mubr.bf16.gmra.mrb[0].mxu0 %v1875
        %v2160 = vpop.f32.mrb[0].mxu0
        %v2161 = vadd.f32 %v1959, %v2160
        %v2162 = vpop.f32.mrb[0].mxu0
        %v2163 = vadd.f32 %v1963, %v2162
        %v2164 = vpop.f32.mrb[0].mxu0
        %v2165 = vadd.f32 %v1959, %v2164
        %v2166 = vpop.f32.mrb[0].mxu0
        %v2167 = vadd.f32 %v1963, %v2166
        %2168 = vmatprep.mubr.bf16.mxu0 %v1878
        %2169 = vmatmul.mubr.bf16.gmra.mrb[0].mxu0 %v1877
        %v2170 = vpop.f32.mrb[0].mxu0
        %v2171 = vadd.f32 %v1959, %v2170
        %v2172 = vpop.f32.mrb[0].mxu0
        %v2173 = vadd.f32 %v1963, %v2172
        %v2174 = vpop.f32.mrb[0].mxu0
        %v2175 = vadd.f32 %v1959, %v2174
        %v2176 = vpop.f32.mrb[0].mxu0
        %v2177 = vadd.f32 %v1963, %v2176
        %2178 = vmatprep.mubr.bf16.mxu0 %v1880
        %2179 = vmatmul.mubr.bf16.gmra.mrb[0].mxu0 %v1879
        %v2180 = vpop.f32.mrb[0].mxu0
        %v2181 = vadd.f32 %v1959, %v2180
        %v2182 = vpop.f32.mrb[0].mxu0
        %v2183 = vadd.f32 %v1963, %v2182
        %v2184 = vpop.f32.mrb[0].mxu0
        %v2185 = vadd.f32 %v1959, %v2184
        %v2186 = vpop.f32.mrb[0].mxu0
        %v2187 = vadd.f32 %v1963, %v2186
        %2188 = vmatprep.mubr.bf16.mxu0 %v1882
        %2189 = vmatmul.mubr.bf16.gmra.mrb[0].mxu0 %v1881
        %v2190 = vpop.f32.mrb[0].mxu0
        %v2191 = vadd.f32 %v1959, %v2190
        %v2192 = vpop.f32.mrb[0].mxu0
        %v2193 = vadd.f32 %v1963, %v2192
        %v2194 = vpop.f32.mrb[0].mxu0
        %v2195 = vadd.f32 %v1959, %v2194
        %v2196 = vpop.f32.mrb[0].mxu0
        %v2197 = vadd.f32 %v1963, %v2196
        %2198 = vmatprep.mubr.bf16.mxu0 %v1884
        %2199 = vmatmul.mubr.bf16.gmra.mrb[0].mxu0 %v1883
        %v2200 = vpop.f32.mrb[0].mxu0
        %v2201 = vadd.f32 %v1959, %v2200
        %v2202 = vpop.f32.mrb[0].mxu0
        %v2203 = vadd.f32 %v1963, %v2202
        %v2204 = vpop.f32.mrb[0].mxu0
        %v2205 = vadd.f32 %v1959, %v2204
        %v2206 = vpop.f32.mrb[0].mxu0
        %v2207 = vadd.f32 %v1963, %v2206
        %2208 = vmatprep.mubr.bf16.mxu0 %v1886
        %2209 = vmatmul.mubr.bf16.gmra.mrb[0].mxu0 %v1885
        %v2210 = vpop.f32.mrb[0].mxu0
        %v2211 = vadd.f32 %v1959, %v2210
        %v2212 = vpop.f32.mrb[0].mxu0
        %v2213 = vadd.f32 %v1963, %v2212
        %v2214 = vpop.f32.mrb[0].mxu0
        %v2215 = vadd.f32 %v1959, %v2214
        %v2216 = vpop.f32.mrb[0].mxu0
        %v2217 = vadd.f32 %v1963, %v2216
        %2218 = vmatprep.mubr.bf16.mxu0 %v1888
        %2219 = vmatmul.mubr.bf16.gmra.mrb[0].mxu0 %v1887
        %v2220 = vpop.f32.mrb[0].mxu0
        %v2221 = vadd.f32 %v1959, %v2220
        %v2222 = vpop.f32.mrb[0].mxu0
        %v2223 = vadd.f32 %v1963, %v2222
        %v2224 = vpop.f32.mrb[0].mxu0
        %v2225 = vadd.f32 %v1959, %v2224
        %v2226 = vpop.f32.mrb[0].mxu0
        %v2227 = vadd.f32 %v1963, %v2226
        %2228 = vmatprep.mubr.bf16.mxu0 %v1890
        %2229 = vmatmul.mubr.bf16.gmra.mrb[0].mxu0 %v1889
        %v2230 = vpop.f32.mrb[0].mxu0
        %v2231 = vadd.f32 %v1959, %v2230
        %v2232 = vpop.f32.mrb[0].mxu0
        %v2233 = vadd.f32 %v1963, %v2232
        %v2234 = vpop.f32.mrb[0].mxu0
        %v2235 = vadd.f32 %v1959, %v2234
        %v2236 = vpop.f32.mrb[0].mxu0
        %v2237 = vadd.f32 %v1963, %v2236
        %2238 = vmatprep.mubr.bf16.mxu0 %v1892
        %2239 = vmatmul.mubr.bf16.gmra.mrb[0].mxu0 %v1891
        %v2240 = vpop.f32.mrb[0].mxu0
        %v2241 = vadd.f32 %v1959, %v2240
        %v2242 = vpop.f32.mrb[0].mxu0
        %v2243 = vadd.f32 %v1963, %v2242
        %v2244 = vpop.f32.mrb[0].mxu0
        %v2245 = vadd.f32 %v1959, %v2244
        %v2246 = vpop.f32.mrb[0].mxu0
        %v2247 = vadd.f32 %v1963, %v2246
        %2248 = vmatprep.mubr.bf16.mxu0 %v1894
        %2249 = vmatmul.mubr.bf16.gmra.mrb[0].mxu0 %v1893
        %v2250 = vpop.f32.mrb[0].mxu0
        %v2251 = vadd.f32 %v1959, %v2250
        %v2252 = vpop.f32.mrb[0].mxu0
        %v2253 = vadd.f32 %v1963, %v2252
        %v2254 = vpop.f32.mrb[0].mxu0
        %v2255 = vadd.f32 %v1959, %v2254
        %v2256 = vpop.f32.mrb[0].mxu0
        %v2257 = vadd.f32 %v1963, %v2256
        %2258 = vmatprep.mubr.bf16.mxu0 %v1896
        %2259 = vmatmul.mubr.bf16.gmra.mrb[0].mxu0 %v1895
        %v2260 = vpop.f32.mrb[0].mxu0
        %v2261 = vadd.f32 %v1959, %v2260
        %v2262 = vpop.f32.mrb[0].mxu0
        %v2263 = vadd.f32 %v1963, %v2262
        %v2264 = vpop.f32.mrb[0].mxu0
        %v2265 = vadd.f32 %v1959, %v2264
        %v2266 = vpop.f32.mrb[0].mxu0
        %v2267 = vadd.f32 %v1963, %v2266
        %2268 = vmatprep.mubr.bf16.mxu0 %v1898
        %2269 = vmatmul.mubr.bf16.gmra.mrb[0].mxu0 %v1897
        %v2270 = vpop.f32.mrb[0].mxu0
        %v2271 = vadd.f32 %v1959, %v2270
        %v2272 = vpop.f32.mrb[0].mxu0
        %v2273 = vadd.f32 %v1963, %v2272
        %v2274 = vpop.f32.mrb[0].mxu0
        %v2275 = vadd.f32 %v1959, %v2274
        %v2276 = vpop.f32.mrb[0].mxu0
        %v2277 = vadd.f32 %v1963, %v2276
        %2278 = vmatprep.mubr.bf16.mxu0 %v1900
        %2279 = vmatmul.mubr.bf16.gmra.mrb[0].mxu0 %v1899
        %v2280 = vpop.f32.mrb[0].mxu0
        %v2281 = vadd.f32 %v1959, %v2280
        %v2282 = vpop.f32.mrb[0].mxu0
        %v2283 = vadd.f32 %v1963, %v2282
        %v2284 = vpop.f32.mrb[0].mxu0
        %v2285 = vadd.f32 %v1959, %v2284
        %v2286 = vpop.f32.mrb[0].mxu0
        %v2287 = vadd.f32 %v1963, %v2286
        %2288 = vmatprep.mubr.bf16.mxu0 %v1902
        %2289 = vmatmul.mubr.bf16.gmra.mrb[0].mxu0 %v1901
        %v2290 = vpop.f32.mrb[0].mxu0
        %v2291 = vadd.f32 %v1959, %v2290
        %v2292 = vpop.f32.mrb[0].mxu0
        %v2293 = vadd.f32 %v1963, %v2292
        %v2294 = vpop.f32.mrb[0].mxu0
        %v2295 = vadd.f32 %v1959, %v2294
        %v2296 = vpop.f32.mrb[0].mxu0
        %v2297 = vadd.f32 %v1963, %v2296
        %2298 = vmatprep.mubr.bf16.mxu0 %v1904
        %2299 = vmatmul.mubr.bf16.gmra.mrb[0].mxu0 %v1903
        %v2300 = vpop.f32.mrb[0].mxu0
        %v2301 = vadd.f32 %v1959, %v2300
        %v2302 = vpop.f32.mrb[0].mxu0
        %v2303 = vadd.f32 %v1963, %v2302
        %v2304 = vpop.f32.mrb[0].mxu0
        %v2305 = vadd.f32 %v1959, %v2304
        %v2306 = vpop.f32.mrb[0].mxu0
        %v2307 = vadd.f32 %v1963, %v2306
        %2308 = vmatprep.mubr.bf16.mxu0 %v1906
        %2309 = vmatmul.mubr.bf16.gmra.mrb[0].mxu0 %v1905
        %v2310 = vpop.f32.mrb[0].mxu0
        %v2311 = vadd.f32 %v1959, %v2310
        %v2312 = vpop.f32.mrb[0].mxu0
        %v2313 = vadd.f32 %v1963, %v2312
        %v2314 = vpop.f32.mrb[0].mxu0
        %v2315 = vadd.f32 %v1959, %v2314
        %v2316 = vpop.f32.mrb[0].mxu0
        %v2317 = vadd.f32 %v1963, %v2316
        %2318 = vmatprep.mubr.bf16.mxu0 %v1908
        %2319 = vmatmul.mubr.bf16.gmra.mrb[0].mxu0 %v1907
        %v2320 = vpop.f32.mrb[0].mxu0
        %v2321 = vadd.f32 %v1959, %v2320
        %v2322 = vpop.f32.mrb[0].mxu0
        %v2323 = vadd.f32 %v1963, %v2322
        %v2324 = vpop.f32.mrb[0].mxu0
        %v2325 = vadd.f32 %v1959, %v2324
        %v2326 = vpop.f32.mrb[0].mxu0
        %v2327 = vadd.f32 %v1963, %v2326
        %2328 = vmatprep.mubr.bf16.mxu0 %v1910
        %2329 = vmatmul.mubr.bf16.gmra.mrb[0].mxu0 %v1909
        %v2330 = vpop.f32.mrb[0].mxu0
        %v2331 = vadd.f32 %v1959, %v2330
        %v2332 = vpop.f32.mrb[0].mxu0
        %v2333 = vadd.f32 %v1963, %v2332
        %v2334 = vpop.f32.mrb[0].mxu0
        %v2335 = vadd.f32 %v1959, %v2334
        %v2336 = vpop.f32.mrb[0].mxu0
        %v2337 = vadd.f32 %v1963, %v2336
        %2338 = vmatprep.mubr.bf16.mxu0 %v1912
        %2339 = vmatmul.mubr.bf16.gmra.mrb[0].mxu0 %v1911
        %v2340 = vpop.f32.mrb[0].mxu0
        %v2341 = vadd.f32 %v1959, %v2340
        %v2342 = vpop.f32.mrb[0].mxu0
        %v2343 = vadd.f32 %v1963, %v2342
        %v2344 = vpop.f32.mrb[0].mxu0
        %v2345 = vadd.f32 %v1959, %v2344
        %v2346 = vpop.f32.mrb[0].mxu0
        %v2347 = vadd.f32 %v1963, %v2346
        %2348 = vmatprep.mubr.bf16.mxu0 %v1914
        %2349 = vmatmul.mubr.bf16.gmra.mrb[0].mxu0 %v1913
        %v2350 = vpop.f32.mrb[0].mxu0
        %v2351 = vadd.f32 %v1959, %v2350
        %v2352 = vpop.f32.mrb[0].mxu0
        %v2353 = vadd.f32 %v1963, %v2352
        %v2354 = vpop.f32.mrb[0].mxu0
        %v2355 = vadd.f32 %v1959, %v2354
        %v2356 = vpop.f32.mrb[0].mxu0
        %v2357 = vadd.f32 %v1963, %v2356
        %2358 = vmatprep.mubr.bf16.mxu0 %v1916
        %2359 = vmatmul.mubr.bf16.gmra.mrb[0].mxu0 %v1915
        %v2360 = vpop.f32.mrb[0].mxu0
        %v2361 = vadd.f32 %v1959, %v2360
        %v2362 = vpop.f32.mrb[0].mxu0
        %v2363 = vadd.f32 %v1963, %v2362
        %v2364 = vpop.f32.mrb[0].mxu0
        %v2365 = vadd.f32 %v1959, %v2364
        %v2366 = vpop.f32.mrb[0].mxu0
        %v2367 = vadd.f32 %v1963, %v2366
        %2368 = vmatprep.mubr.bf16.mxu0 %v1918
        %2369 = vmatmul.mubr.bf16.gmra.mrb[0].mxu0 %v1917
        %v2370 = vpop.f32.mrb[0].mxu0
        %v2371 = vadd.f32 %v1959, %v2370
        %v2372 = vpop.f32.mrb[0].mxu0
        %v2373 = vadd.f32 %v1963, %v2372
        %v2374 = vpop.f32.mrb[0].mxu0
        %v2375 = vadd.f32 %v1959, %v2374
        %v2376 = vpop.f32.mrb[0].mxu0
        %v2377 = vadd.f32 %v1963, %v2376
        %2378 = vmatprep.mubr.bf16.mxu0 %v1920
        %2379 = vmatmul.mubr.bf16.gmra.mrb[0].mxu0 %v1919
        %v2380 = vpop.f32.mrb[0].mxu0
        %v2381 = vadd.f32 %v1959, %v2380
        %v2382 = vpop.f32.mrb[0].mxu0
        %v2383 = vadd.f32 %v1963, %v2382
        %v2384 = vpop.f32.mrb[0].mxu0
        %v2385 = vadd.f32 %v1959, %v2384
        %v2386 = vpop.f32.mrb[0].mxu0
        %v2387 = vadd.f32 %v1963, %v2386
        %2388 = vmatprep.mubr.bf16.mxu0 %v1922
        %2389 = vmatmul.mubr.bf16.gmra.mrb[0].mxu0 %v1921
        %v2390 = vpop.f32.mrb[0].mxu0
        %v2391 = vadd.f32 %v1959, %v2390
        %v2392 = vpop.f32.mrb[0].mxu0
        %v2393 = vadd.f32 %v1963, %v2392
        %v2394 = vpop.f32.mrb[0].mxu0
        %v2395 = vadd.f32 %v1959, %v2394
        %v2396 = vpop.f32.mrb[0].mxu0
        %v2397 = vadd.f32 %v1963, %v2396
        %2398 = vmatprep.mubr.bf16.mxu0 %v1924
        %2399 = vmatmul.mubr.bf16.gmra.mrb[0].mxu0 %v1923
        %v2400 = vpop.f32.mrb[0].mxu0
        %v2401 = vadd.f32 %v1959, %v2400
        %v2402 = vpop.f32.mrb[0].mxu0
        %v2403 = vadd.f32 %v1963, %v2402
        %v2404 = vpop.f32.mrb[0].mxu0
        %v2405 = vadd.f32 %v1959, %v2404
        %v2406 = vpop.f32.mrb[0].mxu0
        %v2407 = vadd.f32 %v1963, %v2406
        %2408 = vmatprep.mubr.bf16.mxu0 %v1926
        %2409 = vmatmul.mubr.bf16.gmra.mrb[0].mxu0 %v1925
        %v2410 = vpop.f32.mrb[0].mxu0
        %v2411 = vadd.f32 %v1959, %v2410
        %v2412 = vpop.f32.mrb[0].mxu0
        %v2413 = vadd.f32 %v1963, %v2412
        %v2414 = vpop.f32.mrb[0].mxu0
        %v2415 = vadd.f32 %v1959, %v2414
        %v2416 = vpop.f32.mrb[0].mxu0
        %v2417 = vadd.f32 %v1963, %v2416
        %2418 = vmatprep.mubr.bf16.mxu0 %v1928
        %2419 = vmatmul.mubr.bf16.gmra.mrb[0].mxu0 %v1927
        %v2420 = vpop.f32.mrb[0].mxu0
        %v2421 = vadd.f32 %v1959, %v2420
        %v2422 = vpop.f32.mrb[0].mxu0
        %v2423 = vadd.f32 %v1963, %v2422
        %v2424 = vpop.f32.mrb[0].mxu0
        %v2425 = vadd.f32 %v1959, %v2424
        %v2426 = vpop.f32.mrb[0].mxu0
        %v2427 = vadd.f32 %v1963, %v2426
        %2428 = vmatprep.mubr.bf16.mxu0 %v1930
        %2429 = vmatmul.mubr.bf16.gmra.mrb[0].mxu0 %v1929
        %v2430 = vpop.f32.mrb[0].mxu0
        %v2431 = vadd.f32 %v1959, %v2430
        %v2432 = vpop.f32.mrb[0].mxu0
        %v2433 = vadd.f32 %v1963, %v2432
        %v2434 = vpop.f32.mrb[0].mxu0
        %v2435 = vadd.f32 %v1959, %v2434
        %v2436 = vpop.f32.mrb[0].mxu0
        %v2437 = vadd.f32 %v1963, %v2436
        %2438 = vmatprep.mubr.bf16.mxu0 %v1932
        %2439 = vmatmul.mubr.bf16.gmra.mrb[0].mxu0 %v1931
        %v2440 = vpop.f32.mrb[0].mxu0
        %v2441 = vadd.f32 %v1959, %v2440
        %v2442 = vpop.f32.mrb[0].mxu0
        %v2443 = vadd.f32 %v1963, %v2442
        %v2444 = vpop.f32.mrb[0].mxu0
        %v2445 = vadd.f32 %v1959, %v2444
        %v2446 = vpop.f32.mrb[0].mxu0
        %v2447 = vadd.f32 %v1963, %v2446
        %2448 = vmatprep.mubr.bf16.mxu0 %v1934
        %2449 = vmatmul.mubr.bf16.gmra.mrb[0].mxu0 %v1933
        %v2450 = vpop.f32.mrb[0].mxu0
        %v2451 = vadd.f32 %v1959, %v2450
        %v2452 = vpop.f32.mrb[0].mxu0
        %v2453 = vadd.f32 %v1963, %v2452
        %v2454 = vpop.f32.mrb[0].mxu0
        %v2455 = vadd.f32 %v1959, %v2454
        %v2456 = vpop.f32.mrb[0].mxu0
        %v2457 = vadd.f32 %v1963, %v2456
        %2458 = vmatprep.mubr.bf16.mxu0 %v1936
        %2459 = vmatmul.mubr.bf16.gmra.mrb[0].mxu0 %v1935
        %v2460 = vpop.f32.mrb[0].mxu0
        %v2461 = vadd.f32 %v1959, %v2460
        %v2462 = vpop.f32.mrb[0].mxu0
        %v2463 = vadd.f32 %v1963, %v2462
        %v2464 = vpop.f32.mrb[0].mxu0
        %v2465 = vadd.f32 %v1959, %v2464
        %v2466 = vpop.f32.mrb[0].mxu0
        %v2467 = vadd.f32 %v1963, %v2466
        %2468 = vmatprep.mubr.bf16.mxu0 %v1938
        %2469 = vmatmul.mubr.bf16.gmra.mrb[0].mxu0 %v1937
        %v2470 = vpop.f32.mrb[0].mxu0
        %v2471 = vadd.f32 %v1959, %v2470
        %v2472 = vpop.f32.mrb[0].mxu0
        %v2473 = vadd.f32 %v1963, %v2472
        %v2474 = vpop.f32.mrb[0].mxu0
        %v2475 = vadd.f32 %v1959, %v2474
        %v2476 = vpop.f32.mrb[0].mxu0
        %v2477 = vadd.f32 %v1963, %v2476
        %2478 = vmatprep.mubr.bf16.mxu0 %v1940
        %2479 = vmatmul.mubr.bf16.gmra.mrb[0].mxu0 %v1939
        %v2480 = vpop.f32.mrb[0].mxu0
        %v2481 = vadd.f32 %v1959, %v2480
        %v2482 = vpop.f32.mrb[0].mxu0
        %v2483 = vadd.f32 %v1963, %v2482
        %v2484 = vpop.f32.mrb[0].mxu0
        %v2485 = vadd.f32 %v1959, %v2484
        %v2486 = vpop.f32.mrb[0].mxu0
        %v2487 = vadd.f32 %v1963, %v2486
        %2488 = vmatprep.mubr.bf16.mxu0 %v1942
        %2489 = vmatmul.mubr.bf16.gmra.mrb[0].mxu0 %v1941
        %v2490 = vpop.f32.mrb[0].mxu0
        %v2491 = vadd.f32 %v1959, %v2490
        %v2492 = vpop.f32.mrb[0].mxu0
        %v2493 = vadd.f32 %v1963, %v2492
        %v2494 = vpop.f32.mrb[0].mxu0
        %v2495 = vadd.f32 %v1959, %v2494
        %v2496 = vpop.f32.mrb[0].mxu0
        %v2497 = vadd.f32 %v1963, %v2496
        %2498 = vmatprep.mubr.bf16.mxu0 %v1944
        %2499 = vmatmul.mubr.bf16.gmra.mrb[0].mxu0 %v1943
        %v2500 = vpop.f32.mrb[0].mxu0
        %v2501 = vadd.f32 %v1959, %v2500
        %v2502 = vpop.f32.mrb[0].mxu0
        %v2503 = vadd.f32 %v1963, %v2502
        %v2504 = vpop.f32.mrb[0].mxu0
        %v2505 = vadd.f32 %v1959, %v2504
        %v2506 = vpop.f32.mrb[0].mxu0
        %v2507 = vadd.f32 %v1963, %v2506
        %2508 = vmatprep.mubr.bf16.mxu0 %v1946
        %2509 = vmatmul.mubr.bf16.gmra.mrb[0].mxu0 %v1945
        %v2510 = vpop.f32.mrb[0].mxu0
        %v2511 = vadd.f32 %v1959, %v2510
        %v2512 = vpop.f32.mrb[0].mxu0
        %v2513 = vadd.f32 %v1963, %v2512
        %v2514 = vpop.f32.mrb[0].mxu0
        %v2515 = vadd.f32 %v1959, %v2514
        %v2516 = vpop.f32.mrb[0].mxu0
        %v2517 = vadd.f32 %v1963, %v2516
        %2518 = vmatprep.mubr.bf16.mxu0 %v1948
        %2519 = vmatmul.mubr.bf16.gmra.mrb[0].mxu0 %v1947
        %v2520 = vpop.f32.mrb[0].mxu0
        %v2521 = vadd.f32 %v1959, %v2520
        %v2522 = vpop.f32.mrb[0].mxu0
        %v2523 = vadd.f32 %v1963, %v2522
        %v2524 = vpop.f32.mrb[0].mxu0
        %v2525 = vadd.f32 %v1959, %v2524
        %v2526 = vpop.f32.mrb[0].mxu0
        %v2527 = vadd.f32 %v1963, %v2526
        %2528 = vmatprep.mubr.bf16.mxu0 %v1950
        %2529 = vmatmul.mubr.bf16.gmra.mrb[0].mxu0 %v1949
        %v2530 = vpop.f32.mrb[0].mxu0
        %v2531 = vadd.f32 %v1959, %v2530
        %v2532 = vpop.f32.mrb[0].mxu0
        %v2533 = vadd.f32 %v1963, %v2532
        %v2534 = vpop.f32.mrb[0].mxu0
        %v2535 = vadd.f32 %v1959, %v2534
        %v2536 = vpop.f32.mrb[0].mxu0
        %v2537 = vadd.f32 %v1963, %v2536
        %2538 = vmatprep.mubr.bf16.mxu0 %v1952
        %2539 = vmatmul.mubr.bf16.gmra.mrb[0].mxu0 %v1951
        %v2540 = vpop.f32.mrb[0].mxu0
        %v2541 = vadd.f32 %v1959, %v2540
        %v2542 = vpop.f32.mrb[0].mxu0
        %v2543 = vadd.f32 %v1963, %v2542
        %v2544 = vpop.f32.mrb[0].mxu0
        %v2545 = vadd.f32 %v1959, %v2544
        %v2546 = vpop.f32.mrb[0].mxu0
        %v2547 = vadd.f32 %v1963, %v2546
        %2548 = vmatprep.mubr.bf16.mxu0 %v1954
        %2549 = vmatmul.mubr.bf16.gmra.mrb[0].mxu0 %v1953
        %v2550 = vpop.f32.mrb[0].mxu0
        %v2551 = vadd.f32 %v1959, %v2550
        %v2552 = vpop.f32.mrb[0].mxu0
        %v2553 = vadd.f32 %v1963, %v2552
        %v2554 = vpop.f32.mrb[0].mxu0
        %v2555 = vadd.f32 %v1959, %v2554
        %v2556 = vpop.f32.mrb[0].mxu0
        %v2557 = vadd.f32 %v1963, %v2556
        %2558 = vdwg.mxu0
        %v2559 = vmax.f32 %v2161, 0.0
        %v2560 = vmax.f32 %v2163, 0.0
        %v2561 = vmax.f32 %v2165, 0.0
        %v2562 = vmax.f32 %v2167, 0.0
        %v2563 = vmax.f32 %v2171, 0.0
        %v2564 = vmax.f32 %v2173, 0.0
        %v2565 = vmax.f32 %v2175, 0.0
        %v2566 = vmax.f32 %v2177, 0.0
        %v2567 = vmax.f32 %v2181, 0.0
        %v2568 = vmax.f32 %v2183, 0.0
        %v2569 = vmax.f32 %v2185, 0.0
        %v2570 = vmax.f32 %v2187, 0.0
        %v2571 = vmax.f32 %v2191, 0.0
        %v2572 = vmax.f32 %v2193, 0.0
        %v2573 = vmax.f32 %v2195, 0.0
        %v2574 = vmax.f32 %v2197, 0.0
        %v2575 = vmax.f32 %v2201, 0.0
        %v2576 = vmax.f32 %v2203, 0.0
        %v2577 = vmax.f32 %v2205, 0.0
        %v2578 = vmax.f32 %v2207, 0.0
        %v2579 = vmax.f32 %v2211, 0.0
        %v2580 = vmax.f32 %v2213, 0.0
        %v2581 = vmax.f32 %v2215, 0.0
        %v2582 = vmax.f32 %v2217, 0.0
        %v2583 = vmax.f32 %v2221, 0.0
        %v2584 = vmax.f32 %v2223, 0.0
        %v2585 = vmax.f32 %v2225, 0.0
        %v2586 = vmax.f32 %v2227, 0.0
        %v2587 = vmax.f32 %v2231, 0.0
        %v2588 = vmax.f32 %v2233, 0.0
        %v2589 = vmax.f32 %v2235, 0.0
        %v2590 = vmax.f32 %v2237, 0.0
        %v2591 = vmax.f32 %v2241, 0.0
        %v2592 = vmax.f32 %v2243, 0.0
        %v2593 = vmax.f32 %v2245, 0.0
        %v2594 = vmax.f32 %v2247, 0.0
        %v2595 = vmax.f32 %v2251, 0.0
        %v2596 = vmax.f32 %v2253, 0.0
        %v2597 = vmax.f32 %v2255, 0.0
        %v2598 = vmax.f32 %v2257, 0.0
        %v2599 = vmax.f32 %v2261, 0.0
        %v2600 = vmax.f32 %v2263, 0.0
        %v2601 = vmax.f32 %v2265, 0.0
        %v2602 = vmax.f32 %v2267, 0.0
        %v2603 = vmax.f32 %v2271, 0.0
        %v2604 = vmax.f32 %v2273, 0.0
        %v2605 = vmax.f32 %v2275, 0.0
        %v2606 = vmax.f32 %v2277, 0.0
        %v2607 = vmax.f32 %v2281, 0.0
        %v2608 = vmax.f32 %v2283, 0.0
        %v2609 = vmax.f32 %v2285, 0.0
        %v2610 = vmax.f32 %v2287, 0.0
        %v2611 = vmax.f32 %v2291, 0.0
        %v2612 = vmax.f32 %v2293, 0.0
        %v2613 = vmax.f32 %v2295, 0.0
        %v2614 = vmax.f32 %v2297, 0.0
        %v2615 = vmax.f32 %v2301, 0.0
        %v2616 = vmax.f32 %v2303, 0.0
        %v2617 = vmax.f32 %v2305, 0.0
        %v2618 = vmax.f32 %v2307, 0.0
        %v2619 = vmax.f32 %v2311, 0.0
        %v2620 = vmax.f32 %v2313, 0.0
        %v2621 = vmax.f32 %v2315, 0.0
        %v2622 = vmax.f32 %v2317, 0.0
        %v2623 = vmax.f32 %v2321, 0.0
        %v2624 = vmax.f32 %v2323, 0.0
        %v2625 = vmax.f32 %v2325, 0.0
        %v2626 = vmax.f32 %v2327, 0.0
        %v2627 = vmax.f32 %v2331, 0.0
        %v2628 = vmax.f32 %v2333, 0.0
        %v2629 = vmax.f32 %v2335, 0.0
        %v2630 = vmax.f32 %v2337, 0.0
        %v2631 = vmax.f32 %v2341, 0.0
        %v2632 = vmax.f32 %v2343, 0.0
        %v2633 = vmax.f32 %v2345, 0.0
        %v2634 = vmax.f32 %v2347, 0.0
        %v2635 = vmax.f32 %v2351, 0.0
        %v2636 = vmax.f32 %v2353, 0.0
        %v2637 = vmax.f32 %v2355, 0.0
        %v2638 = vmax.f32 %v2357, 0.0
        %v2639 = vmax.f32 %v2361, 0.0
        %v2640 = vmax.f32 %v2363, 0.0
        %v2641 = vmax.f32 %v2365, 0.0
        %v2642 = vmax.f32 %v2367, 0.0
        %v2643 = vmax.f32 %v2371, 0.0
        %v2644 = vmax.f32 %v2373, 0.0
        %v2645 = vmax.f32 %v2375, 0.0
        %v2646 = vmax.f32 %v2377, 0.0
        %v2647 = vmax.f32 %v2381, 0.0
        %v2648 = vmax.f32 %v2383, 0.0
        %v2649 = vmax.f32 %v2385, 0.0
        %v2650 = vmax.f32 %v2387, 0.0
        %v2651 = vmax.f32 %v2391, 0.0
        %v2652 = vmax.f32 %v2393, 0.0
        %v2653 = vmax.f32 %v2395, 0.0
        %v2654 = vmax.f32 %v2397, 0.0
        %v2655 = vmax.f32 %v2401, 0.0
        %v2656 = vmax.f32 %v2403, 0.0
        %v2657 = vmax.f32 %v2405, 0.0
        %v2658 = vmax.f32 %v2407, 0.0
        %v2659 = vmax.f32 %v2411, 0.0
        %v2660 = vmax.f32 %v2413, 0.0
        %v2661 = vmax.f32 %v2415, 0.0
        %v2662 = vmax.f32 %v2417, 0.0
        %v2663 = vmax.f32 %v2421, 0.0
        %v2664 = vmax.f32 %v2423, 0.0
        %v2665 = vmax.f32 %v2425, 0.0
        %v2666 = vmax.f32 %v2427, 0.0
        %v2667 = vmax.f32 %v2431, 0.0
        %v2668 = vmax.f32 %v2433, 0.0
        %v2669 = vmax.f32 %v2435, 0.0
        %v2670 = vmax.f32 %v2437, 0.0
        %v2671 = vmax.f32 %v2441, 0.0
        %v2672 = vmax.f32 %v2443, 0.0
        %v2673 = vmax.f32 %v2445, 0.0
        %v2674 = vmax.f32 %v2447, 0.0
        %v2675 = vmax.f32 %v2451, 0.0
        %v2676 = vmax.f32 %v2453, 0.0
        %v2677 = vmax.f32 %v2455, 0.0
        %v2678 = vmax.f32 %v2457, 0.0
        %v2679 = vmax.f32 %v2461, 0.0
        %v2680 = vmax.f32 %v2463, 0.0
        %v2681 = vmax.f32 %v2465, 0.0
        %v2682 = vmax.f32 %v2467, 0.0
        %v2683 = vmax.f32 %v2471, 0.0
        %v2684 = vmax.f32 %v2473, 0.0
        %v2685 = vmax.f32 %v2475, 0.0
        %v2686 = vmax.f32 %v2477, 0.0
        %v2687 = vmax.f32 %v2481, 0.0
        %v2688 = vmax.f32 %v2483, 0.0
        %v2689 = vmax.f32 %v2485, 0.0
        %v2690 = vmax.f32 %v2487, 0.0
        %v2691 = vmax.f32 %v2491, 0.0
        %v2692 = vmax.f32 %v2493, 0.0
        %v2693 = vmax.f32 %v2495, 0.0
        %v2694 = vmax.f32 %v2497, 0.0
        %v2695 = vmax.f32 %v2501, 0.0
        %v2696 = vmax.f32 %v2503, 0.0
        %v2697 = vmax.f32 %v2505, 0.0
        %v2698 = vmax.f32 %v2507, 0.0
        %v2699 = vmax.f32 %v2511, 0.0
        %v2700 = vmax.f32 %v2513, 0.0
        %v2701 = vmax.f32 %v2515, 0.0
        %v2702 = vmax.f32 %v2517, 0.0
        %v2703 = vmax.f32 %v2521, 0.0
        %v2704 = vmax.f32 %v2523, 0.0
        %v2705 = vmax.f32 %v2525, 0.0
        %v2706 = vmax.f32 %v2527, 0.0
        %v2707 = vmax.f32 %v2531, 0.0
        %v2708 = vmax.f32 %v2533, 0.0
        %v2709 = vmax.f32 %v2535, 0.0
        %v2710 = vmax.f32 %v2537, 0.0
        %v2711 = vmax.f32 %v2541, 0.0
        %v2712 = vmax.f32 %v2543, 0.0
        %v2713 = vmax.f32 %v2545, 0.0
        %v2714 = vmax.f32 %v2547, 0.0
        %v2715 = vmax.f32 %v2551, 0.0
        %v2716 = vmax.f32 %v2553, 0.0
        %v2717 = vmax.f32 %v2555, 0.0
        %v2718 = vmax.f32 %v2557, 0.0
        %v2719 = vpack.c.bf16 %v2561, %v2559
        %v2720 = vpack.c.bf16 %v2562, %v2560
        %v2721 = vpack.c.bf16 %v2565, %v2563
        %v2722 = vpack.c.bf16 %v2566, %v2564
        %v2723 = vpack.c.bf16 %v2569, %v2567
        %v2724 = vpack.c.bf16 %v2570, %v2568
        %v2725 = vpack.c.bf16 %v2573, %v2571
        %v2726 = vpack.c.bf16 %v2574, %v2572
        %v2727 = vpack.c.bf16 %v2577, %v2575
        %v2728 = vpack.c.bf16 %v2578, %v2576
        %v2729 = vpack.c.bf16 %v2581, %v2579
        %v2730 = vpack.c.bf16 %v2582, %v2580
        %v2731 = vpack.c.bf16 %v2585, %v2583
        %v2732 = vpack.c.bf16 %v2586, %v2584
        %v2733 = vpack.c.bf16 %v2589, %v2587
        %v2734 = vpack.c.bf16 %v2590, %v2588
        %v2735 = vpack.c.bf16 %v2593, %v2591
        %v2736 = vpack.c.bf16 %v2594, %v2592
        %v2737 = vpack.c.bf16 %v2597, %v2595
        %v2738 = vpack.c.bf16 %v2598, %v2596
        %v2739 = vpack.c.bf16 %v2601, %v2599
        %v2740 = vpack.c.bf16 %v2602, %v2600
        %v2741 = vpack.c.bf16 %v2605, %v2603
        %v2742 = vpack.c.bf16 %v2606, %v2604
        %v2743 = vpack.c.bf16 %v2609, %v2607
        %v2744 = vpack.c.bf16 %v2610, %v2608
        %v2745 = vpack.c.bf16 %v2613, %v2611
        %v2746 = vpack.c.bf16 %v2614, %v2612
        %v2747 = vpack.c.bf16 %v2617, %v2615
        %v2748 = vpack.c.bf16 %v2618, %v2616
        %v2749 = vpack.c.bf16 %v2621, %v2619
        %v2750 = vpack.c.bf16 %v2622, %v2620
        %v2751 = vpack.c.bf16 %v2625, %v2623
        %v2752 = vpack.c.bf16 %v2626, %v2624
        %v2753 = vpack.c.bf16 %v2629, %v2627
        %v2754 = vpack.c.bf16 %v2630, %v2628
        %v2755 = vpack.c.bf16 %v2633, %v2631
        %v2756 = vpack.c.bf16 %v2634, %v2632
        %v2757 = vpack.c.bf16 %v2637, %v2635
        %v2758 = vpack.c.bf16 %v2638, %v2636
        %v2759 = vpack.c.bf16 %v2641, %v2639
        %v2760 = vpack.c.bf16 %v2642, %v2640
        %v2761 = vpack.c.bf16 %v2645, %v2643
        %v2762 = vpack.c.bf16 %v2646, %v2644
        %v2763 = vpack.c.bf16 %v2649, %v2647
        %v2764 = vpack.c.bf16 %v2650, %v2648
        %v2765 = vpack.c.bf16 %v2653, %v2651
        %v2766 = vpack.c.bf16 %v2654, %v2652
        %v2767 = vpack.c.bf16 %v2657, %v2655
        %v2768 = vpack.c.bf16 %v2658, %v2656
        %v2769 = vpack.c.bf16 %v2661, %v2659
        %v2770 = vpack.c.bf16 %v2662, %v2660
        %v2771 = vpack.c.bf16 %v2665, %v2663
        %v2772 = vpack.c.bf16 %v2666, %v2664
        %v2773 = vpack.c.bf16 %v2669, %v2667
        %v2774 = vpack.c.bf16 %v2670, %v2668
        %v2775 = vpack.c.bf16 %v2673, %v2671
        %v2776 = vpack.c.bf16 %v2674, %v2672
        %v2777 = vpack.c.bf16 %v2677, %v2675
        %v2778 = vpack.c.bf16 %v2678, %v2676
        %v2779 = vpack.c.bf16 %v2681, %v2679
        %v2780 = vpack.c.bf16 %v2682, %v2680
        %v2781 = vpack.c.bf16 %v2685, %v2683
        %v2782 = vpack.c.bf16 %v2686, %v2684
        %v2783 = vpack.c.bf16 %v2689, %v2687
        %v2784 = vpack.c.bf16 %v2690, %v2688
        %v2785 = vpack.c.bf16 %v2693, %v2691
        %v2786 = vpack.c.bf16 %v2694, %v2692
        %v2787 = vpack.c.bf16 %v2697, %v2695
        %v2788 = vpack.c.bf16 %v2698, %v2696
        %v2789 = vpack.c.bf16 %v2701, %v2699
        %v2790 = vpack.c.bf16 %v2702, %v2700
        %v2791 = vpack.c.bf16 %v2705, %v2703
        %v2792 = vpack.c.bf16 %v2706, %v2704
        %v2793 = vpack.c.bf16 %v2709, %v2707
        %v2794 = vpack.c.bf16 %v2710, %v2708
        %v2795 = vpack.c.bf16 %v2713, %v2711
        %v2796 = vpack.c.bf16 %v2714, %v2712
        %v2797 = vpack.c.bf16 %v2717, %v2715
        %v2798 = vpack.c.bf16 %v2718, %v2716
        %v2800 = vlaneseq
        %v2801 = vshrl.u32 %v2800, 7
        %v2802 = vsub.s32 0, %v2801
        %v2803 = vrot.slane %v322, %v2802
        %v2804 = vlaneseq
        %v2805 = vshrl.u32 %v2804, 7
        %v2806 = vsub.s32 1, %v2805
        %v2807 = vrot.slane %v322, %v2806
        %v2842 = vunpack.c.l.b16 %v358
        %v2843 = vunpack.c.h.b16 %v358
        %v2844 = vunpack.c.l.b16 %v359
        %v2845 = vunpack.c.h.b16 %v359
        %v2846 = vunpack.c.l.b16 %v360
        %v2847 = vunpack.c.h.b16 %v360
        %v2848 = vunpack.c.l.b16 %v361
        %v2849 = vunpack.c.h.b16 %v361
        %v2850 = vunpack.c.l.b16 %v362
        %v2851 = vunpack.c.h.b16 %v362
        %v2852 = vunpack.c.l.b16 %v363
        %v2853 = vunpack.c.h.b16 %v363
        %v2854 = vunpack.c.l.b16 %v364
        %v2855 = vunpack.c.h.b16 %v364
        %v2856 = vunpack.c.l.b16 %v365
        %v2857 = vunpack.c.h.b16 %v365
        %v2858 = vunpack.c.l.b16 %v366
        %v2859 = vunpack.c.h.b16 %v366
        %v2860 = vunpack.c.l.b16 %v367
        %v2861 = vunpack.c.h.b16 %v367
        %v2862 = vunpack.c.l.b16 %v368
        %v2863 = vunpack.c.h.b16 %v368
        %v2864 = vunpack.c.l.b16 %v369
        %v2865 = vunpack.c.h.b16 %v369
        %v2866 = vunpack.c.l.b16 %v370
        %v2867 = vunpack.c.h.b16 %v370
        %v2868 = vunpack.c.l.b16 %v371
        %v2869 = vunpack.c.h.b16 %v371
        %v2870 = vunpack.c.l.b16 %v372
        %v2871 = vunpack.c.h.b16 %v372
        %v2872 = vunpack.c.l.b16 %v373
        %v2873 = vunpack.c.h.b16 %v373
        %v2874 = vunpack.c.l.b16 %v374
        %v2875 = vunpack.c.h.b16 %v374
        %v2876 = vunpack.c.l.b16 %v375
        %v2877 = vunpack.c.h.b16 %v375
        %v2878 = vunpack.c.l.b16 %v376
        %v2879 = vunpack.c.h.b16 %v376
        %v2880 = vunpack.c.l.b16 %v377
        %v2881 = vunpack.c.h.b16 %v377
        %v2882 = vunpack.c.l.b16 %v378
        %v2883 = vunpack.c.h.b16 %v378
        %v2884 = vunpack.c.l.b16 %v379
        %v2885 = vunpack.c.h.b16 %v379
        %v2886 = vunpack.c.l.b16 %v380
        %v2887 = vunpack.c.h.b16 %v380
        %v2888 = vunpack.c.l.b16 %v381
        %v2889 = vunpack.c.h.b16 %v381
        %v2890 = vunpack.c.l.b16 %v382
        %v2891 = vunpack.c.h.b16 %v382
        %v2892 = vunpack.c.l.b16 %v383
        %v2893 = vunpack.c.h.b16 %v383
        %v2894 = vunpack.c.l.b16 %v384
        %v2895 = vunpack.c.h.b16 %v384
        %v2896 = vunpack.c.l.b16 %v385
        %v2897 = vunpack.c.h.b16 %v385
        %v2898 = vunpack.c.l.b16 %v386
        %v2899 = vunpack.c.h.b16 %v386
        %v2900 = vunpack.c.l.b16 %v387
        %v2901 = vunpack.c.h.b16 %v387
        %v2902 = vunpack.c.l.b16 %v388
        %v2903 = vunpack.c.h.b16 %v388
        %v2904 = vunpack.c.l.b16 %v389
        %v2905 = vunpack.c.h.b16 %v389
        %v2906 = vpack.c.b16 %v2844, %v2842
        %v2907 = vpack.c.b16 %v2845, %v2843
        %v2908 = vpack.c.b16 %v2848, %v2846
        %v2909 = vpack.c.b16 %v2849, %v2847
        %v2910 = vpack.c.b16 %v2852, %v2850
        %v2911 = vpack.c.b16 %v2853, %v2851
        %v2912 = vpack.c.b16 %v2856, %v2854
        %v2913 = vpack.c.b16 %v2857, %v2855
        %v2914 = vpack.c.b16 %v2860, %v2858
        %v2915 = vpack.c.b16 %v2861, %v2859
        %v2916 = vpack.c.b16 %v2864, %v2862
        %v2917 = vpack.c.b16 %v2865, %v2863
        %v2918 = vpack.c.b16 %v2868, %v2866
        %v2919 = vpack.c.b16 %v2869, %v2867
        %v2920 = vpack.c.b16 %v2872, %v2870
        %v2921 = vpack.c.b16 %v2873, %v2871
        %v2922 = vpack.c.b16 %v2876, %v2874
        %v2923 = vpack.c.b16 %v2877, %v2875
        %v2924 = vpack.c.b16 %v2880, %v2878
        %v2925 = vpack.c.b16 %v2881, %v2879
        %v2926 = vpack.c.b16 %v2884, %v2882
        %v2927 = vpack.c.b16 %v2885, %v2883
        %v2928 = vpack.c.b16 %v2888, %v2886
        %v2929 = vpack.c.b16 %v2889, %v2887
        %v2930 = vpack.c.b16 %v2892, %v2890
        %v2931 = vpack.c.b16 %v2893, %v2891
        %v2932 = vpack.c.b16 %v2896, %v2894
        %v2933 = vpack.c.b16 %v2897, %v2895
        %v2934 = vpack.c.b16 %v2900, %v2898
        %v2935 = vpack.c.b16 %v2901, %v2899
        %v2936 = vpack.c.b16 %v2904, %v2902
        %v2937 = vpack.c.b16 %v2905, %v2903
        %2970 = vmatprep.subr.bf16.mxu0 %v2907
        %2971 = vmatpush1.bf16.msra.mxu0 %v2906
        %2972 = vmatprep.subr.bf16.mxu0 %v2909
        %2973 = vmatpush1.bf16.msra.mxu0 %v2908
        %2974 = vmatprep.subr.bf16.mxu0 %v2911
        %2975 = vmatpush1.bf16.msra.mxu0 %v2910
        %2976 = vmatprep.subr.bf16.mxu0 %v2913
        %2977 = vmatpush1.bf16.msra.mxu0 %v2912
        %2978 = vmatprep.subr.bf16.mxu0 %v2915
        %2979 = vmatpush1.bf16.msra.mxu0 %v2914
        %2980 = vmatprep.subr.bf16.mxu0 %v2917
        %2981 = vmatpush1.bf16.msra.mxu0 %v2916
        %2982 = vmatprep.subr.bf16.mxu0 %v2919
        %2983 = vmatpush1.bf16.msra.mxu0 %v2918
        %2984 = vmatprep.subr.bf16.mxu0 %v2921
        %2985 = vmatpush1.bf16.msra.mxu0 %v2920
        %2986 = vmatprep.subr.bf16.mxu0 %v2923
        %2987 = vmatpush1.bf16.msra.mxu0 %v2922
        %2988 = vmatprep.subr.bf16.mxu0 %v2925
        %2989 = vmatpush1.bf16.msra.mxu0 %v2924
        %2990 = vmatprep.subr.bf16.mxu0 %v2927
        %2991 = vmatpush1.bf16.msra.mxu0 %v2926
        %2992 = vmatprep.subr.bf16.mxu0 %v2929
        %2993 = vmatpush1.bf16.msra.mxu0 %v2928
        %2994 = vmatprep.subr.bf16.mxu0 %v2931
        %2995 = vmatpush1.bf16.msra.mxu0 %v2930
        %2996 = vmatprep.subr.bf16.mxu0 %v2933
        %2997 = vmatpush1.bf16.msra.mxu0 %v2932
        %2998 = vmatprep.subr.bf16.mxu0 %v2935
        %2999 = vmatpush1.bf16.msra.mxu0 %v2934
        %3000 = vmatprep.subr.bf16.mxu0 %v2937
        %3001 = vmatpush1.bf16.msra.mxu0 %v2936
        %3002 = vmatprep.mubr.bf16.mxu0 %v2720
        %3003 = vmatmul.mubr.bf16.gmra.mrb[0].mxu0 %v2719
        %v3004 = vpop.f32.mrb[0].mxu0
        %v3005 = vadd.f32 %v2803, %v3004
        %v3006 = vpop.f32.mrb[0].mxu0
        %v3007 = vadd.f32 %v2807, %v3006
        %v3008 = vpop.f32.mrb[0].mxu0
        %v3009 = vadd.f32 %v2803, %v3008
        %v3010 = vpop.f32.mrb[0].mxu0
        %v3011 = vadd.f32 %v2807, %v3010
        %3012 = vmatprep.mubr.bf16.mxu0 %v2722
        %3013 = vmatmul.mubr.bf16.gmra.mrb[0].mxu0 %v2721
        %v3014 = vpop.f32.mrb[0].mxu0
        %v3015 = vadd.f32 %v2803, %v3014
        %v3016 = vpop.f32.mrb[0].mxu0
        %v3017 = vadd.f32 %v2807, %v3016
        %v3018 = vpop.f32.mrb[0].mxu0
        %v3019 = vadd.f32 %v2803, %v3018
        %v3020 = vpop.f32.mrb[0].mxu0
        %v3021 = vadd.f32 %v2807, %v3020
        %3022 = vmatprep.mubr.bf16.mxu0 %v2724
        %3023 = vmatmul.mubr.bf16.gmra.mrb[0].mxu0 %v2723
        %v3024 = vpop.f32.mrb[0].mxu0
        %v3025 = vadd.f32 %v2803, %v3024
        %v3026 = vpop.f32.mrb[0].mxu0
        %v3027 = vadd.f32 %v2807, %v3026
        %v3028 = vpop.f32.mrb[0].mxu0
        %v3029 = vadd.f32 %v2803, %v3028
        %v3030 = vpop.f32.mrb[0].mxu0
        %v3031 = vadd.f32 %v2807, %v3030
        %3032 = vmatprep.mubr.bf16.mxu0 %v2726
        %3033 = vmatmul.mubr.bf16.gmra.mrb[0].mxu0 %v2725
        %v3034 = vpop.f32.mrb[0].mxu0
        %v3035 = vadd.f32 %v2803, %v3034
        %v3036 = vpop.f32.mrb[0].mxu0
        %v3037 = vadd.f32 %v2807, %v3036
        %v3038 = vpop.f32.mrb[0].mxu0
        %v3039 = vadd.f32 %v2803, %v3038
        %v3040 = vpop.f32.mrb[0].mxu0
        %v3041 = vadd.f32 %v2807, %v3040
        %3042 = vmatprep.mubr.bf16.mxu0 %v2728
        %3043 = vmatmul.mubr.bf16.gmra.mrb[0].mxu0 %v2727
        %v3044 = vpop.f32.mrb[0].mxu0
        %v3045 = vadd.f32 %v2803, %v3044
        %v3046 = vpop.f32.mrb[0].mxu0
        %v3047 = vadd.f32 %v2807, %v3046
        %v3048 = vpop.f32.mrb[0].mxu0
        %v3049 = vadd.f32 %v2803, %v3048
        %v3050 = vpop.f32.mrb[0].mxu0
        %v3051 = vadd.f32 %v2807, %v3050
        %3052 = vmatprep.mubr.bf16.mxu0 %v2730
        %3053 = vmatmul.mubr.bf16.gmra.mrb[0].mxu0 %v2729
        %v3054 = vpop.f32.mrb[0].mxu0
        %v3055 = vadd.f32 %v2803, %v3054
        %v3056 = vpop.f32.mrb[0].mxu0
        %v3057 = vadd.f32 %v2807, %v3056
        %v3058 = vpop.f32.mrb[0].mxu0
        %v3059 = vadd.f32 %v2803, %v3058
        %v3060 = vpop.f32.mrb[0].mxu0
        %v3061 = vadd.f32 %v2807, %v3060
        %3062 = vmatprep.mubr.bf16.mxu0 %v2732
        %3063 = vmatmul.mubr.bf16.gmra.mrb[0].mxu0 %v2731
        %v3064 = vpop.f32.mrb[0].mxu0
        %v3065 = vadd.f32 %v2803, %v3064
        %v3066 = vpop.f32.mrb[0].mxu0
        %v3067 = vadd.f32 %v2807, %v3066
        %v3068 = vpop.f32.mrb[0].mxu0
        %v3069 = vadd.f32 %v2803, %v3068
        %v3070 = vpop.f32.mrb[0].mxu0
        %v3071 = vadd.f32 %v2807, %v3070
        %3072 = vmatprep.mubr.bf16.mxu0 %v2734
        %3073 = vmatmul.mubr.bf16.gmra.mrb[0].mxu0 %v2733
        %v3074 = vpop.f32.mrb[0].mxu0
        %v3075 = vadd.f32 %v2803, %v3074
        %v3076 = vpop.f32.mrb[0].mxu0
        %v3077 = vadd.f32 %v2807, %v3076
        %v3078 = vpop.f32.mrb[0].mxu0
        %v3079 = vadd.f32 %v2803, %v3078
        %v3080 = vpop.f32.mrb[0].mxu0
        %v3081 = vadd.f32 %v2807, %v3080
        %3082 = vmatprep.mubr.bf16.mxu0 %v2736
        %3083 = vmatmul.mubr.bf16.gmra.mrb[0].mxu0 %v2735
        %v3084 = vpop.f32.mrb[0].mxu0
        %v3085 = vadd.f32 %v2803, %v3084
        %v3086 = vpop.f32.mrb[0].mxu0
        %v3087 = vadd.f32 %v2807, %v3086
        %v3088 = vpop.f32.mrb[0].mxu0
        %v3089 = vadd.f32 %v2803, %v3088
        %v3090 = vpop.f32.mrb[0].mxu0
        %v3091 = vadd.f32 %v2807, %v3090
        %3092 = vmatprep.mubr.bf16.mxu0 %v2738
        %3093 = vmatmul.mubr.bf16.gmra.mrb[0].mxu0 %v2737
        %v3094 = vpop.f32.mrb[0].mxu0
        %v3095 = vadd.f32 %v2803, %v3094
        %v3096 = vpop.f32.mrb[0].mxu0
        %v3097 = vadd.f32 %v2807, %v3096
        %v3098 = vpop.f32.mrb[0].mxu0
        %v3099 = vadd.f32 %v2803, %v3098
        %v3100 = vpop.f32.mrb[0].mxu0
        %v3101 = vadd.f32 %v2807, %v3100
        %3102 = vmatprep.mubr.bf16.mxu0 %v2740
        %3103 = vmatmul.mubr.bf16.gmra.mrb[0].mxu0 %v2739
        %v3104 = vpop.f32.mrb[0].mxu0
        %v3105 = vadd.f32 %v2803, %v3104
        %v3106 = vpop.f32.mrb[0].mxu0
        %v3107 = vadd.f32 %v2807, %v3106
        %v3108 = vpop.f32.mrb[0].mxu0
        %v3109 = vadd.f32 %v2803, %v3108
        %v3110 = vpop.f32.mrb[0].mxu0
        %v3111 = vadd.f32 %v2807, %v3110
        %3112 = vmatprep.mubr.bf16.mxu0 %v2742
        %3113 = vmatmul.mubr.bf16.gmra.mrb[0].mxu0 %v2741
        %v3114 = vpop.f32.mrb[0].mxu0
        %v3115 = vadd.f32 %v2803, %v3114
        %v3116 = vpop.f32.mrb[0].mxu0
        %v3117 = vadd.f32 %v2807, %v3116
        %v3118 = vpop.f32.mrb[0].mxu0
        %v3119 = vadd.f32 %v2803, %v3118
        %v3120 = vpop.f32.mrb[0].mxu0
        %v3121 = vadd.f32 %v2807, %v3120
        %3122 = vmatprep.mubr.bf16.mxu0 %v2744
        %3123 = vmatmul.mubr.bf16.gmra.mrb[0].mxu0 %v2743
        %v3124 = vpop.f32.mrb[0].mxu0
        %v3125 = vadd.f32 %v2803, %v3124
        %v3126 = vpop.f32.mrb[0].mxu0
        %v3127 = vadd.f32 %v2807, %v3126
        %v3128 = vpop.f32.mrb[0].mxu0
        %v3129 = vadd.f32 %v2803, %v3128
        %v3130 = vpop.f32.mrb[0].mxu0
        %v3131 = vadd.f32 %v2807, %v3130
        %3132 = vmatprep.mubr.bf16.mxu0 %v2746
        %3133 = vmatmul.mubr.bf16.gmra.mrb[0].mxu0 %v2745
        %v3134 = vpop.f32.mrb[0].mxu0
        %v3135 = vadd.f32 %v2803, %v3134
        %v3136 = vpop.f32.mrb[0].mxu0
        %v3137 = vadd.f32 %v2807, %v3136
        %v3138 = vpop.f32.mrb[0].mxu0
        %v3139 = vadd.f32 %v2803, %v3138
        %v3140 = vpop.f32.mrb[0].mxu0
        %v3141 = vadd.f32 %v2807, %v3140
        %3142 = vmatprep.mubr.bf16.mxu0 %v2748
        %3143 = vmatmul.mubr.bf16.gmra.mrb[0].mxu0 %v2747
        %v3144 = vpop.f32.mrb[0].mxu0
        %v3145 = vadd.f32 %v2803, %v3144
        %v3146 = vpop.f32.mrb[0].mxu0
        %v3147 = vadd.f32 %v2807, %v3146
        %v3148 = vpop.f32.mrb[0].mxu0
        %v3149 = vadd.f32 %v2803, %v3148
        %v3150 = vpop.f32.mrb[0].mxu0
        %v3151 = vadd.f32 %v2807, %v3150
        %3152 = vmatprep.mubr.bf16.mxu0 %v2750
        %3153 = vmatmul.mubr.bf16.gmra.mrb[0].mxu0 %v2749
        %v3154 = vpop.f32.mrb[0].mxu0
        %v3155 = vadd.f32 %v2803, %v3154
        %v3156 = vpop.f32.mrb[0].mxu0
        %v3157 = vadd.f32 %v2807, %v3156
        %v3158 = vpop.f32.mrb[0].mxu0
        %v3159 = vadd.f32 %v2803, %v3158
        %v3160 = vpop.f32.mrb[0].mxu0
        %v3161 = vadd.f32 %v2807, %v3160
        %3162 = vmatprep.mubr.bf16.mxu0 %v2752
        %3163 = vmatmul.mubr.bf16.gmra.mrb[0].mxu0 %v2751
        %v3164 = vpop.f32.mrb[0].mxu0
        %v3165 = vadd.f32 %v2803, %v3164
        %v3166 = vpop.f32.mrb[0].mxu0
        %v3167 = vadd.f32 %v2807, %v3166
        %v3168 = vpop.f32.mrb[0].mxu0
        %v3169 = vadd.f32 %v2803, %v3168
        %v3170 = vpop.f32.mrb[0].mxu0
        %v3171 = vadd.f32 %v2807, %v3170
        %3172 = vmatprep.mubr.bf16.mxu0 %v2754
        %3173 = vmatmul.mubr.bf16.gmra.mrb[0].mxu0 %v2753
        %v3174 = vpop.f32.mrb[0].mxu0
        %v3175 = vadd.f32 %v2803, %v3174
        %v3176 = vpop.f32.mrb[0].mxu0
        %v3177 = vadd.f32 %v2807, %v3176
        %v3178 = vpop.f32.mrb[0].mxu0
        %v3179 = vadd.f32 %v2803, %v3178
        %v3180 = vpop.f32.mrb[0].mxu0
        %v3181 = vadd.f32 %v2807, %v3180
        %3182 = vmatprep.mubr.bf16.mxu0 %v2756
        %3183 = vmatmul.mubr.bf16.gmra.mrb[0].mxu0 %v2755
        %v3184 = vpop.f32.mrb[0].mxu0
        %v3185 = vadd.f32 %v2803, %v3184
        %v3186 = vpop.f32.mrb[0].mxu0
        %v3187 = vadd.f32 %v2807, %v3186
        %v3188 = vpop.f32.mrb[0].mxu0
        %v3189 = vadd.f32 %v2803, %v3188
        %v3190 = vpop.f32.mrb[0].mxu0
        %v3191 = vadd.f32 %v2807, %v3190
        %3192 = vmatprep.mubr.bf16.mxu0 %v2758
        %3193 = vmatmul.mubr.bf16.gmra.mrb[0].mxu0 %v2757
        %v3194 = vpop.f32.mrb[0].mxu0
        %v3195 = vadd.f32 %v2803, %v3194
        %v3196 = vpop.f32.mrb[0].mxu0
        %v3197 = vadd.f32 %v2807, %v3196
        %v3198 = vpop.f32.mrb[0].mxu0
        %v3199 = vadd.f32 %v2803, %v3198
        %v3200 = vpop.f32.mrb[0].mxu0
        %v3201 = vadd.f32 %v2807, %v3200
        %3202 = vmatprep.mubr.bf16.mxu0 %v2760
        %3203 = vmatmul.mubr.bf16.gmra.mrb[0].mxu0 %v2759
        %v3204 = vpop.f32.mrb[0].mxu0
        %v3205 = vadd.f32 %v2803, %v3204
        %v3206 = vpop.f32.mrb[0].mxu0
        %v3207 = vadd.f32 %v2807, %v3206
        %v3208 = vpop.f32.mrb[0].mxu0
        %v3209 = vadd.f32 %v2803, %v3208
        %v3210 = vpop.f32.mrb[0].mxu0
        %v3211 = vadd.f32 %v2807, %v3210
        %3212 = vmatprep.mubr.bf16.mxu0 %v2762
        %3213 = vmatmul.mubr.bf16.gmra.mrb[0].mxu0 %v2761
        %v3214 = vpop.f32.mrb[0].mxu0
        %v3215 = vadd.f32 %v2803, %v3214
        %v3216 = vpop.f32.mrb[0].mxu0
        %v3217 = vadd.f32 %v2807, %v3216
        %v3218 = vpop.f32.mrb[0].mxu0
        %v3219 = vadd.f32 %v2803, %v3218
        %v3220 = vpop.f32.mrb[0].mxu0
        %v3221 = vadd.f32 %v2807, %v3220
        %3222 = vmatprep.mubr.bf16.mxu0 %v2764
        %3223 = vmatmul.mubr.bf16.gmra.mrb[0].mxu0 %v2763
        %v3224 = vpop.f32.mrb[0].mxu0
        %v3225 = vadd.f32 %v2803, %v3224
        %v3226 = vpop.f32.mrb[0].mxu0
        %v3227 = vadd.f32 %v2807, %v3226
        %v3228 = vpop.f32.mrb[0].mxu0
        %v3229 = vadd.f32 %v2803, %v3228
        %v3230 = vpop.f32.mrb[0].mxu0
        %v3231 = vadd.f32 %v2807, %v3230
        %3232 = vmatprep.mubr.bf16.mxu0 %v2766
        %3233 = vmatmul.mubr.bf16.gmra.mrb[0].mxu0 %v2765
        %v3234 = vpop.f32.mrb[0].mxu0
        %v3235 = vadd.f32 %v2803, %v3234
        %v3236 = vpop.f32.mrb[0].mxu0
        %v3237 = vadd.f32 %v2807, %v3236
        %v3238 = vpop.f32.mrb[0].mxu0
        %v3239 = vadd.f32 %v2803, %v3238
        %v3240 = vpop.f32.mrb[0].mxu0
        %v3241 = vadd.f32 %v2807, %v3240
        %3242 = vmatprep.mubr.bf16.mxu0 %v2768
        %3243 = vmatmul.mubr.bf16.gmra.mrb[0].mxu0 %v2767
        %v3244 = vpop.f32.mrb[0].mxu0
        %v3245 = vadd.f32 %v2803, %v3244
        %v3246 = vpop.f32.mrb[0].mxu0
        %v3247 = vadd.f32 %v2807, %v3246
        %v3248 = vpop.f32.mrb[0].mxu0
        %v3249 = vadd.f32 %v2803, %v3248
        %v3250 = vpop.f32.mrb[0].mxu0
        %v3251 = vadd.f32 %v2807, %v3250
        %3252 = vmatprep.mubr.bf16.mxu0 %v2770
        %3253 = vmatmul.mubr.bf16.gmra.mrb[0].mxu0 %v2769
        %v3254 = vpop.f32.mrb[0].mxu0
        %v3255 = vadd.f32 %v2803, %v3254
        %v3256 = vpop.f32.mrb[0].mxu0
        %v3257 = vadd.f32 %v2807, %v3256
        %v3258 = vpop.f32.mrb[0].mxu0
        %v3259 = vadd.f32 %v2803, %v3258
        %v3260 = vpop.f32.mrb[0].mxu0
        %v3261 = vadd.f32 %v2807, %v3260
        %3262 = vmatprep.mubr.bf16.mxu0 %v2772
        %3263 = vmatmul.mubr.bf16.gmra.mrb[0].mxu0 %v2771
        %v3264 = vpop.f32.mrb[0].mxu0
        %v3265 = vadd.f32 %v2803, %v3264
        %v3266 = vpop.f32.mrb[0].mxu0
        %v3267 = vadd.f32 %v2807, %v3266
        %v3268 = vpop.f32.mrb[0].mxu0
        %v3269 = vadd.f32 %v2803, %v3268
        %v3270 = vpop.f32.mrb[0].mxu0
        %v3271 = vadd.f32 %v2807, %v3270
        %3272 = vmatprep.mubr.bf16.mxu0 %v2774
        %3273 = vmatmul.mubr.bf16.gmra.mrb[0].mxu0 %v2773
        %v3274 = vpop.f32.mrb[0].mxu0
        %v3275 = vadd.f32 %v2803, %v3274
        %v3276 = vpop.f32.mrb[0].mxu0
        %v3277 = vadd.f32 %v2807, %v3276
        %v3278 = vpop.f32.mrb[0].mxu0
        %v3279 = vadd.f32 %v2803, %v3278
        %v3280 = vpop.f32.mrb[0].mxu0
        %v3281 = vadd.f32 %v2807, %v3280
        %3282 = vmatprep.mubr.bf16.mxu0 %v2776
        %3283 = vmatmul.mubr.bf16.gmra.mrb[0].mxu0 %v2775
        %v3284 = vpop.f32.mrb[0].mxu0
        %v3285 = vadd.f32 %v2803, %v3284
        %v3286 = vpop.f32.mrb[0].mxu0
        %v3287 = vadd.f32 %v2807, %v3286
        %v3288 = vpop.f32.mrb[0].mxu0
        %v3289 = vadd.f32 %v2803, %v3288
        %v3290 = vpop.f32.mrb[0].mxu0
        %v3291 = vadd.f32 %v2807, %v3290
        %3292 = vmatprep.mubr.bf16.mxu0 %v2778
        %3293 = vmatmul.mubr.bf16.gmra.mrb[0].mxu0 %v2777
        %v3294 = vpop.f32.mrb[0].mxu0
        %v3295 = vadd.f32 %v2803, %v3294
        %v3296 = vpop.f32.mrb[0].mxu0
        %v3297 = vadd.f32 %v2807, %v3296
        %v3298 = vpop.f32.mrb[0].mxu0
        %v3299 = vadd.f32 %v2803, %v3298
        %v3300 = vpop.f32.mrb[0].mxu0
        %v3301 = vadd.f32 %v2807, %v3300
        %3302 = vmatprep.mubr.bf16.mxu0 %v2780
        %3303 = vmatmul.mubr.bf16.gmra.mrb[0].mxu0 %v2779
        %v3304 = vpop.f32.mrb[0].mxu0
        %v3305 = vadd.f32 %v2803, %v3304
        %v3306 = vpop.f32.mrb[0].mxu0
        %v3307 = vadd.f32 %v2807, %v3306
        %v3308 = vpop.f32.mrb[0].mxu0
        %v3309 = vadd.f32 %v2803, %v3308
        %v3310 = vpop.f32.mrb[0].mxu0
        %v3311 = vadd.f32 %v2807, %v3310
        %3312 = vmatprep.mubr.bf16.mxu0 %v2782
        %3313 = vmatmul.mubr.bf16.gmra.mrb[0].mxu0 %v2781
        %v3314 = vpop.f32.mrb[0].mxu0
        %v3315 = vadd.f32 %v2803, %v3314
        %v3316 = vpop.f32.mrb[0].mxu0
        %v3317 = vadd.f32 %v2807, %v3316
        %v3318 = vpop.f32.mrb[0].mxu0
        %v3319 = vadd.f32 %v2803, %v3318
        %v3320 = vpop.f32.mrb[0].mxu0
        %v3321 = vadd.f32 %v2807, %v3320
        %3322 = vmatprep.mubr.bf16.mxu0 %v2784
        %3323 = vmatmul.mubr.bf16.gmra.mrb[0].mxu0 %v2783
        %v3324 = vpop.f32.mrb[0].mxu0
        %v3325 = vadd.f32 %v2803, %v3324
        %v3326 = vpop.f32.mrb[0].mxu0
        %v3327 = vadd.f32 %v2807, %v3326
        %v3328 = vpop.f32.mrb[0].mxu0
        %v3329 = vadd.f32 %v2803, %v3328
        %v3330 = vpop.f32.mrb[0].mxu0
        %v3331 = vadd.f32 %v2807, %v3330
        %3332 = vmatprep.mubr.bf16.mxu0 %v2786
        %3333 = vmatmul.mubr.bf16.gmra.mrb[0].mxu0 %v2785
        %v3334 = vpop.f32.mrb[0].mxu0
        %v3335 = vadd.f32 %v2803, %v3334
        %v3336 = vpop.f32.mrb[0].mxu0
        %v3337 = vadd.f32 %v2807, %v3336
        %v3338 = vpop.f32.mrb[0].mxu0
        %v3339 = vadd.f32 %v2803, %v3338
        %v3340 = vpop.f32.mrb[0].mxu0
        %v3341 = vadd.f32 %v2807, %v3340
        %3342 = vmatprep.mubr.bf16.mxu0 %v2788
        %3343 = vmatmul.mubr.bf16.gmra.mrb[0].mxu0 %v2787
        %v3344 = vpop.f32.mrb[0].mxu0
        %v3345 = vadd.f32 %v2803, %v3344
        %v3346 = vpop.f32.mrb[0].mxu0
        %v3347 = vadd.f32 %v2807, %v3346
        %v3348 = vpop.f32.mrb[0].mxu0
        %v3349 = vadd.f32 %v2803, %v3348
        %v3350 = vpop.f32.mrb[0].mxu0
        %v3351 = vadd.f32 %v2807, %v3350
        %3352 = vmatprep.mubr.bf16.mxu0 %v2790
        %3353 = vmatmul.mubr.bf16.gmra.mrb[0].mxu0 %v2789
        %v3354 = vpop.f32.mrb[0].mxu0
        %v3355 = vadd.f32 %v2803, %v3354
        %v3356 = vpop.f32.mrb[0].mxu0
        %v3357 = vadd.f32 %v2807, %v3356
        %v3358 = vpop.f32.mrb[0].mxu0
        %v3359 = vadd.f32 %v2803, %v3358
        %v3360 = vpop.f32.mrb[0].mxu0
        %v3361 = vadd.f32 %v2807, %v3360
        %3362 = vmatprep.mubr.bf16.mxu0 %v2792
        %3363 = vmatmul.mubr.bf16.gmra.mrb[0].mxu0 %v2791
        %v3364 = vpop.f32.mrb[0].mxu0
        %v3365 = vadd.f32 %v2803, %v3364
        %v3366 = vpop.f32.mrb[0].mxu0
        %v3367 = vadd.f32 %v2807, %v3366
        %v3368 = vpop.f32.mrb[0].mxu0
        %v3369 = vadd.f32 %v2803, %v3368
        %v3370 = vpop.f32.mrb[0].mxu0
        %v3371 = vadd.f32 %v2807, %v3370
        %3372 = vmatprep.mubr.bf16.mxu0 %v2794
        %3373 = vmatmul.mubr.bf16.gmra.mrb[0].mxu0 %v2793
        %v3374 = vpop.f32.mrb[0].mxu0
        %v3375 = vadd.f32 %v2803, %v3374
        %v3376 = vpop.f32.mrb[0].mxu0
        %v3377 = vadd.f32 %v2807, %v3376
        %v3378 = vpop.f32.mrb[0].mxu0
        %v3379 = vadd.f32 %v2803, %v3378
        %v3380 = vpop.f32.mrb[0].mxu0
        %v3381 = vadd.f32 %v2807, %v3380
        %3382 = vmatprep.mubr.bf16.mxu0 %v2796
        %3383 = vmatmul.mubr.bf16.gmra.mrb[0].mxu0 %v2795
        %v3384 = vpop.f32.mrb[0].mxu0
        %v3385 = vadd.f32 %v2803, %v3384
        %v3386 = vpop.f32.mrb[0].mxu0
        %v3387 = vadd.f32 %v2807, %v3386
        %v3388 = vpop.f32.mrb[0].mxu0
        %v3389 = vadd.f32 %v2803, %v3388
        %v3390 = vpop.f32.mrb[0].mxu0
        %v3391 = vadd.f32 %v2807, %v3390
        %3392 = vmatprep.mubr.bf16.mxu0 %v2798
        %3393 = vmatmul.mubr.bf16.gmra.mrb[0].mxu0 %v2797
        %v3394 = vpop.f32.mrb[0].mxu0
        %v3395 = vadd.f32 %v2803, %v3394
        %v3396 = vpop.f32.mrb[0].mxu0
        %v3397 = vadd.f32 %v2807, %v3396
        %v3398 = vpop.f32.mrb[0].mxu0
        %v3399 = vadd.f32 %v2803, %v3398
        %v3400 = vpop.f32.mrb[0].mxu0
        %v3401 = vadd.f32 %v2807, %v3400
        %3402 = vdwg.mxu0
        %v3403 = vmax.f32 %v3005, 0.0
        %v3404 = vmax.f32 %v3007, 0.0
        %v3405 = vmax.f32 %v3009, 0.0
        %v3406 = vmax.f32 %v3011, 0.0
        %v3407 = vmax.f32 %v3015, 0.0
        %v3408 = vmax.f32 %v3017, 0.0
        %v3409 = vmax.f32 %v3019, 0.0
        %v3410 = vmax.f32 %v3021, 0.0
        %v3411 = vmax.f32 %v3025, 0.0
        %v3412 = vmax.f32 %v3027, 0.0
        %v3413 = vmax.f32 %v3029, 0.0
        %v3414 = vmax.f32 %v3031, 0.0
        %v3415 = vmax.f32 %v3035, 0.0
        %v3416 = vmax.f32 %v3037, 0.0
        %v3417 = vmax.f32 %v3039, 0.0
        %v3418 = vmax.f32 %v3041, 0.0
        %v3419 = vmax.f32 %v3045, 0.0
        %v3420 = vmax.f32 %v3047, 0.0
        %v3421 = vmax.f32 %v3049, 0.0
        %v3422 = vmax.f32 %v3051, 0.0
        %v3423 = vmax.f32 %v3055, 0.0
        %v3424 = vmax.f32 %v3057, 0.0
        %v3425 = vmax.f32 %v3059, 0.0
        %v3426 = vmax.f32 %v3061, 0.0
        %v3427 = vmax.f32 %v3065, 0.0
        %v3428 = vmax.f32 %v3067, 0.0
        %v3429 = vmax.f32 %v3069, 0.0
        %v3430 = vmax.f32 %v3071, 0.0
        %v3431 = vmax.f32 %v3075, 0.0
        %v3432 = vmax.f32 %v3077, 0.0
        %v3433 = vmax.f32 %v3079, 0.0
        %v3434 = vmax.f32 %v3081, 0.0
        %v3435 = vmax.f32 %v3085, 0.0
        %v3436 = vmax.f32 %v3087, 0.0
        %v3437 = vmax.f32 %v3089, 0.0
        %v3438 = vmax.f32 %v3091, 0.0
        %v3439 = vmax.f32 %v3095, 0.0
        %v3440 = vmax.f32 %v3097, 0.0
        %v3441 = vmax.f32 %v3099, 0.0
        %v3442 = vmax.f32 %v3101, 0.0
        %v3443 = vmax.f32 %v3105, 0.0
        %v3444 = vmax.f32 %v3107, 0.0
        %v3445 = vmax.f32 %v3109, 0.0
        %v3446 = vmax.f32 %v3111, 0.0
        %v3447 = vmax.f32 %v3115, 0.0
        %v3448 = vmax.f32 %v3117, 0.0
        %v3449 = vmax.f32 %v3119, 0.0
        %v3450 = vmax.f32 %v3121, 0.0
        %v3451 = vmax.f32 %v3125, 0.0
        %v3452 = vmax.f32 %v3127, 0.0
        %v3453 = vmax.f32 %v3129, 0.0
        %v3454 = vmax.f32 %v3131, 0.0
        %v3455 = vmax.f32 %v3135, 0.0
        %v3456 = vmax.f32 %v3137, 0.0
        %v3457 = vmax.f32 %v3139, 0.0
        %v3458 = vmax.f32 %v3141, 0.0
        %v3459 = vmax.f32 %v3145, 0.0
        %v3460 = vmax.f32 %v3147, 0.0
        %v3461 = vmax.f32 %v3149, 0.0
        %v3462 = vmax.f32 %v3151, 0.0
        %v3463 = vmax.f32 %v3155, 0.0
        %v3464 = vmax.f32 %v3157, 0.0
        %v3465 = vmax.f32 %v3159, 0.0
        %v3466 = vmax.f32 %v3161, 0.0
        %v3467 = vmax.f32 %v3165, 0.0
        %v3468 = vmax.f32 %v3167, 0.0
        %v3469 = vmax.f32 %v3169, 0.0
        %v3470 = vmax.f32 %v3171, 0.0
        %v3471 = vmax.f32 %v3175, 0.0
        %v3472 = vmax.f32 %v3177, 0.0
        %v3473 = vmax.f32 %v3179, 0.0
        %v3474 = vmax.f32 %v3181, 0.0
        %v3475 = vmax.f32 %v3185, 0.0
        %v3476 = vmax.f32 %v3187, 0.0
        %v3477 = vmax.f32 %v3189, 0.0
        %v3478 = vmax.f32 %v3191, 0.0
        %v3479 = vmax.f32 %v3195, 0.0
        %v3480 = vmax.f32 %v3197, 0.0
        %v3481 = vmax.f32 %v3199, 0.0
        %v3482 = vmax.f32 %v3201, 0.0
        %v3483 = vmax.f32 %v3205, 0.0
        %v3484 = vmax.f32 %v3207, 0.0
        %v3485 = vmax.f32 %v3209, 0.0
        %v3486 = vmax.f32 %v3211, 0.0
        %v3487 = vmax.f32 %v3215, 0.0
        %v3488 = vmax.f32 %v3217, 0.0
        %v3489 = vmax.f32 %v3219, 0.0
        %v3490 = vmax.f32 %v3221, 0.0
        %v3491 = vmax.f32 %v3225, 0.0
        %v3492 = vmax.f32 %v3227, 0.0
        %v3493 = vmax.f32 %v3229, 0.0
        %v3494 = vmax.f32 %v3231, 0.0
        %v3495 = vmax.f32 %v3235, 0.0
        %v3496 = vmax.f32 %v3237, 0.0
        %v3497 = vmax.f32 %v3239, 0.0
        %v3498 = vmax.f32 %v3241, 0.0
        %v3499 = vmax.f32 %v3245, 0.0
        %v3500 = vmax.f32 %v3247, 0.0
        %v3501 = vmax.f32 %v3249, 0.0
        %v3502 = vmax.f32 %v3251, 0.0
        %v3503 = vmax.f32 %v3255, 0.0
        %v3504 = vmax.f32 %v3257, 0.0
        %v3505 = vmax.f32 %v3259, 0.0
        %v3506 = vmax.f32 %v3261, 0.0
        %v3507 = vmax.f32 %v3265, 0.0
        %v3508 = vmax.f32 %v3267, 0.0
        %v3509 = vmax.f32 %v3269, 0.0
        %v3510 = vmax.f32 %v3271, 0.0
        %v3511 = vmax.f32 %v3275, 0.0
        %v3512 = vmax.f32 %v3277, 0.0
        %v3513 = vmax.f32 %v3279, 0.0
        %v3514 = vmax.f32 %v3281, 0.0
        %v3515 = vmax.f32 %v3285, 0.0
        %v3516 = vmax.f32 %v3287, 0.0
        %v3517 = vmax.f32 %v3289, 0.0
        %v3518 = vmax.f32 %v3291, 0.0
        %v3519 = vmax.f32 %v3295, 0.0
        %v3520 = vmax.f32 %v3297, 0.0
        %v3521 = vmax.f32 %v3299, 0.0
        %v3522 = vmax.f32 %v3301, 0.0
        %v3523 = vmax.f32 %v3305, 0.0
        %v3524 = vmax.f32 %v3307, 0.0
        %v3525 = vmax.f32 %v3309, 0.0
        %v3526 = vmax.f32 %v3311, 0.0
        %v3527 = vmax.f32 %v3315, 0.0
        %v3528 = vmax.f32 %v3317, 0.0
        %v3529 = vmax.f32 %v3319, 0.0
        %v3530 = vmax.f32 %v3321, 0.0
        %v3531 = vmax.f32 %v3325, 0.0
        %v3532 = vmax.f32 %v3327, 0.0
        %v3533 = vmax.f32 %v3329, 0.0
        %v3534 = vmax.f32 %v3331, 0.0
        %v3535 = vmax.f32 %v3335, 0.0
        %v3536 = vmax.f32 %v3337, 0.0
        %v3537 = vmax.f32 %v3339, 0.0
        %v3538 = vmax.f32 %v3341, 0.0
        %v3539 = vmax.f32 %v3345, 0.0
        %v3540 = vmax.f32 %v3347, 0.0
        %v3541 = vmax.f32 %v3349, 0.0
        %v3542 = vmax.f32 %v3351, 0.0
        %v3543 = vmax.f32 %v3355, 0.0
        %v3544 = vmax.f32 %v3357, 0.0
        %v3545 = vmax.f32 %v3359, 0.0
        %v3546 = vmax.f32 %v3361, 0.0
        %v3547 = vmax.f32 %v3365, 0.0
        %v3548 = vmax.f32 %v3367, 0.0
        %v3549 = vmax.f32 %v3369, 0.0
        %v3550 = vmax.f32 %v3371, 0.0
        %v3551 = vmax.f32 %v3375, 0.0
        %v3552 = vmax.f32 %v3377, 0.0
        %v3553 = vmax.f32 %v3379, 0.0
        %v3554 = vmax.f32 %v3381, 0.0
        %v3555 = vmax.f32 %v3385, 0.0
        %v3556 = vmax.f32 %v3387, 0.0
        %v3557 = vmax.f32 %v3389, 0.0
        %v3558 = vmax.f32 %v3391, 0.0
        %v3559 = vmax.f32 %v3395, 0.0
        %v3560 = vmax.f32 %v3397, 0.0
        %v3561 = vmax.f32 %v3399, 0.0
        %v3562 = vmax.f32 %v3401, 0.0
        %v3563 = vpack.c.bf16 %v3405, %v3403
        %v3564 = vpack.c.bf16 %v3406, %v3404
        %v3565 = vpack.c.bf16 %v3409, %v3407
        %v3566 = vpack.c.bf16 %v3410, %v3408
        %v3567 = vpack.c.bf16 %v3413, %v3411
        %v3568 = vpack.c.bf16 %v3414, %v3412
        %v3569 = vpack.c.bf16 %v3417, %v3415
        %v3570 = vpack.c.bf16 %v3418, %v3416
        %v3571 = vpack.c.bf16 %v3421, %v3419
        %v3572 = vpack.c.bf16 %v3422, %v3420
        %v3573 = vpack.c.bf16 %v3425, %v3423
        %v3574 = vpack.c.bf16 %v3426, %v3424
        %v3575 = vpack.c.bf16 %v3429, %v3427
        %v3576 = vpack.c.bf16 %v3430, %v3428
        %v3577 = vpack.c.bf16 %v3433, %v3431
        %v3578 = vpack.c.bf16 %v3434, %v3432
        %v3579 = vpack.c.bf16 %v3437, %v3435
        %v3580 = vpack.c.bf16 %v3438, %v3436
        %v3581 = vpack.c.bf16 %v3441, %v3439
        %v3582 = vpack.c.bf16 %v3442, %v3440
        %v3583 = vpack.c.bf16 %v3445, %v3443
        %v3584 = vpack.c.bf16 %v3446, %v3444
        %v3585 = vpack.c.bf16 %v3449, %v3447
        %v3586 = vpack.c.bf16 %v3450, %v3448
        %v3587 = vpack.c.bf16 %v3453, %v3451
        %v3588 = vpack.c.bf16 %v3454, %v3452
        %v3589 = vpack.c.bf16 %v3457, %v3455
        %v3590 = vpack.c.bf16 %v3458, %v3456
        %v3591 = vpack.c.bf16 %v3461, %v3459
        %v3592 = vpack.c.bf16 %v3462, %v3460
        %v3593 = vpack.c.bf16 %v3465, %v3463
        %v3594 = vpack.c.bf16 %v3466, %v3464
        %v3595 = vpack.c.bf16 %v3469, %v3467
        %v3596 = vpack.c.bf16 %v3470, %v3468
        %v3597 = vpack.c.bf16 %v3473, %v3471
        %v3598 = vpack.c.bf16 %v3474, %v3472
        %v3599 = vpack.c.bf16 %v3477, %v3475
        %v3600 = vpack.c.bf16 %v3478, %v3476
        %v3601 = vpack.c.bf16 %v3481, %v3479
        %v3602 = vpack.c.bf16 %v3482, %v3480
        %v3603 = vpack.c.bf16 %v3485, %v3483
        %v3604 = vpack.c.bf16 %v3486, %v3484
        %v3605 = vpack.c.bf16 %v3489, %v3487
        %v3606 = vpack.c.bf16 %v3490, %v3488
        %v3607 = vpack.c.bf16 %v3493, %v3491
        %v3608 = vpack.c.bf16 %v3494, %v3492
        %v3609 = vpack.c.bf16 %v3497, %v3495
        %v3610 = vpack.c.bf16 %v3498, %v3496
        %v3611 = vpack.c.bf16 %v3501, %v3499
        %v3612 = vpack.c.bf16 %v3502, %v3500
        %v3613 = vpack.c.bf16 %v3505, %v3503
        %v3614 = vpack.c.bf16 %v3506, %v3504
        %v3615 = vpack.c.bf16 %v3509, %v3507
        %v3616 = vpack.c.bf16 %v3510, %v3508
        %v3617 = vpack.c.bf16 %v3513, %v3511
        %v3618 = vpack.c.bf16 %v3514, %v3512
        %v3619 = vpack.c.bf16 %v3517, %v3515
        %v3620 = vpack.c.bf16 %v3518, %v3516
        %v3621 = vpack.c.bf16 %v3521, %v3519
        %v3622 = vpack.c.bf16 %v3522, %v3520
        %v3623 = vpack.c.bf16 %v3525, %v3523
        %v3624 = vpack.c.bf16 %v3526, %v3524
        %v3625 = vpack.c.bf16 %v3529, %v3527
        %v3626 = vpack.c.bf16 %v3530, %v3528
        %v3627 = vpack.c.bf16 %v3533, %v3531
        %v3628 = vpack.c.bf16 %v3534, %v3532
        %v3629 = vpack.c.bf16 %v3537, %v3535
        %v3630 = vpack.c.bf16 %v3538, %v3536
        %v3631 = vpack.c.bf16 %v3541, %v3539
        %v3632 = vpack.c.bf16 %v3542, %v3540
        %v3633 = vpack.c.bf16 %v3545, %v3543
        %v3634 = vpack.c.bf16 %v3546, %v3544
        %v3635 = vpack.c.bf16 %v3549, %v3547
        %v3636 = vpack.c.bf16 %v3550, %v3548
        %v3637 = vpack.c.bf16 %v3553, %v3551
        %v3638 = vpack.c.bf16 %v3554, %v3552
        %v3639 = vpack.c.bf16 %v3557, %v3555
        %v3640 = vpack.c.bf16 %v3558, %v3556
        %v3641 = vpack.c.bf16 %v3561, %v3559
        %v3642 = vpack.c.bf16 %v3562, %v3560
        %v3644 = vlaneseq
        %v3645 = vshrl.u32 %v3644, 7
        %v3646 = vsub.s32 0, %v3645
        %v3647 = vrot.slane %v324, %v3646
        %v3648 = vlaneseq
        %v3649 = vshrl.u32 %v3648, 7
        %v3650 = vsub.s32 1, %v3649
        %v3651 = vrot.slane %v324, %v3650
        %v3686 = vunpack.c.l.b16 %v391
        %v3687 = vunpack.c.h.b16 %v391
        %v3688 = vunpack.c.l.b16 %v392
        %v3689 = vunpack.c.h.b16 %v392
        %v3690 = vunpack.c.l.b16 %v393
        %v3691 = vunpack.c.h.b16 %v393
        %v3692 = vunpack.c.l.b16 %v394
        %v3693 = vunpack.c.h.b16 %v394
        %v3694 = vunpack.c.l.b16 %v395
        %v3695 = vunpack.c.h.b16 %v395
        %v3696 = vunpack.c.l.b16 %v396
        %v3697 = vunpack.c.h.b16 %v396
        %v3698 = vunpack.c.l.b16 %v397
        %v3699 = vunpack.c.h.b16 %v397
        %v3700 = vunpack.c.l.b16 %v398
        %v3701 = vunpack.c.h.b16 %v398
        %v3702 = vunpack.c.l.b16 %v399
        %v3703 = vunpack.c.h.b16 %v399
        %v3704 = vunpack.c.l.b16 %v400
        %v3705 = vunpack.c.h.b16 %v400
        %v3706 = vunpack.c.l.b16 %v401
        %v3707 = vunpack.c.h.b16 %v401
        %v3708 = vunpack.c.l.b16 %v402
        %v3709 = vunpack.c.h.b16 %v402
        %v3710 = vunpack.c.l.b16 %v403
        %v3711 = vunpack.c.h.b16 %v403
        %v3712 = vunpack.c.l.b16 %v404
        %v3713 = vunpack.c.h.b16 %v404
        %v3714 = vunpack.c.l.b16 %v405
        %v3715 = vunpack.c.h.b16 %v405
        %v3716 = vunpack.c.l.b16 %v406
        %v3717 = vunpack.c.h.b16 %v406
        %v3718 = vunpack.c.l.b16 %v407
        %v3719 = vunpack.c.h.b16 %v407
        %v3720 = vunpack.c.l.b16 %v408
        %v3721 = vunpack.c.h.b16 %v408
        %v3722 = vunpack.c.l.b16 %v409
        %v3723 = vunpack.c.h.b16 %v409
        %v3724 = vunpack.c.l.b16 %v410
        %v3725 = vunpack.c.h.b16 %v410
        %v3726 = vunpack.c.l.b16 %v411
        %v3727 = vunpack.c.h.b16 %v411
        %v3728 = vunpack.c.l.b16 %v412
        %v3729 = vunpack.c.h.b16 %v412
        %v3730 = vunpack.c.l.b16 %v413
        %v3731 = vunpack.c.h.b16 %v413
        %v3732 = vunpack.c.l.b16 %v414
        %v3733 = vunpack.c.h.b16 %v414
        %v3734 = vunpack.c.l.b16 %v415
        %v3735 = vunpack.c.h.b16 %v415
        %v3736 = vunpack.c.l.b16 %v416
        %v3737 = vunpack.c.h.b16 %v416
        %v3738 = vunpack.c.l.b16 %v417
        %v3739 = vunpack.c.h.b16 %v417
        %v3740 = vunpack.c.l.b16 %v418
        %v3741 = vunpack.c.h.b16 %v418
        %v3742 = vunpack.c.l.b16 %v419
        %v3743 = vunpack.c.h.b16 %v419
        %v3744 = vunpack.c.l.b16 %v420
        %v3745 = vunpack.c.h.b16 %v420
        %v3746 = vunpack.c.l.b16 %v421
        %v3747 = vunpack.c.h.b16 %v421
        %v3748 = vunpack.c.l.b16 %v422
        %v3749 = vunpack.c.h.b16 %v422
        %v3750 = vpack.c.b16 %v3688, %v3686
        %v3751 = vpack.c.b16 %v3689, %v3687
        %v3752 = vpack.c.b16 %v3692, %v3690
        %v3753 = vpack.c.b16 %v3693, %v3691
        %v3754 = vpack.c.b16 %v3696, %v3694
        %v3755 = vpack.c.b16 %v3697, %v3695
        %v3756 = vpack.c.b16 %v3700, %v3698
        %v3757 = vpack.c.b16 %v3701, %v3699
        %v3758 = vpack.c.b16 %v3704, %v3702
        %v3759 = vpack.c.b16 %v3705, %v3703
        %v3760 = vpack.c.b16 %v3708, %v3706
        %v3761 = vpack.c.b16 %v3709, %v3707
        %v3762 = vpack.c.b16 %v3712, %v3710
        %v3763 = vpack.c.b16 %v3713, %v3711
        %v3764 = vpack.c.b16 %v3716, %v3714
        %v3765 = vpack.c.b16 %v3717, %v3715
        %v3766 = vpack.c.b16 %v3720, %v3718
        %v3767 = vpack.c.b16 %v3721, %v3719
        %v3768 = vpack.c.b16 %v3724, %v3722
        %v3769 = vpack.c.b16 %v3725, %v3723
        %v3770 = vpack.c.b16 %v3728, %v3726
        %v3771 = vpack.c.b16 %v3729, %v3727
        %v3772 = vpack.c.b16 %v3732, %v3730
        %v3773 = vpack.c.b16 %v3733, %v3731
        %v3774 = vpack.c.b16 %v3736, %v3734
        %v3775 = vpack.c.b16 %v3737, %v3735
        %v3776 = vpack.c.b16 %v3740, %v3738
        %v3777 = vpack.c.b16 %v3741, %v3739
        %v3778 = vpack.c.b16 %v3744, %v3742
        %v3779 = vpack.c.b16 %v3745, %v3743
        %v3780 = vpack.c.b16 %v3748, %v3746
        %v3781 = vpack.c.b16 %v3749, %v3747
        %3814 = vmatprep.subr.bf16.mxu0 %v3751
        %3815 = vmatpush1.bf16.msra.mxu0 %v3750
        %3816 = vmatprep.subr.bf16.mxu0 %v3753
        %3817 = vmatpush1.bf16.msra.mxu0 %v3752
        %3818 = vmatprep.subr.bf16.mxu0 %v3755
        %3819 = vmatpush1.bf16.msra.mxu0 %v3754
        %3820 = vmatprep.subr.bf16.mxu0 %v3757
        %3821 = vmatpush1.bf16.msra.mxu0 %v3756
        %3822 = vmatprep.subr.bf16.mxu0 %v3759
        %3823 = vmatpush1.bf16.msra.mxu0 %v3758
        %3824 = vmatprep.subr.bf16.mxu0 %v3761
        %3825 = vmatpush1.bf16.msra.mxu0 %v3760
        %3826 = vmatprep.subr.bf16.mxu0 %v3763
        %3827 = vmatpush1.bf16.msra.mxu0 %v3762
        %3828 = vmatprep.subr.bf16.mxu0 %v3765
        %3829 = vmatpush1.bf16.msra.mxu0 %v3764
        %3830 = vmatprep.subr.bf16.mxu0 %v3767
        %3831 = vmatpush1.bf16.msra.mxu0 %v3766
        %3832 = vmatprep.subr.bf16.mxu0 %v3769
        %3833 = vmatpush1.bf16.msra.mxu0 %v3768
        %3834 = vmatprep.subr.bf16.mxu0 %v3771
        %3835 = vmatpush1.bf16.msra.mxu0 %v3770
        %3836 = vmatprep.subr.bf16.mxu0 %v3773
        %3837 = vmatpush1.bf16.msra.mxu0 %v3772
        %3838 = vmatprep.subr.bf16.mxu0 %v3775
        %3839 = vmatpush1.bf16.msra.mxu0 %v3774
        %3840 = vmatprep.subr.bf16.mxu0 %v3777
        %3841 = vmatpush1.bf16.msra.mxu0 %v3776
        %3842 = vmatprep.subr.bf16.mxu0 %v3779
        %3843 = vmatpush1.bf16.msra.mxu0 %v3778
        %3844 = vmatprep.subr.bf16.mxu0 %v3781
        %3845 = vmatpush1.bf16.msra.mxu0 %v3780
        %3846 = vmatprep.mubr.bf16.mxu0 %v3564
        %3847 = vmatmul.mubr.bf16.gmra.mrb[0].mxu0 %v3563
        %v3848 = vpop.f32.mrb[0].mxu0
        %v3849 = vadd.f32 %v3647, %v3848
        %v3850 = vpop.f32.mrb[0].mxu0
        %v3851 = vadd.f32 %v3651, %v3850
        %v3852 = vpop.f32.mrb[0].mxu0
        %v3853 = vadd.f32 %v3647, %v3852
        %v3854 = vpop.f32.mrb[0].mxu0
        %v3855 = vadd.f32 %v3651, %v3854
        %3856 = vmatprep.mubr.bf16.mxu0 %v3566
        %3857 = vmatmul.mubr.bf16.gmra.mrb[0].mxu0 %v3565
        %v3858 = vpop.f32.mrb[0].mxu0
        %v3859 = vadd.f32 %v3647, %v3858
        %v3860 = vpop.f32.mrb[0].mxu0
        %v3861 = vadd.f32 %v3651, %v3860
        %v3862 = vpop.f32.mrb[0].mxu0
        %v3863 = vadd.f32 %v3647, %v3862
        %v3864 = vpop.f32.mrb[0].mxu0
        %v3865 = vadd.f32 %v3651, %v3864
        %3866 = vmatprep.mubr.bf16.mxu0 %v3568
        %3867 = vmatmul.mubr.bf16.gmra.mrb[0].mxu0 %v3567
        %v3868 = vpop.f32.mrb[0].mxu0
        %v3869 = vadd.f32 %v3647, %v3868
        %v3870 = vpop.f32.mrb[0].mxu0
        %v3871 = vadd.f32 %v3651, %v3870
        %v3872 = vpop.f32.mrb[0].mxu0
        %v3873 = vadd.f32 %v3647, %v3872
        %v3874 = vpop.f32.mrb[0].mxu0
        %v3875 = vadd.f32 %v3651, %v3874
        %3876 = vmatprep.mubr.bf16.mxu0 %v3570
        %3877 = vmatmul.mubr.bf16.gmra.mrb[0].mxu0 %v3569
        %v3878 = vpop.f32.mrb[0].mxu0
        %v3879 = vadd.f32 %v3647, %v3878
        %v3880 = vpop.f32.mrb[0].mxu0
        %v3881 = vadd.f32 %v3651, %v3880
        %v3882 = vpop.f32.mrb[0].mxu0
        %v3883 = vadd.f32 %v3647, %v3882
        %v3884 = vpop.f32.mrb[0].mxu0
        %v3885 = vadd.f32 %v3651, %v3884
        %3886 = vmatprep.mubr.bf16.mxu0 %v3572
        %3887 = vmatmul.mubr.bf16.gmra.mrb[0].mxu0 %v3571
        %v3888 = vpop.f32.mrb[0].mxu0
        %v3889 = vadd.f32 %v3647, %v3888
        %v3890 = vpop.f32.mrb[0].mxu0
        %v3891 = vadd.f32 %v3651, %v3890
        %v3892 = vpop.f32.mrb[0].mxu0
        %v3893 = vadd.f32 %v3647, %v3892
        %v3894 = vpop.f32.mrb[0].mxu0
        %v3895 = vadd.f32 %v3651, %v3894
        %3896 = vmatprep.mubr.bf16.mxu0 %v3574
        %3897 = vmatmul.mubr.bf16.gmra.mrb[0].mxu0 %v3573
        %v3898 = vpop.f32.mrb[0].mxu0
        %v3899 = vadd.f32 %v3647, %v3898
        %v3900 = vpop.f32.mrb[0].mxu0
        %v3901 = vadd.f32 %v3651, %v3900
        %v3902 = vpop.f32.mrb[0].mxu0
        %v3903 = vadd.f32 %v3647, %v3902
        %v3904 = vpop.f32.mrb[0].mxu0
        %v3905 = vadd.f32 %v3651, %v3904
        %3906 = vmatprep.mubr.bf16.mxu0 %v3576
        %3907 = vmatmul.mubr.bf16.gmra.mrb[0].mxu0 %v3575
        %v3908 = vpop.f32.mrb[0].mxu0
        %v3909 = vadd.f32 %v3647, %v3908
        %v3910 = vpop.f32.mrb[0].mxu0
        %v3911 = vadd.f32 %v3651, %v3910
        %v3912 = vpop.f32.mrb[0].mxu0
        %v3913 = vadd.f32 %v3647, %v3912
        %v3914 = vpop.f32.mrb[0].mxu0
        %v3915 = vadd.f32 %v3651, %v3914
        %3916 = vmatprep.mubr.bf16.mxu0 %v3578
        %3917 = vmatmul.mubr.bf16.gmra.mrb[0].mxu0 %v3577
        %v3918 = vpop.f32.mrb[0].mxu0
        %v3919 = vadd.f32 %v3647, %v3918
        %v3920 = vpop.f32.mrb[0].mxu0
        %v3921 = vadd.f32 %v3651, %v3920
        %v3922 = vpop.f32.mrb[0].mxu0
        %v3923 = vadd.f32 %v3647, %v3922
        %v3924 = vpop.f32.mrb[0].mxu0
        %v3925 = vadd.f32 %v3651, %v3924
        %3926 = vmatprep.mubr.bf16.mxu0 %v3580
        %3927 = vmatmul.mubr.bf16.gmra.mrb[0].mxu0 %v3579
        %v3928 = vpop.f32.mrb[0].mxu0
        %v3929 = vadd.f32 %v3647, %v3928
        %v3930 = vpop.f32.mrb[0].mxu0
        %v3931 = vadd.f32 %v3651, %v3930
        %v3932 = vpop.f32.mrb[0].mxu0
        %v3933 = vadd.f32 %v3647, %v3932
        %v3934 = vpop.f32.mrb[0].mxu0
        %v3935 = vadd.f32 %v3651, %v3934
        %3936 = vmatprep.mubr.bf16.mxu0 %v3582
        %3937 = vmatmul.mubr.bf16.gmra.mrb[0].mxu0 %v3581
        %v3938 = vpop.f32.mrb[0].mxu0
        %v3939 = vadd.f32 %v3647, %v3938
        %v3940 = vpop.f32.mrb[0].mxu0
        %v3941 = vadd.f32 %v3651, %v3940
        %v3942 = vpop.f32.mrb[0].mxu0
        %v3943 = vadd.f32 %v3647, %v3942
        %v3944 = vpop.f32.mrb[0].mxu0
        %v3945 = vadd.f32 %v3651, %v3944
        %3946 = vmatprep.mubr.bf16.mxu0 %v3584
        %3947 = vmatmul.mubr.bf16.gmra.mrb[0].mxu0 %v3583
        %v3948 = vpop.f32.mrb[0].mxu0
        %v3949 = vadd.f32 %v3647, %v3948
        %v3950 = vpop.f32.mrb[0].mxu0
        %v3951 = vadd.f32 %v3651, %v3950
        %v3952 = vpop.f32.mrb[0].mxu0
        %v3953 = vadd.f32 %v3647, %v3952
        %v3954 = vpop.f32.mrb[0].mxu0
        %v3955 = vadd.f32 %v3651, %v3954
        %3956 = vmatprep.mubr.bf16.mxu0 %v3586
        %3957 = vmatmul.mubr.bf16.gmra.mrb[0].mxu0 %v3585
        %v3958 = vpop.f32.mrb[0].mxu0
        %v3959 = vadd.f32 %v3647, %v3958
        %v3960 = vpop.f32.mrb[0].mxu0
        %v3961 = vadd.f32 %v3651, %v3960
        %v3962 = vpop.f32.mrb[0].mxu0
        %v3963 = vadd.f32 %v3647, %v3962
        %v3964 = vpop.f32.mrb[0].mxu0
        %v3965 = vadd.f32 %v3651, %v3964
        %3966 = vmatprep.mubr.bf16.mxu0 %v3588
        %3967 = vmatmul.mubr.bf16.gmra.mrb[0].mxu0 %v3587
        %v3968 = vpop.f32.mrb[0].mxu0
        %v3969 = vadd.f32 %v3647, %v3968
        %v3970 = vpop.f32.mrb[0].mxu0
        %v3971 = vadd.f32 %v3651, %v3970
        %v3972 = vpop.f32.mrb[0].mxu0
        %v3973 = vadd.f32 %v3647, %v3972
        %v3974 = vpop.f32.mrb[0].mxu0
        %v3975 = vadd.f32 %v3651, %v3974
        %3976 = vmatprep.mubr.bf16.mxu0 %v3590
        %3977 = vmatmul.mubr.bf16.gmra.mrb[0].mxu0 %v3589
        %v3978 = vpop.f32.mrb[0].mxu0
        %v3979 = vadd.f32 %v3647, %v3978
        %v3980 = vpop.f32.mrb[0].mxu0
        %v3981 = vadd.f32 %v3651, %v3980
        %v3982 = vpop.f32.mrb[0].mxu0
        %v3983 = vadd.f32 %v3647, %v3982
        %v3984 = vpop.f32.mrb[0].mxu0
        %v3985 = vadd.f32 %v3651, %v3984
        %3986 = vmatprep.mubr.bf16.mxu0 %v3592
        %3987 = vmatmul.mubr.bf16.gmra.mrb[0].mxu0 %v3591
        %v3988 = vpop.f32.mrb[0].mxu0
        %v3989 = vadd.f32 %v3647, %v3988
        %v3990 = vpop.f32.mrb[0].mxu0
        %v3991 = vadd.f32 %v3651, %v3990
        %v3992 = vpop.f32.mrb[0].mxu0
        %v3993 = vadd.f32 %v3647, %v3992
        %v3994 = vpop.f32.mrb[0].mxu0
        %v3995 = vadd.f32 %v3651, %v3994
        %3996 = vmatprep.mubr.bf16.mxu0 %v3594
        %3997 = vmatmul.mubr.bf16.gmra.mrb[0].mxu0 %v3593
        %v3998 = vpop.f32.mrb[0].mxu0
        %v3999 = vadd.f32 %v3647, %v3998
        %v4000 = vpop.f32.mrb[0].mxu0
        %v4001 = vadd.f32 %v3651, %v4000
        %v4002 = vpop.f32.mrb[0].mxu0
        %v4003 = vadd.f32 %v3647, %v4002
        %v4004 = vpop.f32.mrb[0].mxu0
        %v4005 = vadd.f32 %v3651, %v4004
        %4006 = vmatprep.mubr.bf16.mxu0 %v3596
        %4007 = vmatmul.mubr.bf16.gmra.mrb[0].mxu0 %v3595
        %v4008 = vpop.f32.mrb[0].mxu0
        %v4009 = vadd.f32 %v3647, %v4008
        %v4010 = vpop.f32.mrb[0].mxu0
        %v4011 = vadd.f32 %v3651, %v4010
        %v4012 = vpop.f32.mrb[0].mxu0
        %v4013 = vadd.f32 %v3647, %v4012
        %v4014 = vpop.f32.mrb[0].mxu0
        %v4015 = vadd.f32 %v3651, %v4014
        %4016 = vmatprep.mubr.bf16.mxu0 %v3598
        %4017 = vmatmul.mubr.bf16.gmra.mrb[0].mxu0 %v3597
        %v4018 = vpop.f32.mrb[0].mxu0
        %v4019 = vadd.f32 %v3647, %v4018
        %v4020 = vpop.f32.mrb[0].mxu0
        %v4021 = vadd.f32 %v3651, %v4020
        %v4022 = vpop.f32.mrb[0].mxu0
        %v4023 = vadd.f32 %v3647, %v4022
        %v4024 = vpop.f32.mrb[0].mxu0
        %v4025 = vadd.f32 %v3651, %v4024
        %4026 = vmatprep.mubr.bf16.mxu0 %v3600
        %4027 = vmatmul.mubr.bf16.gmra.mrb[0].mxu0 %v3599
        %v4028 = vpop.f32.mrb[0].mxu0
        %v4029 = vadd.f32 %v3647, %v4028
        %v4030 = vpop.f32.mrb[0].mxu0
        %v4031 = vadd.f32 %v3651, %v4030
        %v4032 = vpop.f32.mrb[0].mxu0
        %v4033 = vadd.f32 %v3647, %v4032
        %v4034 = vpop.f32.mrb[0].mxu0
        %v4035 = vadd.f32 %v3651, %v4034
        %4036 = vmatprep.mubr.bf16.mxu0 %v3602
        %4037 = vmatmul.mubr.bf16.gmra.mrb[0].mxu0 %v3601
        %v4038 = vpop.f32.mrb[0].mxu0
        %v4039 = vadd.f32 %v3647, %v4038
        %v4040 = vpop.f32.mrb[0].mxu0
        %v4041 = vadd.f32 %v3651, %v4040
        %v4042 = vpop.f32.mrb[0].mxu0
        %v4043 = vadd.f32 %v3647, %v4042
        %v4044 = vpop.f32.mrb[0].mxu0
        %v4045 = vadd.f32 %v3651, %v4044
        %4046 = vmatprep.mubr.bf16.mxu0 %v3604
        %4047 = vmatmul.mubr.bf16.gmra.mrb[0].mxu0 %v3603
        %v4048 = vpop.f32.mrb[0].mxu0
        %v4049 = vadd.f32 %v3647, %v4048
        %v4050 = vpop.f32.mrb[0].mxu0
        %v4051 = vadd.f32 %v3651, %v4050
        %v4052 = vpop.f32.mrb[0].mxu0
        %v4053 = vadd.f32 %v3647, %v4052
        %v4054 = vpop.f32.mrb[0].mxu0
        %v4055 = vadd.f32 %v3651, %v4054
        %4056 = vmatprep.mubr.bf16.mxu0 %v3606
        %4057 = vmatmul.mubr.bf16.gmra.mrb[0].mxu0 %v3605
        %v4058 = vpop.f32.mrb[0].mxu0
        %v4059 = vadd.f32 %v3647, %v4058
        %v4060 = vpop.f32.mrb[0].mxu0
        %v4061 = vadd.f32 %v3651, %v4060
        %v4062 = vpop.f32.mrb[0].mxu0
        %v4063 = vadd.f32 %v3647, %v4062
        %v4064 = vpop.f32.mrb[0].mxu0
        %v4065 = vadd.f32 %v3651, %v4064
        %4066 = vmatprep.mubr.bf16.mxu0 %v3608
        %4067 = vmatmul.mubr.bf16.gmra.mrb[0].mxu0 %v3607
        %v4068 = vpop.f32.mrb[0].mxu0
        %v4069 = vadd.f32 %v3647, %v4068
        %v4070 = vpop.f32.mrb[0].mxu0
        %v4071 = vadd.f32 %v3651, %v4070
        %v4072 = vpop.f32.mrb[0].mxu0
        %v4073 = vadd.f32 %v3647, %v4072
        %v4074 = vpop.f32.mrb[0].mxu0
        %v4075 = vadd.f32 %v3651, %v4074
        %4076 = vmatprep.mubr.bf16.mxu0 %v3610
        %4077 = vmatmul.mubr.bf16.gmra.mrb[0].mxu0 %v3609
        %v4078 = vpop.f32.mrb[0].mxu0
        %v4079 = vadd.f32 %v3647, %v4078
        %v4080 = vpop.f32.mrb[0].mxu0
        %v4081 = vadd.f32 %v3651, %v4080
        %v4082 = vpop.f32.mrb[0].mxu0
        %v4083 = vadd.f32 %v3647, %v4082
        %v4084 = vpop.f32.mrb[0].mxu0
        %v4085 = vadd.f32 %v3651, %v4084
        %4086 = vmatprep.mubr.bf16.mxu0 %v3612
        %4087 = vmatmul.mubr.bf16.gmra.mrb[0].mxu0 %v3611
        %v4088 = vpop.f32.mrb[0].mxu0
        %v4089 = vadd.f32 %v3647, %v4088
        %v4090 = vpop.f32.mrb[0].mxu0
        %v4091 = vadd.f32 %v3651, %v4090
        %v4092 = vpop.f32.mrb[0].mxu0
        %v4093 = vadd.f32 %v3647, %v4092
        %v4094 = vpop.f32.mrb[0].mxu0
        %v4095 = vadd.f32 %v3651, %v4094
        %4096 = vmatprep.mubr.bf16.mxu0 %v3614
        %4097 = vmatmul.mubr.bf16.gmra.mrb[0].mxu0 %v3613
        %v4098 = vpop.f32.mrb[0].mxu0
        %v4099 = vadd.f32 %v3647, %v4098
        %v4100 = vpop.f32.mrb[0].mxu0
        %v4101 = vadd.f32 %v3651, %v4100
        %v4102 = vpop.f32.mrb[0].mxu0
        %v4103 = vadd.f32 %v3647, %v4102
        %v4104 = vpop.f32.mrb[0].mxu0
        %v4105 = vadd.f32 %v3651, %v4104
        %4106 = vmatprep.mubr.bf16.mxu0 %v3616
        %4107 = vmatmul.mubr.bf16.gmra.mrb[0].mxu0 %v3615
        %v4108 = vpop.f32.mrb[0].mxu0
        %v4109 = vadd.f32 %v3647, %v4108
        %v4110 = vpop.f32.mrb[0].mxu0
        %v4111 = vadd.f32 %v3651, %v4110
        %v4112 = vpop.f32.mrb[0].mxu0
        %v4113 = vadd.f32 %v3647, %v4112
        %v4114 = vpop.f32.mrb[0].mxu0
        %v4115 = vadd.f32 %v3651, %v4114
        %4116 = vmatprep.mubr.bf16.mxu0 %v3618
        %4117 = vmatmul.mubr.bf16.gmra.mrb[0].mxu0 %v3617
        %v4118 = vpop.f32.mrb[0].mxu0
        %v4119 = vadd.f32 %v3647, %v4118
        %v4120 = vpop.f32.mrb[0].mxu0
        %v4121 = vadd.f32 %v3651, %v4120
        %v4122 = vpop.f32.mrb[0].mxu0
        %v4123 = vadd.f32 %v3647, %v4122
        %v4124 = vpop.f32.mrb[0].mxu0
        %v4125 = vadd.f32 %v3651, %v4124
        %4126 = vmatprep.mubr.bf16.mxu0 %v3620
        %4127 = vmatmul.mubr.bf16.gmra.mrb[0].mxu0 %v3619
        %v4128 = vpop.f32.mrb[0].mxu0
        %v4129 = vadd.f32 %v3647, %v4128
        %v4130 = vpop.f32.mrb[0].mxu0
        %v4131 = vadd.f32 %v3651, %v4130
        %v4132 = vpop.f32.mrb[0].mxu0
        %v4133 = vadd.f32 %v3647, %v4132
        %v4134 = vpop.f32.mrb[0].mxu0
        %v4135 = vadd.f32 %v3651, %v4134
        %4136 = vmatprep.mubr.bf16.mxu0 %v3622
        %4137 = vmatmul.mubr.bf16.gmra.mrb[0].mxu0 %v3621
        %v4138 = vpop.f32.mrb[0].mxu0
        %v4139 = vadd.f32 %v3647, %v4138
        %v4140 = vpop.f32.mrb[0].mxu0
        %v4141 = vadd.f32 %v3651, %v4140
        %v4142 = vpop.f32.mrb[0].mxu0
        %v4143 = vadd.f32 %v3647, %v4142
        %v4144 = vpop.f32.mrb[0].mxu0
        %v4145 = vadd.f32 %v3651, %v4144
        %4146 = vmatprep.mubr.bf16.mxu0 %v3624
        %4147 = vmatmul.mubr.bf16.gmra.mrb[0].mxu0 %v3623
        %v4148 = vpop.f32.mrb[0].mxu0
        %v4149 = vadd.f32 %v3647, %v4148
        %v4150 = vpop.f32.mrb[0].mxu0
        %v4151 = vadd.f32 %v3651, %v4150
        %v4152 = vpop.f32.mrb[0].mxu0
        %v4153 = vadd.f32 %v3647, %v4152
        %v4154 = vpop.f32.mrb[0].mxu0
        %v4155 = vadd.f32 %v3651, %v4154
        %4156 = vmatprep.mubr.bf16.mxu0 %v3626
        %4157 = vmatmul.mubr.bf16.gmra.mrb[0].mxu0 %v3625
        %v4158 = vpop.f32.mrb[0].mxu0
        %v4159 = vadd.f32 %v3647, %v4158
        %v4160 = vpop.f32.mrb[0].mxu0
        %v4161 = vadd.f32 %v3651, %v4160
        %v4162 = vpop.f32.mrb[0].mxu0
        %v4163 = vadd.f32 %v3647, %v4162
        %v4164 = vpop.f32.mrb[0].mxu0
        %v4165 = vadd.f32 %v3651, %v4164
        %4166 = vmatprep.mubr.bf16.mxu0 %v3628
        %4167 = vmatmul.mubr.bf16.gmra.mrb[0].mxu0 %v3627
        %v4168 = vpop.f32.mrb[0].mxu0
        %v4169 = vadd.f32 %v3647, %v4168
        %v4170 = vpop.f32.mrb[0].mxu0
        %v4171 = vadd.f32 %v3651, %v4170
        %v4172 = vpop.f32.mrb[0].mxu0
        %v4173 = vadd.f32 %v3647, %v4172
        %v4174 = vpop.f32.mrb[0].mxu0
        %v4175 = vadd.f32 %v3651, %v4174
        %4176 = vmatprep.mubr.bf16.mxu0 %v3630
        %4177 = vmatmul.mubr.bf16.gmra.mrb[0].mxu0 %v3629
        %v4178 = vpop.f32.mrb[0].mxu0
        %v4179 = vadd.f32 %v3647, %v4178
        %v4180 = vpop.f32.mrb[0].mxu0
        %v4181 = vadd.f32 %v3651, %v4180
        %v4182 = vpop.f32.mrb[0].mxu0
        %v4183 = vadd.f32 %v3647, %v4182
        %v4184 = vpop.f32.mrb[0].mxu0
        %v4185 = vadd.f32 %v3651, %v4184
        %4186 = vmatprep.mubr.bf16.mxu0 %v3632
        %4187 = vmatmul.mubr.bf16.gmra.mrb[0].mxu0 %v3631
        %v4188 = vpop.f32.mrb[0].mxu0
        %v4189 = vadd.f32 %v3647, %v4188
        %v4190 = vpop.f32.mrb[0].mxu0
        %v4191 = vadd.f32 %v3651, %v4190
        %v4192 = vpop.f32.mrb[0].mxu0
        %v4193 = vadd.f32 %v3647, %v4192
        %v4194 = vpop.f32.mrb[0].mxu0
        %v4195 = vadd.f32 %v3651, %v4194
        %4196 = vmatprep.mubr.bf16.mxu0 %v3634
        %4197 = vmatmul.mubr.bf16.gmra.mrb[0].mxu0 %v3633
        %v4198 = vpop.f32.mrb[0].mxu0
        %v4199 = vadd.f32 %v3647, %v4198
        %v4200 = vpop.f32.mrb[0].mxu0
        %v4201 = vadd.f32 %v3651, %v4200
        %v4202 = vpop.f32.mrb[0].mxu0
        %v4203 = vadd.f32 %v3647, %v4202
        %v4204 = vpop.f32.mrb[0].mxu0
        %v4205 = vadd.f32 %v3651, %v4204
        %4206 = vmatprep.mubr.bf16.mxu0 %v3636
        %4207 = vmatmul.mubr.bf16.gmra.mrb[0].mxu0 %v3635
        %v4208 = vpop.f32.mrb[0].mxu0
        %v4209 = vadd.f32 %v3647, %v4208
        %v4210 = vpop.f32.mrb[0].mxu0
        %v4211 = vadd.f32 %v3651, %v4210
        %v4212 = vpop.f32.mrb[0].mxu0
        %v4213 = vadd.f32 %v3647, %v4212
        %v4214 = vpop.f32.mrb[0].mxu0
        %v4215 = vadd.f32 %v3651, %v4214
        %4216 = vmatprep.mubr.bf16.mxu0 %v3638
        %4217 = vmatmul.mubr.bf16.gmra.mrb[0].mxu0 %v3637
        %v4218 = vpop.f32.mrb[0].mxu0
        %v4219 = vadd.f32 %v3647, %v4218
        %v4220 = vpop.f32.mrb[0].mxu0
        %v4221 = vadd.f32 %v3651, %v4220
        %v4222 = vpop.f32.mrb[0].mxu0
        %v4223 = vadd.f32 %v3647, %v4222
        %v4224 = vpop.f32.mrb[0].mxu0
        %v4225 = vadd.f32 %v3651, %v4224
        %4226 = vmatprep.mubr.bf16.mxu0 %v3640
        %4227 = vmatmul.mubr.bf16.gmra.mrb[0].mxu0 %v3639
        %v4228 = vpop.f32.mrb[0].mxu0
        %v4229 = vadd.f32 %v3647, %v4228
        %v4230 = vpop.f32.mrb[0].mxu0
        %v4231 = vadd.f32 %v3651, %v4230
        %v4232 = vpop.f32.mrb[0].mxu0
        %v4233 = vadd.f32 %v3647, %v4232
        %v4234 = vpop.f32.mrb[0].mxu0
        %v4235 = vadd.f32 %v3651, %v4234
        %4236 = vmatprep.mubr.bf16.mxu0 %v3642
        %4237 = vmatmul.mubr.bf16.gmra.mrb[0].mxu0 %v3641
        %v4238 = vpop.f32.mrb[0].mxu0
        %v4239 = vadd.f32 %v3647, %v4238
        %v4240 = vpop.f32.mrb[0].mxu0
        %v4241 = vadd.f32 %v3651, %v4240
        %v4242 = vpop.f32.mrb[0].mxu0
        %v4243 = vadd.f32 %v3647, %v4242
        %v4244 = vpop.f32.mrb[0].mxu0
        %v4245 = vadd.f32 %v3651, %v4244
        %4246 = vdwg.mxu0
        %v4247 = vmax.f32 %v3849, 0.0
        %v4248 = vmax.f32 %v3851, 0.0
        %v4249 = vmax.f32 %v3853, 0.0
        %v4250 = vmax.f32 %v3855, 0.0
        %v4251 = vmax.f32 %v3859, 0.0
        %v4252 = vmax.f32 %v3861, 0.0
        %v4253 = vmax.f32 %v3863, 0.0
        %v4254 = vmax.f32 %v3865, 0.0
        %v4255 = vmax.f32 %v3869, 0.0
        %v4256 = vmax.f32 %v3871, 0.0
        %v4257 = vmax.f32 %v3873, 0.0
        %v4258 = vmax.f32 %v3875, 0.0
        %v4259 = vmax.f32 %v3879, 0.0
        %v4260 = vmax.f32 %v3881, 0.0
        %v4261 = vmax.f32 %v3883, 0.0
        %v4262 = vmax.f32 %v3885, 0.0
        %v4263 = vmax.f32 %v3889, 0.0
        %v4264 = vmax.f32 %v3891, 0.0
        %v4265 = vmax.f32 %v3893, 0.0
        %v4266 = vmax.f32 %v3895, 0.0
        %v4267 = vmax.f32 %v3899, 0.0
        %v4268 = vmax.f32 %v3901, 0.0
        %v4269 = vmax.f32 %v3903, 0.0
        %v4270 = vmax.f32 %v3905, 0.0
        %v4271 = vmax.f32 %v3909, 0.0
        %v4272 = vmax.f32 %v3911, 0.0
        %v4273 = vmax.f32 %v3913, 0.0
        %v4274 = vmax.f32 %v3915, 0.0
        %v4275 = vmax.f32 %v3919, 0.0
        %v4276 = vmax.f32 %v3921, 0.0
        %v4277 = vmax.f32 %v3923, 0.0
        %v4278 = vmax.f32 %v3925, 0.0
        %v4279 = vmax.f32 %v3929, 0.0
        %v4280 = vmax.f32 %v3931, 0.0
        %v4281 = vmax.f32 %v3933, 0.0
        %v4282 = vmax.f32 %v3935, 0.0
        %v4283 = vmax.f32 %v3939, 0.0
        %v4284 = vmax.f32 %v3941, 0.0
        %v4285 = vmax.f32 %v3943, 0.0
        %v4286 = vmax.f32 %v3945, 0.0
        %v4287 = vmax.f32 %v3949, 0.0
        %v4288 = vmax.f32 %v3951, 0.0
        %v4289 = vmax.f32 %v3953, 0.0
        %v4290 = vmax.f32 %v3955, 0.0
        %v4291 = vmax.f32 %v3959, 0.0
        %v4292 = vmax.f32 %v3961, 0.0
        %v4293 = vmax.f32 %v3963, 0.0
        %v4294 = vmax.f32 %v3965, 0.0
        %v4295 = vmax.f32 %v3969, 0.0
        %v4296 = vmax.f32 %v3971, 0.0
        %v4297 = vmax.f32 %v3973, 0.0
        %v4298 = vmax.f32 %v3975, 0.0
        %v4299 = vmax.f32 %v3979, 0.0
        %v4300 = vmax.f32 %v3981, 0.0
        %v4301 = vmax.f32 %v3983, 0.0
        %v4302 = vmax.f32 %v3985, 0.0
        %v4303 = vmax.f32 %v3989, 0.0
        %v4304 = vmax.f32 %v3991, 0.0
        %v4305 = vmax.f32 %v3993, 0.0
        %v4306 = vmax.f32 %v3995, 0.0
        %v4307 = vmax.f32 %v3999, 0.0
        %v4308 = vmax.f32 %v4001, 0.0
        %v4309 = vmax.f32 %v4003, 0.0
        %v4310 = vmax.f32 %v4005, 0.0
        %v4311 = vmax.f32 %v4009, 0.0
        %v4312 = vmax.f32 %v4011, 0.0
        %v4313 = vmax.f32 %v4013, 0.0
        %v4314 = vmax.f32 %v4015, 0.0
        %v4315 = vmax.f32 %v4019, 0.0
        %v4316 = vmax.f32 %v4021, 0.0
        %v4317 = vmax.f32 %v4023, 0.0
        %v4318 = vmax.f32 %v4025, 0.0
        %v4319 = vmax.f32 %v4029, 0.0
        %v4320 = vmax.f32 %v4031, 0.0
        %v4321 = vmax.f32 %v4033, 0.0
        %v4322 = vmax.f32 %v4035, 0.0
        %v4323 = vmax.f32 %v4039, 0.0
        %v4324 = vmax.f32 %v4041, 0.0
        %v4325 = vmax.f32 %v4043, 0.0
        %v4326 = vmax.f32 %v4045, 0.0
        %v4327 = vmax.f32 %v4049, 0.0
        %v4328 = vmax.f32 %v4051, 0.0
        %v4329 = vmax.f32 %v4053, 0.0
        %v4330 = vmax.f32 %v4055, 0.0
        %v4331 = vmax.f32 %v4059, 0.0
        %v4332 = vmax.f32 %v4061, 0.0
        %v4333 = vmax.f32 %v4063, 0.0
        %v4334 = vmax.f32 %v4065, 0.0
        %v4335 = vmax.f32 %v4069, 0.0
        %v4336 = vmax.f32 %v4071, 0.0
        %v4337 = vmax.f32 %v4073, 0.0
        %v4338 = vmax.f32 %v4075, 0.0
        %v4339 = vmax.f32 %v4079, 0.0
        %v4340 = vmax.f32 %v4081, 0.0
        %v4341 = vmax.f32 %v4083, 0.0
        %v4342 = vmax.f32 %v4085, 0.0
        %v4343 = vmax.f32 %v4089, 0.0
        %v4344 = vmax.f32 %v4091, 0.0
        %v4345 = vmax.f32 %v4093, 0.0
        %v4346 = vmax.f32 %v4095, 0.0
        %v4347 = vmax.f32 %v4099, 0.0
        %v4348 = vmax.f32 %v4101, 0.0
        %v4349 = vmax.f32 %v4103, 0.0
        %v4350 = vmax.f32 %v4105, 0.0
        %v4351 = vmax.f32 %v4109, 0.0
        %v4352 = vmax.f32 %v4111, 0.0
        %v4353 = vmax.f32 %v4113, 0.0
        %v4354 = vmax.f32 %v4115, 0.0
        %v4355 = vmax.f32 %v4119, 0.0
        %v4356 = vmax.f32 %v4121, 0.0
        %v4357 = vmax.f32 %v4123, 0.0
        %v4358 = vmax.f32 %v4125, 0.0
        %v4359 = vmax.f32 %v4129, 0.0
        %v4360 = vmax.f32 %v4131, 0.0
        %v4361 = vmax.f32 %v4133, 0.0
        %v4362 = vmax.f32 %v4135, 0.0
        %v4363 = vmax.f32 %v4139, 0.0
        %v4364 = vmax.f32 %v4141, 0.0
        %v4365 = vmax.f32 %v4143, 0.0
        %v4366 = vmax.f32 %v4145, 0.0
        %v4367 = vmax.f32 %v4149, 0.0
        %v4368 = vmax.f32 %v4151, 0.0
        %v4369 = vmax.f32 %v4153, 0.0
        %v4370 = vmax.f32 %v4155, 0.0
        %v4371 = vmax.f32 %v4159, 0.0
        %v4372 = vmax.f32 %v4161, 0.0
        %v4373 = vmax.f32 %v4163, 0.0
        %v4374 = vmax.f32 %v4165, 0.0
        %v4375 = vmax.f32 %v4169, 0.0
        %v4376 = vmax.f32 %v4171, 0.0
        %v4377 = vmax.f32 %v4173, 0.0
        %v4378 = vmax.f32 %v4175, 0.0
        %v4379 = vmax.f32 %v4179, 0.0
        %v4380 = vmax.f32 %v4181, 0.0
        %v4381 = vmax.f32 %v4183, 0.0
        %v4382 = vmax.f32 %v4185, 0.0
        %v4383 = vmax.f32 %v4189, 0.0
        %v4384 = vmax.f32 %v4191, 0.0
        %v4385 = vmax.f32 %v4193, 0.0
        %v4386 = vmax.f32 %v4195, 0.0
        %v4387 = vmax.f32 %v4199, 0.0
        %v4388 = vmax.f32 %v4201, 0.0
        %v4389 = vmax.f32 %v4203, 0.0
        %v4390 = vmax.f32 %v4205, 0.0
        %v4391 = vmax.f32 %v4209, 0.0
        %v4392 = vmax.f32 %v4211, 0.0
        %v4393 = vmax.f32 %v4213, 0.0
        %v4394 = vmax.f32 %v4215, 0.0
        %v4395 = vmax.f32 %v4219, 0.0
        %v4396 = vmax.f32 %v4221, 0.0
        %v4397 = vmax.f32 %v4223, 0.0
        %v4398 = vmax.f32 %v4225, 0.0
        %v4399 = vmax.f32 %v4229, 0.0
        %v4400 = vmax.f32 %v4231, 0.0
        %v4401 = vmax.f32 %v4233, 0.0
        %v4402 = vmax.f32 %v4235, 0.0
        %v4403 = vmax.f32 %v4239, 0.0
        %v4404 = vmax.f32 %v4241, 0.0
        %v4405 = vmax.f32 %v4243, 0.0
        %v4406 = vmax.f32 %v4245, 0.0
        %v4407 = vadd.f32 %v4247, %v4249
        %v4408 = vadd.f32 %v4407, %v4251
        %v4409 = vadd.f32 %v4408, %v4253
        %v4410 = vadd.f32 %v4409, %v4255
        %v4411 = vadd.f32 %v4410, %v4257
        %v4412 = vadd.f32 %v4411, %v4259
        %v4413 = vadd.f32 %v4412, %v4261
        %v4414 = vadd.f32 %v4413, %v4263
        %v4415 = vadd.f32 %v4414, %v4265
        %v4416 = vadd.f32 %v4415, %v4267
        %v4417 = vadd.f32 %v4416, %v4269
        %v4418 = vadd.f32 %v4417, %v4271
        %v4419 = vadd.f32 %v4418, %v4273
        %v4420 = vadd.f32 %v4419, %v4275
        %v4421 = vadd.f32 %v4420, %v4277
        %v4422 = vadd.f32 %v4421, %v4279
        %v4423 = vadd.f32 %v4422, %v4281
        %v4424 = vadd.f32 %v4423, %v4283
        %v4425 = vadd.f32 %v4424, %v4285
        %v4426 = vadd.f32 %v4425, %v4287
        %v4427 = vadd.f32 %v4426, %v4289
        %v4428 = vadd.f32 %v4427, %v4291
        %v4429 = vadd.f32 %v4428, %v4293
        %v4430 = vadd.f32 %v4429, %v4295
        %v4431 = vadd.f32 %v4430, %v4297
        %v4432 = vadd.f32 %v4431, %v4299
        %v4433 = vadd.f32 %v4432, %v4301
        %v4434 = vadd.f32 %v4433, %v4303
        %v4435 = vadd.f32 %v4434, %v4305
        %v4436 = vadd.f32 %v4435, %v4307
        %v4437 = vadd.f32 %v4436, %v4309
        %v4438 = vadd.f32 %v4437, %v4311
        %v4439 = vadd.f32 %v4438, %v4313
        %v4440 = vadd.f32 %v4439, %v4315
        %v4441 = vadd.f32 %v4440, %v4317
        %v4442 = vadd.f32 %v4441, %v4319
        %v4443 = vadd.f32 %v4442, %v4321
        %v4444 = vadd.f32 %v4443, %v4323
        %v4445 = vadd.f32 %v4444, %v4325
        %v4446 = vadd.f32 %v4445, %v4327
        %v4447 = vadd.f32 %v4446, %v4329
        %v4448 = vadd.f32 %v4447, %v4331
        %v4449 = vadd.f32 %v4448, %v4333
        %v4450 = vadd.f32 %v4449, %v4335
        %v4451 = vadd.f32 %v4450, %v4337
        %v4452 = vadd.f32 %v4451, %v4339
        %v4453 = vadd.f32 %v4452, %v4341
        %v4454 = vadd.f32 %v4453, %v4343
        %v4455 = vadd.f32 %v4454, %v4345
        %v4456 = vadd.f32 %v4455, %v4347
        %v4457 = vadd.f32 %v4456, %v4349
        %v4458 = vadd.f32 %v4457, %v4351
        %v4459 = vadd.f32 %v4458, %v4353
        %v4460 = vadd.f32 %v4459, %v4355
        %v4461 = vadd.f32 %v4460, %v4357
        %v4462 = vadd.f32 %v4461, %v4359
        %v4463 = vadd.f32 %v4462, %v4361
        %v4464 = vadd.f32 %v4463, %v4363
        %v4465 = vadd.f32 %v4464, %v4365
        %v4466 = vadd.f32 %v4465, %v4367
        %v4467 = vadd.f32 %v4466, %v4369
        %v4468 = vadd.f32 %v4467, %v4371
        %v4469 = vadd.f32 %v4468, %v4373
        %v4470 = vadd.f32 %v4469, %v4375
        %v4471 = vadd.f32 %v4470, %v4377
        %v4472 = vadd.f32 %v4471, %v4379
        %v4473 = vadd.f32 %v4472, %v4381
        %v4474 = vadd.f32 %v4473, %v4383
        %v4475 = vadd.f32 %v4474, %v4385
        %v4476 = vadd.f32 %v4475, %v4387
        %v4477 = vadd.f32 %v4476, %v4389
        %v4478 = vadd.f32 %v4477, %v4391
        %v4479 = vadd.f32 %v4478, %v4393
        %v4480 = vadd.f32 %v4479, %v4395
        %v4481 = vadd.f32 %v4480, %v4397
        %v4482 = vadd.f32 %v4481, %v4399
        %v4483 = vadd.f32 %v4482, %v4401
        %v4484 = vadd.f32 %v4483, %v4403
        %v4485 = vadd.f32 %v4484, %v4405
        %v4486 = vrot.slane %v4485, 4
        %v4487 = vadd.f32 %v4485, %v4486
        %v4488 = vrot.slane %v4487, 2
        %v4489 = vadd.f32 %v4487, %v4488
        %v4490 = vrot.slane %v4489, 1
        %v4491 = vadd.f32 %v4489, %v4490
        %v4492 = vadd.f32 %v4248, %v4250
        %v4493 = vadd.f32 %v4492, %v4252
        %v4494 = vadd.f32 %v4493, %v4254
        %v4495 = vadd.f32 %v4494, %v4256
        %v4496 = vadd.f32 %v4495, %v4258
        %v4497 = vadd.f32 %v4496, %v4260
        %v4498 = vadd.f32 %v4497, %v4262
        %v4499 = vadd.f32 %v4498, %v4264
        %v4500 = vadd.f32 %v4499, %v4266
        %v4501 = vadd.f32 %v4500, %v4268
        %v4502 = vadd.f32 %v4501, %v4270
        %v4503 = vadd.f32 %v4502, %v4272
        %v4504 = vadd.f32 %v4503, %v4274
        %v4505 = vadd.f32 %v4504, %v4276
        %v4506 = vadd.f32 %v4505, %v4278
        %v4507 = vadd.f32 %v4506, %v4280
        %v4508 = vadd.f32 %v4507, %v4282
        %v4509 = vadd.f32 %v4508, %v4284
        %v4510 = vadd.f32 %v4509, %v4286
        %v4511 = vadd.f32 %v4510, %v4288
        %v4512 = vadd.f32 %v4511, %v4290
        %v4513 = vadd.f32 %v4512, %v4292
        %v4514 = vadd.f32 %v4513, %v4294
        %v4515 = vadd.f32 %v4514, %v4296
        %v4516 = vadd.f32 %v4515, %v4298
        %v4517 = vadd.f32 %v4516, %v4300
        %v4518 = vadd.f32 %v4517, %v4302
        %v4519 = vadd.f32 %v4518, %v4304
        %v4520 = vadd.f32 %v4519, %v4306
        %v4521 = vadd.f32 %v4520, %v4308
        %v4522 = vadd.f32 %v4521, %v4310
        %v4523 = vadd.f32 %v4522, %v4312
        %v4524 = vadd.f32 %v4523, %v4314
        %v4525 = vadd.f32 %v4524, %v4316
        %v4526 = vadd.f32 %v4525, %v4318
        %v4527 = vadd.f32 %v4526, %v4320
        %v4528 = vadd.f32 %v4527, %v4322
        %v4529 = vadd.f32 %v4528, %v4324
        %v4530 = vadd.f32 %v4529, %v4326
        %v4531 = vadd.f32 %v4530, %v4328
        %v4532 = vadd.f32 %v4531, %v4330
        %v4533 = vadd.f32 %v4532, %v4332
        %v4534 = vadd.f32 %v4533, %v4334
        %v4535 = vadd.f32 %v4534, %v4336
        %v4536 = vadd.f32 %v4535, %v4338
        %v4537 = vadd.f32 %v4536, %v4340
        %v4538 = vadd.f32 %v4537, %v4342
        %v4539 = vadd.f32 %v4538, %v4344
        %v4540 = vadd.f32 %v4539, %v4346
        %v4541 = vadd.f32 %v4540, %v4348
        %v4542 = vadd.f32 %v4541, %v4350
        %v4543 = vadd.f32 %v4542, %v4352
        %v4544 = vadd.f32 %v4543, %v4354
        %v4545 = vadd.f32 %v4544, %v4356
        %v4546 = vadd.f32 %v4545, %v4358
        %v4547 = vadd.f32 %v4546, %v4360
        %v4548 = vadd.f32 %v4547, %v4362
        %v4549 = vadd.f32 %v4548, %v4364
        %v4550 = vadd.f32 %v4549, %v4366
        %v4551 = vadd.f32 %v4550, %v4368
        %v4552 = vadd.f32 %v4551, %v4370
        %v4553 = vadd.f32 %v4552, %v4372
        %v4554 = vadd.f32 %v4553, %v4374
        %v4555 = vadd.f32 %v4554, %v4376
        %v4556 = vadd.f32 %v4555, %v4378
        %v4557 = vadd.f32 %v4556, %v4380
        %v4558 = vadd.f32 %v4557, %v4382
        %v4559 = vadd.f32 %v4558, %v4384
        %v4560 = vadd.f32 %v4559, %v4386
        %v4561 = vadd.f32 %v4560, %v4388
        %v4562 = vadd.f32 %v4561, %v4390
        %v4563 = vadd.f32 %v4562, %v4392
        %v4564 = vadd.f32 %v4563, %v4394
        %v4565 = vadd.f32 %v4564, %v4396
        %v4566 = vadd.f32 %v4565, %v4398
        %v4567 = vadd.f32 %v4566, %v4400
        %v4568 = vadd.f32 %v4567, %v4402
        %v4569 = vadd.f32 %v4568, %v4404
        %v4570 = vadd.f32 %v4569, %v4406
        %v4571 = vrot.slane %v4570, 4
        %v4572 = vadd.f32 %v4570, %v4571
        %v4573 = vrot.slane %v4572, 2
        %v4574 = vadd.f32 %v4572, %v4573
        %v4575 = vrot.slane %v4574, 1
        %v4576 = vadd.f32 %v4574, %v4575
        %v4577 = vmul.f32 %v4405, 15.0
        %v4578 = vmul.f32 %v4406, 15.0
        %v4579 = vsub.f32 %v4491, %v4577
        %v4580 = vsub.f32 %v4576, %v4578
        %v4583 = vcombine.high %v4579, %v4580
        %v4585 = vunpack.c.l.s4 1966171168
        %v4586 = vunpack.c.0.s8 %v4585
        %v4587 = vlaneseq
        %v4588 = vshrl.u32 %v4587, 7
        %v4589 = vsub.s32 %v4586, %v4588
        %v4590 = vrot.slane %v4583, %v4589
        %v4591 = vcombine.high %v4590, %v4590
        %v4593 = vunpack.c.l.s4 1966171168
        %v4594 = vunpack.c.0.s8 %v4593
        %v4595 = vlaneseq
        %v4596 = vshrl.u32 %v4595, 7
        %v4597 = vsub.s32 %v4594, %v4596
        %v4598 = vrot.slane %v4591, %v4597
        %v4599 = vcombine.high %v4598, %v4598
        %v4601 = vlaneseq
        %vm4602 = vcmp.ge.s32.totalorder %v4601, 0
        %vm4603 = vcmp.lt.s32.totalorder %v4601, 256
        %vm4604 = vmand %vm4602, %vm4603
        %4605 = vst.msk [vmem:[%s297] sm:$0x3] %vm4604, %v4599
        %s4606 = sand.u32 %s187, 1
        %s4607 = scalar_lea.sflag [#allocation6], %s4606
        %s4608 = sand.u32 %s187, 1
        %s4609 = smul.addr %s4608, 2
        %s4610 = scalar_lea.vmem [#allocation7], %s4609
        // Predicated region
        $region53: #{tpu_custom_call.1} parent=47 // pred_check
          %p4611 = pneg %p197
        $region54: #{tpu_custom_call.1} parent=47 // pred_check_branch
          %4613 = sbr.rel (%p4611) target = $region56
        $region55: #{tpu_custom_call.1} parent=47 // pred_region
          %s4615 = ssub.s32 32, 32
          %4616 = vsyncadd %s4607, %s4615
          %s4617 = smul.addr %s22, 2
          %s4618 = smul.addr %s4617, 16
          %s4619 = scalar_lea.hbm %s7, %s4618
          %s4621 = sshll.u32 %s4610, 4
          %s4622 = int_to_ptr.vmem [resolvable:$true] %s4621
          %4624 = dma.vmem_to_hbm [thread:$0]  %s4622, 32, %s4619, %s4607
        $region56: #{tpu_custom_call.1} parent=47 // pred_fallthru
          _
      $region48: #{tpu_custom_call.1} parent=5 // pred_fallthru
        _
      %p4625 = scmp.le.s32.totalorder 2, %s17
      // Predicated region
      $region57: #{tpu_custom_call.1} parent=5 // pred_check
        %p4626 = pneg %p4625
      $region58: #{tpu_custom_call.1} parent=5 // pred_check_branch
        %4628 = sbr.rel (%p4626) target = $region60
      $region59: #{tpu_custom_call.1} parent=5 // pred_region
        %s4629 = ssub.s32 %s17, 2
        // Predicated region
        $region61: #{tpu_custom_call.1} parent=59 // pred_check
          %p4630 = pneg %p203
        $region62: #{tpu_custom_call.1} parent=59 // pred_check_branch
          %4632 = sbr.rel (%p4630) target = $region64
        $region63: #{tpu_custom_call.1} parent=59 // pred_region
          %s4633 = sand.u32 %s188, 1
          %s4634 = scalar_lea.sflag [#allocation6], %s4633
          %s4635 = sand.u32 %s188, 1
          %s4636 = smul.addr %s4635, 2
          %s4637 = scalar_lea.vmem [#allocation7], %s4636
          %4638 = dma.done %s4634, 32
        $region64: #{tpu_custom_call.1} parent=59 // pred_fallthru
          _
      $region60: #{tpu_custom_call.1} parent=5 // pred_fallthru
        _
    $region6: #{tpu_custom_call.1} parent=1 // loop_footer
      %s21 = sadd.s32 1, %s17
    $region7: #{tpu_custom_call.1} parent=1 // loop_footer_branch
      %16 = sbr.rel target = $region3
    $region8: #{tpu_custom_call.1} parent=1 // loop_exit
      _
    %4639 = vsyncpa [#allocation5], 1
    %s4640 = scalar_lea.sflag [#allocation5], 1
    %4641 = vsyncpa %s4640, 1
    %4642 = vsyncpa [#allocation6], 1
    %s4643 = scalar_lea.sflag [#allocation6], 1
    %4644 = vsyncpa %s4643, 1

</llo_original>
